<compile_context>
chip_gen: v7x
topology: tpu7x:2x2x1
jax: 0.10.0
libtpu: 0.0.40
codegen_flags: <defaults>
</compile_context>

<pallas_src>
import functools

import jax
import jax.numpy as jnp
from jax.experimental import pallas as pl
from jax.experimental.pallas import tpu as pltpu

IN_DIM = 1
COND_DIM = 1
HIDDEN = (256, 512)          # hidden_dims used in distill.py
MAX_POSITIONS = 10000


def _silu(v):
    return v * jax.nn.sigmoid(v)


def _round_up(n, m):
    return ((n + m - 1) // m) * m


def toynet_kernel(inp_ref, freqs_ref,
                  w0_ref, b0_ref, wc0_ref, bc0_ref,
                  w1p_ref, b1p_ref,
                  w2row_ref, b2_ref,
                  out_ref):
    inp = inp_ref[...]                       # (TB, 3) f32: [x | t | cond]
    x = inp[:, 0:1]                          # (TB, 1)
    t = inp[:, 1:2]                          # (TB, 1)
    cond = inp[:, 2:3]                       # (TB, 1)

    freqs = freqs_ref[...]                   # (1, H0//2)

    # ---- block 0: layers[0] / PositionalEmbedding / cond_layers[0] -------
    # K=1 linear layers are outer products -> VPU broadcast multiplies.
    h_pre = x * w0_ref[...] + b0_ref[...]                        # (TB, H0)
    ang = t * freqs                                              # outer(t, freqs)
    t_emb = jnp.concatenate([jnp.cos(ang), jnp.sin(ang)], axis=1)  # (TB, H0)
    c_emb = cond * wc0_ref[...] + bc0_ref[...]                   # (TB, H0)
    h_act = _silu(h_pre + t_emb + c_emb)                         # (TB, H0) f32

    # ---- block 1: layers[1] + emb_layers[1] + cond_layers[1] fused -------
    # Single (TB, 3*H0) x (3*H0, H1) MXU matmul, bf16 operands, f32 accumulate.
    cat = jnp.concatenate([h_act, t_emb, c_emb], axis=1)         # (TB, 3*H0) f32
    h2 = jnp.dot(cat.astype(w1p_ref.dtype), w1p_ref[...],
                 preferred_element_type=jnp.float32) + b1p_ref[...]
    h2 = _silu(h2)                                               # (TB, H1) f32

    # ---- final projection layers[-1]: N=1 -> VPU mult + XLU lane reduce --
    out = jnp.sum(h2 * w2row_ref[...], axis=-1, keepdims=True) + b2_ref[...]
    out_ref[...] = out.astype(out_ref.dtype)


def init_params(key, in_dim=IN_DIM, cond_dim=COND_DIM, hidden=HIDDEN):
    """Deterministic PyTorch-style (uniform +/- 1/sqrt(fan_in)) Linear init."""
    h0, h1 = hidden

    def linear(k, fan_in, fan_out):
        kw, kb = jax.random.split(k)
        bound = 1.0 / jnp.sqrt(fan_in)
        w = jax.random.uniform(kw, (fan_in, fan_out), jnp.float32, -bound, bound)
        b = jax.random.uniform(kb, (1, fan_out), jnp.float32, -bound, bound)
        return w, b

    ks = jax.random.split(key, 6)
    w0, b0 = linear(ks[0], in_dim, h0)      # layers[0]
    w1, b1 = linear(ks[1], h0, h1)          # layers[1]
    w2, b2 = linear(ks[2], h1, in_dim)      # layers[2]
    we1, be1 = linear(ks[3], h0, h1)        # emb_layers[1]
    wc0, bc0 = linear(ks[4], cond_dim, h0)  # cond_layers[0]
    wc1, bc1 = linear(ks[5], h0, h1)        # cond_layers[1]

    # PositionalEmbedding freqs buffer
    freqs = jnp.linspace(0.0, 0.5, h0 // 2, dtype=jnp.float32)
    freqs = (1.0 / MAX_POSITIONS) ** freqs
    freqs = freqs.reshape(1, h0 // 2)

    return dict(freqs=freqs, w0=w0, b0=b0, wc0=wc0, bc0=bc0,
                w1=w1, b1=b1, we1=we1, be1=be1, wc1=wc1, bc1=bc1,
                w2=w2, b2=b2)


def pack_params(p, weights_dtype=jnp.bfloat16):
    """One-time packing: fuse block-1 weights/biases, transpose final weight."""
    h0, h1 = HIDDEN
    assert IN_DIM == 1 and COND_DIM == 1
    w1p = jnp.concatenate([p["w1"], p["we1"], p["wc1"]], axis=0)   # (3*H0, H1)
    w1p = w1p.astype(weights_dtype)
    b1p = (p["b1"] + p["be1"] + p["bc1"]).astype(jnp.float32)      # (1, H1)
    w2row = p["w2"].reshape(1, h1).astype(jnp.float32)             # (1, H1)
    return dict(freqs=p["freqs"].astype(jnp.float32),
                w0=p["w0"].astype(jnp.float32), b0=p["b0"].astype(jnp.float32),
                wc0=p["wc0"].astype(jnp.float32), bc0=p["bc0"].astype(jnp.float32),
                w1p=w1p, b1p=b1p, w2row=w2row, b2=p["b2"].astype(jnp.float32))


@functools.partial(jax.jit, static_argnames=("tb",))
def _toynet_forward_jit(x, t, cond, packed, tb):
    n = x.shape[0]
    h0, h1 = HIDDEN
    n_pad = _round_up(n, tb)

    # Pack x / t / cond into one (n_pad, 3) array -> single DMA per tile.
    inp = jnp.concatenate(
        [x.reshape(n, 1), t.reshape(n, 1), cond.reshape(n, 1)],
        axis=1).astype(jnp.float32)
    if n_pad != n:
        inp = jnp.pad(inp, ((0, n_pad - n), (0, 0)))

    batch_map = lambda i: (i, 0)
    full_map = lambda i: (0, 0)     # constant index -> weights stay VMEM-resident

    in_specs = [
        pl.BlockSpec((tb, 3), batch_map),            # packed [x|t|cond]
        pl.BlockSpec((1, h0 // 2), full_map),        # freqs
        pl.BlockSpec((1, h0), full_map),             # w0 row
        pl.BlockSpec((1, h0), full_map),             # b0
        pl.BlockSpec((1, h0), full_map),             # wc0 row
        pl.BlockSpec((1, h0), full_map),             # bc0
        pl.BlockSpec((3 * h0, h1), full_map),        # fused [w1;we1;wc1]
        pl.BlockSpec((1, h1), full_map),             # fused b1+be1+bc1
        pl.BlockSpec((1, h1), full_map),             # w2 as a row
        pl.BlockSpec((1, 1), full_map),              # b2
    ]

    out = pl.pallas_call(
        toynet_kernel,
        out_shape=jax.ShapeDtypeStruct((n_pad, 1), jnp.float32),
        grid_spec=pltpu.PrefetchScalarGridSpec(
            num_scalar_prefetch=0,
            grid=(n_pad // tb,),
            in_specs=in_specs,
            out_specs=pl.BlockSpec((tb, 1), batch_map),
        ),
        compiler_params=pltpu.CompilerParams(
            dimension_semantics=("parallel",)),
    )(inp, packed["freqs"],
      packed["w0"], packed["b0"], packed["wc0"], packed["bc0"],
      packed["w1p"], packed["b1p"], packed["w2row"], packed["b2"])

    return out[:n]


def toynet_forward(x, t, cond, packed_params, tb=None):
    n = x.shape[0]
    if tb is None:
        # Large tile for MXU utilization, but never larger than the padded batch.
        tb = min(512, _round_up(max(n, 8), 8))
    return _toynet_forward_jit(x, t, cond, packed_params, tb=tb)


def toynet_reference(x, t, cond, p, block1_dtype=jnp.float32):
    """Pure-JAX reference mirroring the PyTorch forward (for verification).

    block1_dtype=jnp.bfloat16 mirrors the kernel's MXU precision (bf16 operands,
    f32 accumulation) while keeping the three block-1 matmuls un-fused.
    """
    n = x.shape[0]
    x = x.reshape(n, 1).astype(jnp.float32)
    t2d = t.reshape(n, 1).astype(jnp.float32)
    cond = cond.reshape(n, 1).astype(jnp.float32)

    h = x @ p["w0"] + p["b0"]
    ang = t2d * p["freqs"]
    t_emb = jnp.concatenate([jnp.cos(ang), jnp.sin(ang)], axis=1)
    c_emb = cond @ p["wc0"] + p["bc0"]
    h = jax.nn.silu(h + t_emb + c_emb)

    def mm(a, w):
        return jnp.dot(a.astype(block1_dtype), w.astype(block1_dtype),
                       preferred_element_type=jnp.float32)

    h2 = (mm(h, p["w1"]) + mm(t_emb, p["we1"]) + mm(c_emb, p["wc1"])
          + p["b1"] + p["be1"] + p["bc1"])
    h2 = jax.nn.silu(h2)
    return h2 @ p["w2"] + p["b2"]


if __name__ == "__main__":
    key = jax.random.PRNGKey(0)
    k_param, kx, kt, kc = jax.random.split(key, 4)

    params = init_params(k_param)
    packed = pack_params(params)             # one-time packing (bf16 fused weight)

    # Shapes consistent with distill.py: ntest=25, nrepeat=5 -> N=125, in/cond dim 1.
    N = 125
    x = jax.random.normal(kx, (N, IN_DIM), jnp.float32)
    t = jax.random.uniform(kt, (N,), jnp.float32)          # diffusion timestep
    cond = jax.random.uniform(kc, (N,), jnp.float32)

    out = jax.block_until_ready(toynet_forward(x, t, cond, packed))
    assert out.shape == (N, IN_DIM)

    # Tight check vs a precision-matched (bf16 MXU operands) reference.
    ref_bf16 = toynet_reference(x, t, cond, params, block1_dtype=jnp.bfloat16)
    err = jnp.max(jnp.abs(out - ref_bf16))
    assert jnp.allclose(out, ref_bf16, atol=2e-3, rtol=2e-3), (
        f"mismatch vs bf16-matched reference: max abs err {err}")

    # Loose check vs the full-f32 PyTorch-equivalent reference.
    ref_f32 = toynet_reference(x, t, cond, params, block1_dtype=jnp.float32)
    err32 = jnp.max(jnp.abs(out - ref_f32))
    assert jnp.allclose(out, ref_f32, atol=5e-2, rtol=5e-2), (
        f"mismatch vs f32 reference: max abs err {err32}")

    # Second config: multiple grid tiles + batch padding (N not a multiple of tb).
    N2 = 200
    x2 = jax.random.normal(kx, (N2, IN_DIM), jnp.float32)
    t2 = jax.random.uniform(kt, (N2,), jnp.float32)
    cond2 = jax.random.uniform(kc, (N2,), jnp.float32)
    out2 = jax.block_until_ready(toynet_forward(x2, t2, cond2, packed, tb=64))
    ref2 = toynet_reference(x2, t2, cond2, params, block1_dtype=jnp.bfloat16)
    assert out2.shape == (N2, IN_DIM)
    assert jnp.allclose(out2, ref2, atol=2e-3, rtol=2e-3), (
        f"mismatch (multi-tile): max abs err {jnp.max(jnp.abs(out2 - ref2))}")

    print("KERNEL_OK")
</pallas_src>

<mosaic_0001>
module attributes {stable_mosaic.version = 11 : i64} {
  func.func @toynet_kernel(%arg0: i32, %arg1: memref<128x3xf32, #tpu.memory_space<vmem>>, %arg2: memref<1x128xf32, #tpu.memory_space<vmem>>, %arg3: memref<1x256xf32, #tpu.memory_space<vmem>>, %arg4: memref<1x256xf32, #tpu.memory_space<vmem>>, %arg5: memref<1x256xf32, #tpu.memory_space<vmem>>, %arg6: memref<1x256xf32, #tpu.memory_space<vmem>>, %arg7: memref<768x512xbf16, #tpu.memory_space<vmem>>, %arg8: memref<1x512xf32, #tpu.memory_space<vmem>>, %arg9: memref<1x512xf32, #tpu.memory_space<vmem>>, %arg10: memref<1x1xf32, #tpu.memory_space<vmem>>, %arg11: memref<128x1xf32, #tpu.memory_space<vmem>>) attributes {dimension_semantics = [#tpu.dimension_semantics<parallel>], iteration_bounds = array<i64: 1>, scalar_prefetch = 0 : i64, scratch_operands = 0 : i64, tpu.core_type = #tpu.core_type<tc>, window_params = [{transform_indices = @transform_0, window_bounds = array<i64: 128, 3>}, {pipeline_mode = #tpu.pipeline_mode<synchronous>, transform_indices = @transform_1, window_bounds = array<i64: 1, 128>}, {pipeline_mode = #tpu.pipeline_mode<synchronous>, transform_indices = @transform_2, window_bounds = array<i64: 1, 256>}, {pipeline_mode = #tpu.pipeline_mode<synchronous>, transform_indices = @transform_3, window_bounds = array<i64: 1, 256>}, {pipeline_mode = #tpu.pipeline_mode<synchronous>, transform_indices = @transform_4, window_bounds = array<i64: 1, 256>}, {pipeline_mode = #tpu.pipeline_mode<synchronous>, transform_indices = @transform_5, window_bounds = array<i64: 1, 256>}, {pipeline_mode = #tpu.pipeline_mode<synchronous>, transform_indices = @transform_6, window_bounds = array<i64: 768, 512>}, {pipeline_mode = #tpu.pipeline_mode<synchronous>, transform_indices = @transform_7, window_bounds = array<i64: 1, 512>}, {pipeline_mode = #tpu.pipeline_mode<synchronous>, transform_indices = @transform_8, window_bounds = array<i64: 1, 512>}, {pipeline_mode = #tpu.pipeline_mode<synchronous>, transform_indices = @transform_9, window_bounds = array<i64: 1, 1>}, {transform_indices = @transform_10, window_bounds = array<i64: 128, 1>}]} {
    %c0 = arith.constant 0 : index
    %c0_0 = arith.constant 0 : index
    %0 = vector.load %arg1[%c0, %c0_0] : memref<128x3xf32, #tpu.memory_space<vmem>>, vector<128x3xf32>
    %1 = vector.extract_strided_slice %0 {offsets = [0, 0], sizes = [128, 1], strides = [1, 1]} : vector<128x3xf32> to vector<128x1xf32>
    %2 = vector.extract_strided_slice %0 {offsets = [0, 1], sizes = [128, 1], strides = [1, 1]} : vector<128x3xf32> to vector<128x1xf32>
    %3 = vector.extract_strided_slice %0 {offsets = [0, 2], sizes = [128, 1], strides = [1, 1]} : vector<128x3xf32> to vector<128x1xf32>
    %c0_1 = arith.constant 0 : index
    %c0_2 = arith.constant 0 : index
    %4 = vector.load %arg2[%c0_1, %c0_2] : memref<1x128xf32, #tpu.memory_space<vmem>>, vector<1x128xf32>
    %c0_3 = arith.constant 0 : index
    %c0_4 = arith.constant 0 : index
    %5 = vector.load %arg3[%c0_3, %c0_4] : memref<1x256xf32, #tpu.memory_space<vmem>>, vector<1x256xf32>
    %6 = vector.broadcast %1 : vector<128x1xf32> to vector<128x256xf32>
    %7 = vector.broadcast %5 : vector<1x256xf32> to vector<128x256xf32>
    %8 = arith.mulf %6, %7 : vector<128x256xf32>
    %c0_5 = arith.constant 0 : index
    %c0_6 = arith.constant 0 : index
    %9 = vector.load %arg4[%c0_5, %c0_6] : memref<1x256xf32, #tpu.memory_space<vmem>>, vector<1x256xf32>
    %10 = vector.broadcast %9 : vector<1x256xf32> to vector<128x256xf32>
    %11 = arith.addf %8, %10 : vector<128x256xf32>
    %12 = vector.broadcast %2 : vector<128x1xf32> to vector<128x128xf32>
    %13 = vector.broadcast %4 : vector<1x128xf32> to vector<128x128xf32>
    %14 = arith.mulf %12, %13 : vector<128x128xf32>
    %15 = math.cos %14 : vector<128x128xf32>
    %16 = math.sin %14 : vector<128x128xf32>
    %17 = tpu.concatenate %15, %16 in 1 : vector<128x128xf32>, vector<128x128xf32> -> vector<128x256xf32>
    %c0_7 = arith.constant 0 : index
    %c0_8 = arith.constant 0 : index
    %18 = vector.load %arg5[%c0_7, %c0_8] : memref<1x256xf32, #tpu.memory_space<vmem>>, vector<1x256xf32>
    %19 = vector.broadcast %3 : vector<128x1xf32> to vector<128x256xf32>
    %20 = vector.broadcast %18 : vector<1x256xf32> to vector<128x256xf32>
    %21 = arith.mulf %19, %20 : vector<128x256xf32>
    %c0_9 = arith.constant 0 : index
    %c0_10 = arith.constant 0 : index
    %22 = vector.load %arg6[%c0_9, %c0_10] : memref<1x256xf32, #tpu.memory_space<vmem>>, vector<1x256xf32>
    %23 = vector.broadcast %22 : vector<1x256xf32> to vector<128x256xf32>
    %24 = arith.addf %21, %23 : vector<128x256xf32>
    %25 = arith.addf %11, %17 : vector<128x256xf32>
    %26 = arith.addf %25, %24 : vector<128x256xf32>
    %27 = arith.negf %26 : vector<128x256xf32>
    %28 = math.exp %27 : vector<128x256xf32>
    %cst = arith.constant 1.000000e+00 : f32
    %29 = vector.broadcast %cst : f32 to vector<128x256xf32>
    %30 = arith.addf %29, %28 : vector<128x256xf32>
    %31 = arith.divf %29, %30 : vector<128x256xf32>
    %32 = arith.mulf %26, %31 : vector<128x256xf32>
    %33 = tpu.concatenate %32, %17, %24 in 1 : vector<128x256xf32>, vector<128x256xf32>, vector<128x256xf32> -> vector<128x768xf32>
    %34 = arith.truncf %33 : vector<128x768xf32> to vector<128x768xbf16>
    %c0_11 = arith.constant 0 : index
    %c0_12 = arith.constant 0 : index
    %35 = vector.load %arg7[%c0_11, %c0_12] : memref<768x512xbf16, #tpu.memory_space<vmem>>, vector<768x512xbf16>
    %cst_13 = arith.constant dense<0.000000e+00> : vector<128x512xf32>
    %36 = tpu.matmul %34, %35, %cst_13 {dimension_numbers = #tpu.dot_dimension_numbers<[1], [0], [0], [1], [0, 0, 1, 1], [], []>} : vector<128x768xbf16>, vector<768x512xbf16>, vector<128x512xf32> -> vector<128x512xf32>
    %c0_14 = arith.constant 0 : index
    %c0_15 = arith.constant 0 : index
    %37 = vector.load %arg8[%c0_14, %c0_15] : memref<1x512xf32, #tpu.memory_space<vmem>>, vector<1x512xf32>
    %38 = vector.broadcast %37 : vector<1x512xf32> to vector<128x512xf32>
    %39 = arith.addf %36, %38 : vector<128x512xf32>
    %40 = arith.negf %39 : vector<128x512xf32>
    %41 = math.exp %40 : vector<128x512xf32>
    %cst_16 = arith.constant 1.000000e+00 : f32
    %42 = vector.broadcast %cst_16 : f32 to vector<128x512xf32>
    %43 = arith.addf %42, %41 : vector<128x512xf32>
    %44 = arith.divf %42, %43 : vector<128x512xf32>
    %45 = arith.mulf %39, %44 : vector<128x512xf32>
    %c0_17 = arith.constant 0 : index
    %c0_18 = arith.constant 0 : index
    %46 = vector.load %arg9[%c0_17, %c0_18] : memref<1x512xf32, #tpu.memory_space<vmem>>, vector<1x512xf32>
    %47 = vector.broadcast %46 : vector<1x512xf32> to vector<128x512xf32>
    %48 = arith.mulf %45, %47 : vector<128x512xf32>
    %cst_19 = arith.constant dense<0.000000e+00> : vector<128xf32>
    %49 = vector.multi_reduction <add>, %48, %cst_19 [1] : vector<128x512xf32> to vector<128xf32>
    %50 = vector.shape_cast %49 : vector<128xf32> to vector<128x1xf32>
    %c0_20 = arith.constant 0 : index
    %c0_21 = arith.constant 0 : index
    %51 = vector.load %arg10[%c0_20, %c0_21] : memref<1x1xf32, #tpu.memory_space<vmem>>, vector<1x1xf32>
    %52 = vector.broadcast %51 : vector<1x1xf32> to vector<128x1xf32>
    %53 = arith.addf %50, %52 : vector<128x1xf32>
    %c0_22 = arith.constant 0 : index
    %c0_23 = arith.constant 0 : index
    %54 = vector.load %arg11[%c0_22, %c0_23] : memref<128x1xf32, #tpu.memory_space<vmem>>, vector<128x1xf32>
    tpu.vector_store %arg11[%c0_22, %c0_23], %53 {strides = array<i32>} : memref<128x1xf32, #tpu.memory_space<vmem>>, vector<128x1xf32>,
    return
  }
  func.func @transform_0(%arg0: i32) -> (i32, i32) {
    %c0_i32 = arith.constant 0 : i32
    %c0_i32_0 = arith.constant 0 : i32
    return %arg0, %c0_i32 : i32, i32
  }
  func.func @transform_1(%arg0: i32) -> (i32, i32) {
    %c0_i32 = arith.constant 0 : i32
    %c0_i32_0 = arith.constant 0 : i32
    %c0_i32_1 = arith.constant 0 : i32
    return %c0_i32, %c0_i32_0 : i32, i32
  }
  func.func @transform_2(%arg0: i32) -> (i32, i32) {
    %c0_i32 = arith.constant 0 : i32
    %c0_i32_0 = arith.constant 0 : i32
    %c0_i32_1 = arith.constant 0 : i32
    return %c0_i32, %c0_i32_0 : i32, i32
  }
  func.func @transform_3(%arg0: i32) -> (i32, i32) {
    %c0_i32 = arith.constant 0 : i32
    %c0_i32_0 = arith.constant 0 : i32
    %c0_i32_1 = arith.constant 0 : i32
    return %c0_i32, %c0_i32_0 : i32, i32
  }
  func.func @transform_4(%arg0: i32) -> (i32, i32) {
    %c0_i32 = arith.constant 0 : i32
    %c0_i32_0 = arith.constant 0 : i32
    %c0_i32_1 = arith.constant 0 : i32
    return %c0_i32, %c0_i32_0 : i32, i32
  }
  func.func @transform_5(%arg0: i32) -> (i32, i32) {
    %c0_i32 = arith.constant 0 : i32
    %c0_i32_0 = arith.constant 0 : i32
    %c0_i32_1 = arith.constant 0 : i32
    return %c0_i32, %c0_i32_0 : i32, i32
  }
  func.func @transform_6(%arg0: i32) -> (i32, i32) {
    %c0_i32 = arith.constant 0 : i32
    %c0_i32_0 = arith.constant 0 : i32
    %c0_i32_1 = arith.constant 0 : i32
    return %c0_i32, %c0_i32_0 : i32, i32
  }
  func.func @transform_7(%arg0: i32) -> (i32, i32) {
    %c0_i32 = arith.constant 0 : i32
    %c0_i32_0 = arith.constant 0 : i32
    %c0_i32_1 = arith.constant 0 : i32
    return %c0_i32, %c0_i32_0 : i32, i32
  }
  func.func @transform_8(%arg0: i32) -> (i32, i32) {
    %c0_i32 = arith.constant 0 : i32
    %c0_i32_0 = arith.constant 0 : i32
    %c0_i32_1 = arith.constant 0 : i32
    return %c0_i32, %c0_i32_0 : i32, i32
  }
  func.func @transform_9(%arg0: i32) -> (i32, i32) {
    %c0_i32 = arith.constant 0 : i32
    %c0_i32_0 = arith.constant 0 : i32
    %c0_i32_1 = arith.constant 0 : i32
    return %c0_i32, %c0_i32_0 : i32, i32
  }
  func.func @transform_10(%arg0: i32) -> (i32, i32) {
    %c0_i32 = arith.constant 0 : i32
    %c0_i32_0 = arith.constant 0 : i32
    return %arg0, %c0_i32 : i32, i32
  }
}

</mosaic_0001>

<llo_original>
// kernel: _toynet_forward_jit.1
$region0: #{_toynet_forward_jit.1}
  #allocation0 [shape = 'u32[]', space=smem, size = 0x4, offset = 0x4, fixed_abs, tag = 'smem constant byte address 0x4 - core index']
  #allocation1 [shape = 'u32[144,128]{1,0:T(1,128)}', space=vmem, size = 0x12000, scoped, tag = 'internal scratch']
  #allocation2 [shape = 'f32[1,1]{1,0:T(1,128)S(1)}', space=vmem, size = 0x200, scoped, tag = 'scoped memory for _toynet_forward_jit.1']
  %s0 = inlined_call_operand.vmem [shape: f32[128,3], index: 0, kind: input, shape index: {}]
  %s1 = inlined_call_operand.vmem [shape: f32[1,128], index: 1, kind: input, shape index: {}]
  %s2 = inlined_call_operand.vmem [shape: f32[1,256], index: 2, kind: input, shape index: {}]
  %s3 = inlined_call_operand.vmem [shape: f32[1,256], index: 3, kind: input, shape index: {}]
  %s4 = inlined_call_operand.vmem [shape: f32[1,256], index: 4, kind: input, shape index: {}]
  %s5 = inlined_call_operand.vmem [shape: f32[1,256], index: 5, kind: input, shape index: {}]
  %s6 = inlined_call_operand.hbm [shape: bf16[768,512], index: 6, kind: input, shape index: {}]
  %s7 = inlined_call_operand.vmem [shape: f32[1,512], index: 7, kind: input, shape index: {}]
  %s8 = inlined_call_operand.vmem [shape: f32[1,512], index: 8, kind: input, shape index: {}]
  %s9 = inlined_call_operand.<no memory space> [shape: f32[1,1], index: 9, kind: input, shape index: {}]
  %s10 = inlined_call_operand.vmem [shape: f32[128,1], index: 10, kind: output, shape index: {}]
  %s11 = sld [smem:[#allocation0]]
  $region54: #{_toynet_forward_jit.1} parent=0
    _
  %s13 = ssub.s32 1, %s11
  %s14 = scalar_select 0, %s13, %s11
  %v15 = vstv %s9
  %16 = vst [vmem:[#allocation2] sm:$0x1] %v15
  $region1: #{_toynet_forward_jit.1} parent=0
    #allocation3 [shape = 'u8[786432]{0}', space=vmem, size = 0xc0000, scoped, tag = 'input window, operand 6, single buffered']
    #allocation4 [shape = 's32[1]{0}', space=sflag, size = 0x4, scoped, tag = 'scoped memory for _toynet_forward_jit.1']
    %17 = vsyncpa [#allocation4], 0
    // Predicated region
    $region2: #{_toynet_forward_jit.1} parent=1 // pred_check
      _
    $region3: #{_toynet_forward_jit.1} parent=1 // pred_check_branch
      %19 = sbr.rel (0) target = $region5
    $region4: #{_toynet_forward_jit.1} parent=1 // pred_region
      _
    $region5: #{_toynet_forward_jit.1} parent=1 // pred_fallthru
      _
    // Predicated region
    $region6: #{_toynet_forward_jit.1} parent=1 // pred_check
      _
    $region7: #{_toynet_forward_jit.1} parent=1 // pred_check_branch
      %21 = sbr.rel (0) target = $region9
    $region8: #{_toynet_forward_jit.1} parent=1 // pred_region
      _
    $region9: #{_toynet_forward_jit.1} parent=1 // pred_fallthru
      _
    // Predicated region
    $region10: #{_toynet_forward_jit.1} parent=1 // pred_check
      _
    $region11: #{_toynet_forward_jit.1} parent=1 // pred_check_branch
      %23 = sbr.rel (0) target = $region13
    $region12: #{_toynet_forward_jit.1} parent=1 // pred_region
      _
    $region13: #{_toynet_forward_jit.1} parent=1 // pred_fallthru
      _
    // Predicated region
    $region14: #{_toynet_forward_jit.1} parent=1 // pred_check
      _
    $region15: #{_toynet_forward_jit.1} parent=1 // pred_check_branch
      %25 = sbr.rel (0) target = $region17
    $region16: #{_toynet_forward_jit.1} parent=1 // pred_region
      _
    $region17: #{_toynet_forward_jit.1} parent=1 // pred_fallthru
      _
    // Predicated region
    $region18: #{_toynet_forward_jit.1} parent=1 // pred_check
      _
    $region19: #{_toynet_forward_jit.1} parent=1 // pred_check_branch
      %27 = sbr.rel (0) target = $region21
    $region20: #{_toynet_forward_jit.1} parent=1 // pred_region
      _
    $region21: #{_toynet_forward_jit.1} parent=1 // pred_fallthru
      _
    // Predicated region
    $region22: #{_toynet_forward_jit.1} parent=1 // pred_check
      _
    $region23: #{_toynet_forward_jit.1} parent=1 // pred_check_branch
      %29 = sbr.rel (0) target = $region25
    $region24: #{_toynet_forward_jit.1} parent=1 // pred_region
      _
    $region25: #{_toynet_forward_jit.1} parent=1 // pred_fallthru
      _
    // Predicated region
    $region26: #{_toynet_forward_jit.1} parent=1 // pred_check
      _
    $region27: #{_toynet_forward_jit.1} parent=1 // pred_check_branch
      %31 = sbr.rel (0) target = $region29
    $region28: #{_toynet_forward_jit.1} parent=1 // pred_region
      %s33 = ssub.s32 24576, 24576
      %34 = vsyncadd [#allocation4], %s33
      %s35 = sshll.u32 [#allocation3], 4
      %s36 = int_to_ptr.vmem [resolvable:$true] %s35
      %41 = dma.hbm_to_vmem [thread:$0]  %s6, 24576, %s36, [#allocation4], 256, 256, 16
    $region29: #{_toynet_forward_jit.1} parent=1 // pred_fallthru
      _
    // Predicated region
    $region30: #{_toynet_forward_jit.1} parent=1 // pred_check
      _
    $region31: #{_toynet_forward_jit.1} parent=1 // pred_check_branch
      %43 = sbr.rel (0) target = $region33
    $region32: #{_toynet_forward_jit.1} parent=1 // pred_region
      _
    $region33: #{_toynet_forward_jit.1} parent=1 // pred_fallthru
      _
    // Predicated region
    $region34: #{_toynet_forward_jit.1} parent=1 // pred_check
      _
    $region35: #{_toynet_forward_jit.1} parent=1 // pred_check_branch
      %45 = sbr.rel (0) target = $region37
    $region36: #{_toynet_forward_jit.1} parent=1 // pred_region
      _
    $region37: #{_toynet_forward_jit.1} parent=1 // pred_fallthru
      _
    // Predicated region
    $region38: #{_toynet_forward_jit.1} parent=1 // pred_check
      _
    $region39: #{_toynet_forward_jit.1} parent=1 // pred_check_branch
      %47 = sbr.rel (0) target = $region41
    $region40: #{_toynet_forward_jit.1} parent=1 // pred_region
      _
    $region41: #{_toynet_forward_jit.1} parent=1 // pred_fallthru
      _
    // Predicated region
    $region42: #{_toynet_forward_jit.1} parent=1 // pred_check
      _
    $region43: #{_toynet_forward_jit.1} parent=1 // pred_check_branch
      %49 = sbr.rel (0) target = $region45
    $region44: #{_toynet_forward_jit.1} parent=1 // pred_region
      %50 = dma.done [#allocation4], 24576
    $region45: #{_toynet_forward_jit.1} parent=1 // pred_fallthru
      _
    %v51 = vld [vmem:[%s0] sm:$0xff]
    %v52 = vld [vmem:[%s0 + $0x8] sm:$0xff]
    %v53 = vld [vmem:[%s0 + $0x10] sm:$0xff]
    %v54 = vld [vmem:[%s0 + $0x18] sm:$0xff]
    %v55 = vld [vmem:[%s0 + $0x20] sm:$0xff]
    %v56 = vld [vmem:[%s0 + $0x28] sm:$0xff]
    %v57 = vld [vmem:[%s0 + $0x30] sm:$0xff]
    %v58 = vld [vmem:[%s0 + $0x38] sm:$0xff]
    %v59 = vld [vmem:[%s0 + $0x40] sm:$0xff]
    %v60 = vld [vmem:[%s0 + $0x48] sm:$0xff]
    %v61 = vld [vmem:[%s0 + $0x50] sm:$0xff]
    %v62 = vld [vmem:[%s0 + $0x58] sm:$0xff]
    %v63 = vld [vmem:[%s0 + $0x60] sm:$0xff]
    %v64 = vld [vmem:[%s0 + $0x68] sm:$0xff]
    %v65 = vld [vmem:[%s0 + $0x70] sm:$0xff]
    %v66 = vld [vmem:[%s0 + $0x78] sm:$0xff]
    %v67 = vld [vmem:[%s1] sm:$0x1]
    %v68 = vld [vmem:[%s2] sm:$0x3]
    %70 = vset.pattern.permute.xlu0 0
    %71 = vperm.xlu0 %70, %v51
    %v72 = vpop.permute.xlu0 %71
    %75 = vset.pattern.permute.xlu0 0
    %76 = vperm.xlu0 %75, %v52
    %v77 = vpop.permute.xlu0 %76
    %80 = vset.pattern.permute.xlu0 0
    %81 = vperm.xlu0 %80, %v53
    %v82 = vpop.permute.xlu0 %81
    %85 = vset.pattern.permute.xlu0 0
    %86 = vperm.xlu0 %85, %v54
    %v87 = vpop.permute.xlu0 %86
    %90 = vset.pattern.permute.xlu0 0
    %91 = vperm.xlu0 %90, %v55
    %v92 = vpop.permute.xlu0 %91
    %95 = vset.pattern.permute.xlu0 0
    %96 = vperm.xlu0 %95, %v56
    %v97 = vpop.permute.xlu0 %96
    %100 = vset.pattern.permute.xlu0 0
    %101 = vperm.xlu0 %100, %v57
    %v102 = vpop.permute.xlu0 %101
    %105 = vset.pattern.permute.xlu0 0
    %106 = vperm.xlu0 %105, %v58
    %v107 = vpop.permute.xlu0 %106
    %110 = vset.pattern.permute.xlu0 0
    %111 = vperm.xlu0 %110, %v59
    %v112 = vpop.permute.xlu0 %111
    %115 = vset.pattern.permute.xlu0 0
    %116 = vperm.xlu0 %115, %v60
    %v117 = vpop.permute.xlu0 %116
    %120 = vset.pattern.permute.xlu0 0
    %121 = vperm.xlu0 %120, %v61
    %v122 = vpop.permute.xlu0 %121
    %125 = vset.pattern.permute.xlu0 0
    %126 = vperm.xlu0 %125, %v62
    %v127 = vpop.permute.xlu0 %126
    %130 = vset.pattern.permute.xlu0 0
    %131 = vperm.xlu0 %130, %v63
    %v132 = vpop.permute.xlu0 %131
    %135 = vset.pattern.permute.xlu0 0
    %136 = vperm.xlu0 %135, %v64
    %v137 = vpop.permute.xlu0 %136
    %140 = vset.pattern.permute.xlu0 0
    %141 = vperm.xlu0 %140, %v65
    %v142 = vpop.permute.xlu0 %141
    %145 = vset.pattern.permute.xlu0 0
    %146 = vperm.xlu0 %145, %v66
    %v147 = vpop.permute.xlu0 %146
    %v150 = vlaneseq
    %v151 = vshrl.u32 %v150, 7
    %v152 = vsub.s32 0, %v151
    %v153 = vrot.slane %v68, %v152
    %v154 = vlaneseq
    %v155 = vshrl.u32 %v154, 7
    %v156 = vsub.s32 1, %v155
    %v157 = vrot.slane %v68, %v156
    %v160 = vmul.f32 %v72, %v153
    %v161 = vmul.f32 %v72, %v157
    %v162 = vmul.f32 %v77, %v153
    %v163 = vmul.f32 %v77, %v157
    %v164 = vmul.f32 %v82, %v153
    %v165 = vmul.f32 %v82, %v157
    %v166 = vmul.f32 %v87, %v153
    %v167 = vmul.f32 %v87, %v157
    %v168 = vmul.f32 %v92, %v153
    %v169 = vmul.f32 %v92, %v157
    %v170 = vmul.f32 %v97, %v153
    %v171 = vmul.f32 %v97, %v157
    %v172 = vmul.f32 %v102, %v153
    %v173 = vmul.f32 %v102, %v157
    %v174 = vmul.f32 %v107, %v153
    %v175 = vmul.f32 %v107, %v157
    %v176 = vmul.f32 %v112, %v153
    %v177 = vmul.f32 %v112, %v157
    %v178 = vmul.f32 %v117, %v153
    %v179 = vmul.f32 %v117, %v157
    %v180 = vmul.f32 %v122, %v153
    %v181 = vmul.f32 %v122, %v157
    %v182 = vmul.f32 %v127, %v153
    %v183 = vmul.f32 %v127, %v157
    %v184 = vmul.f32 %v132, %v153
    %v185 = vmul.f32 %v132, %v157
    %v186 = vmul.f32 %v137, %v153
    %v187 = vmul.f32 %v137, %v157
    %v188 = vmul.f32 %v142, %v153
    %v189 = vmul.f32 %v142, %v157
    %v190 = vmul.f32 %v147, %v153
    %v191 = vmul.f32 %v147, %v157
    %v192 = vld [vmem:[%s3] sm:$0x3]
    %v194 = vlaneseq
    %v195 = vshrl.u32 %v194, 7
    %v196 = vsub.s32 0, %v195
    %v197 = vrot.slane %v192, %v196
    %v198 = vlaneseq
    %v199 = vshrl.u32 %v198, 7
    %v200 = vsub.s32 1, %v199
    %v201 = vrot.slane %v192, %v200
    %v204 = vadd.f32 %v160, %v197
    %v205 = vadd.f32 %v161, %v201
    %v206 = vadd.f32 %v162, %v197
    %v207 = vadd.f32 %v163, %v201
    %v208 = vadd.f32 %v164, %v197
    %v209 = vadd.f32 %v165, %v201
    %v210 = vadd.f32 %v166, %v197
    %v211 = vadd.f32 %v167, %v201
    %v212 = vadd.f32 %v168, %v197
    %v213 = vadd.f32 %v169, %v201
    %v214 = vadd.f32 %v170, %v197
    %v215 = vadd.f32 %v171, %v201
    %v216 = vadd.f32 %v172, %v197
    %v217 = vadd.f32 %v173, %v201
    %v218 = vadd.f32 %v174, %v197
    %v219 = vadd.f32 %v175, %v201
    %v220 = vadd.f32 %v176, %v197
    %v221 = vadd.f32 %v177, %v201
    %v222 = vadd.f32 %v178, %v197
    %v223 = vadd.f32 %v179, %v201
    %v224 = vadd.f32 %v180, %v197
    %v225 = vadd.f32 %v181, %v201
    %v226 = vadd.f32 %v182, %v197
    %v227 = vadd.f32 %v183, %v201
    %v228 = vadd.f32 %v184, %v197
    %v229 = vadd.f32 %v185, %v201
    %v230 = vadd.f32 %v186, %v197
    %v231 = vadd.f32 %v187, %v201
    %v232 = vadd.f32 %v188, %v197
    %v233 = vadd.f32 %v189, %v201
    %v234 = vadd.f32 %v190, %v197
    %v235 = vadd.f32 %v191, %v201
    %236 = vset.pattern.permute.xlu0 1
    %237 = vperm.xlu0 %236, %v51
    %v238 = vpop.permute.xlu0 %237
    %240 = vset.pattern.permute.xlu0 1
    %241 = vperm.xlu0 %240, %v52
    %v242 = vpop.permute.xlu0 %241
    %244 = vset.pattern.permute.xlu0 1
    %245 = vperm.xlu0 %244, %v53
    %v246 = vpop.permute.xlu0 %245
    %248 = vset.pattern.permute.xlu0 1
    %249 = vperm.xlu0 %248, %v54
    %v250 = vpop.permute.xlu0 %249
    %252 = vset.pattern.permute.xlu0 1
    %253 = vperm.xlu0 %252, %v55
    %v254 = vpop.permute.xlu0 %253
    %256 = vset.pattern.permute.xlu0 1
    %257 = vperm.xlu0 %256, %v56
    %v258 = vpop.permute.xlu0 %257
    %260 = vset.pattern.permute.xlu0 1
    %261 = vperm.xlu0 %260, %v57
    %v262 = vpop.permute.xlu0 %261
    %264 = vset.pattern.permute.xlu0 1
    %265 = vperm.xlu0 %264, %v58
    %v266 = vpop.permute.xlu0 %265
    %268 = vset.pattern.permute.xlu0 1
    %269 = vperm.xlu0 %268, %v59
    %v270 = vpop.permute.xlu0 %269
    %272 = vset.pattern.permute.xlu0 1
    %273 = vperm.xlu0 %272, %v60
    %v274 = vpop.permute.xlu0 %273
    %276 = vset.pattern.permute.xlu0 1
    %277 = vperm.xlu0 %276, %v61
    %v278 = vpop.permute.xlu0 %277
    %280 = vset.pattern.permute.xlu0 1
    %281 = vperm.xlu0 %280, %v62
    %v282 = vpop.permute.xlu0 %281
    %284 = vset.pattern.permute.xlu0 1
    %285 = vperm.xlu0 %284, %v63
    %v286 = vpop.permute.xlu0 %285
    %288 = vset.pattern.permute.xlu0 1
    %289 = vperm.xlu0 %288, %v64
    %v290 = vpop.permute.xlu0 %289
    %292 = vset.pattern.permute.xlu0 1
    %293 = vperm.xlu0 %292, %v65
    %v294 = vpop.permute.xlu0 %293
    %296 = vset.pattern.permute.xlu0 1
    %297 = vperm.xlu0 %296, %v66
    %v298 = vpop.permute.xlu0 %297
    %v301 = vlaneseq
    %v302 = vshrl.u32 %v301, 7
    %v303 = vsub.s32 0, %v302
    %v304 = vrot.slane %v67, %v303
    %v306 = vmul.f32 %v238, %v304
    %v307 = vmul.f32 %v242, %v304
    %v308 = vmul.f32 %v246, %v304
    %v309 = vmul.f32 %v250, %v304
    %v310 = vmul.f32 %v254, %v304
    %v311 = vmul.f32 %v258, %v304
    %v312 = vmul.f32 %v262, %v304
    %v313 = vmul.f32 %v266, %v304
    %v314 = vmul.f32 %v270, %v304
    %v315 = vmul.f32 %v274, %v304
    %v316 = vmul.f32 %v278, %v304
    %v317 = vmul.f32 %v282, %v304
    %v318 = vmul.f32 %v286, %v304
    %v319 = vmul.f32 %v290, %v304
    %v320 = vmul.f32 %v294, %v304
    %v321 = vmul.f32 %v298, %v304
    %v322 = vand.u32 2147483647, %v306
    %vm323 = vcmp.le.f32.partialorder %v322, 0.7853982
    %vm324 = vcmp.lt.s32.totalorder %v306, 0
    %v325 = vand.u32 %v306, 2139095040
    %v326 = vshrl.u32 %v325, 23
    %v327 = vsub.s32 %v326, 127
    %v328 = vand.u32 2147483647, %v306
    %v329 = vand.u32 %v328, 8388607
    %v330 = vor.u32 %v329, 8388608
    %v331 = vsub.s32 0, %v330
    %v332 = vadd.s32 %v327, 1
    %vm333 = vcmp.gt.s32.totalorder %v332, 0
    %v334 = vsel %vm333, %v332, 0
    %v335 = vshrl.u32 %v334, 5
    %v336 = vand.u32 %v334, 31
    %v337 = vsub.s32 32, %v336
    %v338 = vshrl.u32 683565275, %v337
    %v339 = vshll.u32 683565275, %v336
    %v340 = vshrl.u32 2475754826, %v337
    %v341 = vor.u32 %v339, %v340
    %v342 = vshll.u32 2475754826, %v336
    %v343 = vshrl.u32 2131351028, %v337
    %v344 = vor.u32 %v342, %v343
    %v345 = vshll.u32 2131351028, %v336
    %v346 = vshrl.u32 2102212464, %v337
    %v347 = vor.u32 %v345, %v346
    %v348 = vshll.u32 2102212464, %v336
    %v349 = vshrl.u32 920167782, %v337
    %v350 = vor.u32 %v348, %v349
    %v351 = vshll.u32 920167782, %v336
    %v352 = vshrl.u32 1326507024, %v337
    %v353 = vor.u32 %v351, %v352
    %vm354 = vcmp.lt.s32.totalorder %v335, 1
    %vm355 = vcmp.lt.s32.totalorder %v335, 2
    %vm356 = vcmp.lt.s32.totalorder %v335, 3
    %vm357 = vcmp.lt.s32.totalorder %v335, 4
    %v358 = vsel %vm354, %v338, %v341
    %v359 = vsel %vm357, %v347, 2102212464
    %v360 = vsel %vm356, %v344, %v359
    %v361 = vsel %vm355, %v358, %v360
    %v362 = vsel %vm354, %v341, %v344
    %v363 = vsel %vm357, %v350, 920167782
    %v364 = vsel %vm356, %v347, %v363
    %v365 = vsel %vm355, %v362, %v364
    %v366 = vsel %vm354, %v344, %v347
    %v367 = vsel %vm357, %v353, 1326507024
    %v368 = vsel %vm356, %v350, %v367
    %v369 = vsel %vm355, %v366, %v368
    %v370 = vshll.u32 %v330, 8
    %v371 = vmul.u32.u64.compose %v370, %v369
    %v372 = vextract.low.u32 %v371
    %v373 = vextract.high.u32 %v371
    %v374 = vmul.u32.u64.compose %v370, %v365
    %v375 = vextract.low.u32 %v374
    %v376 = vextract.high.u32 %v374
    %v377 = vmul.u32 %v370, %v361
    %v378 = vadd.s32 %v373, %v375
    %vm379 = vc.u32 %v373, %v375
    %v380 = vadd.s32 %v376, 1
    %v381 = vsel %vm379, %v380, %v376
    %v382 = vadd.s32 %v377, %v381
    %v383 = vadd.s32 %v382, 536870912
    %v384 = vshrl.u32 %v383, 30
    %v385 = vshll.u32 %v384, 30
    %v386 = vsub.s32 %v382, %v385
    %vm387 = vcmp.lt.s32.totalorder %v386, 0
    %v388 = vsub.s32 0, %v386
    %v389 = vsel %vm387, %v388, %v386
    %v390 = vclz %v389
    %v391 = vsub.s32 %v390, 2
    %vm392 = vcmp.gt.s32.totalorder 0, %v391
    %v393 = vsel %vm392, 0, %v391
    %v394 = vsub.s32 32, %v393
    %v395 = vshll.u32 %v386, %v393
    %v396 = vshrl.u32 %v378, %v394
    %v397 = vor.u32 %v395, %v396
    %v398 = vsub.s32 4294967266, %v393
    %v399 = vadd.s32 %v398, 127
    %v400 = vshll.u32 %v399, 23
    %v401 = vor.u32 4788187, %v400
    %v402 = vand.u32 2147483647, %v401
    %v404 = vcvt.s32.f32 %v397
    %v405 = vmul.f32 %v404, %v402
    %v406 = vxor.u32 %v405, 2147483648
    %v407 = vsel %vm324, %v406, %v405
    %v408 = vsub.s32 4, %v384
    %v409 = vsel %vm324, %v408, %v384
    %v410 = vsel %vm323, %v306, %v407
    %v411 = vsel %vm323, 0, %v409
    %v412 = vcosq.f32.pop %v410
    %v413 = vsinq.f32.pop %v410
    %vm414 = vweird.f32 %v306
    %v415 = vand.u32 %v411, 3
    %vm416 = vcmp.lt.s32.totalorder %v415, 2
    %vm417 = vcmp.eq.s32.totalorder %v415, 0
    %v418 = vxor.u32 %v413, 2147483648
    %v419 = vsel %vm417, %v412, %v418
    %vm420 = vcmp.eq.s32.totalorder %v415, 2
    %v421 = vxor.u32 %v412, 2147483648
    %v422 = vsel %vm420, %v421, %v413
    %v423 = vsel %vm416, %v419, %v422
    %v424 = vsel %vm414, nan, %v423
    %v425 = vand.u32 2147483647, %v307
    %vm426 = vcmp.le.f32.partialorder %v425, 0.7853982
    %vm427 = vcmp.lt.s32.totalorder %v307, 0
    %v428 = vand.u32 %v307, 2139095040
    %v429 = vshrl.u32 %v428, 23
    %v430 = vsub.s32 %v429, 127
    %v431 = vand.u32 2147483647, %v307
    %v432 = vand.u32 %v431, 8388607
    %v433 = vor.u32 %v432, 8388608
    %v434 = vsub.s32 0, %v433
    %v435 = vadd.s32 %v430, 1
    %vm436 = vcmp.gt.s32.totalorder %v435, 0
    %v437 = vsel %vm436, %v435, 0
    %v438 = vshrl.u32 %v437, 5
    %v439 = vand.u32 %v437, 31
    %v440 = vsub.s32 32, %v439
    %v441 = vshrl.u32 683565275, %v440
    %v442 = vshll.u32 683565275, %v439
    %v443 = vshrl.u32 2475754826, %v440
    %v444 = vor.u32 %v442, %v443
    %v445 = vshll.u32 2475754826, %v439
    %v446 = vshrl.u32 2131351028, %v440
    %v447 = vor.u32 %v445, %v446
    %v448 = vshll.u32 2131351028, %v439
    %v449 = vshrl.u32 2102212464, %v440
    %v450 = vor.u32 %v448, %v449
    %v451 = vshll.u32 2102212464, %v439
    %v452 = vshrl.u32 920167782, %v440
    %v453 = vor.u32 %v451, %v452
    %v454 = vshll.u32 920167782, %v439
    %v455 = vshrl.u32 1326507024, %v440
    %v456 = vor.u32 %v454, %v455
    %vm457 = vcmp.lt.s32.totalorder %v438, 1
    %vm458 = vcmp.lt.s32.totalorder %v438, 2
    %vm459 = vcmp.lt.s32.totalorder %v438, 3
    %vm460 = vcmp.lt.s32.totalorder %v438, 4
    %v461 = vsel %vm457, %v441, %v444
    %v462 = vsel %vm460, %v450, 2102212464
    %v463 = vsel %vm459, %v447, %v462
    %v464 = vsel %vm458, %v461, %v463
    %v465 = vsel %vm457, %v444, %v447
    %v466 = vsel %vm460, %v453, 920167782
    %v467 = vsel %vm459, %v450, %v466
    %v468 = vsel %vm458, %v465, %v467
    %v469 = vsel %vm457, %v447, %v450
    %v470 = vsel %vm460, %v456, 1326507024
    %v471 = vsel %vm459, %v453, %v470
    %v472 = vsel %vm458, %v469, %v471
    %v473 = vshll.u32 %v433, 8
    %v474 = vmul.u32.u64.compose %v473, %v472
    %v475 = vextract.low.u32 %v474
    %v476 = vextract.high.u32 %v474
    %v477 = vmul.u32.u64.compose %v473, %v468
    %v478 = vextract.low.u32 %v477
    %v479 = vextract.high.u32 %v477
    %v480 = vmul.u32 %v473, %v464
    %v481 = vadd.s32 %v476, %v478
    %vm482 = vc.u32 %v476, %v478
    %v483 = vadd.s32 %v479, 1
    %v484 = vsel %vm482, %v483, %v479
    %v485 = vadd.s32 %v480, %v484
    %v486 = vadd.s32 %v485, 536870912
    %v487 = vshrl.u32 %v486, 30
    %v488 = vshll.u32 %v487, 30
    %v489 = vsub.s32 %v485, %v488
    %vm490 = vcmp.lt.s32.totalorder %v489, 0
    %v491 = vsub.s32 0, %v489
    %v492 = vsel %vm490, %v491, %v489
    %v493 = vclz %v492
    %v494 = vsub.s32 %v493, 2
    %vm495 = vcmp.gt.s32.totalorder 0, %v494
    %v496 = vsel %vm495, 0, %v494
    %v497 = vsub.s32 32, %v496
    %v498 = vshll.u32 %v489, %v496
    %v499 = vshrl.u32 %v481, %v497
    %v500 = vor.u32 %v498, %v499
    %v501 = vsub.s32 4294967266, %v496
    %v502 = vadd.s32 %v501, 127
    %v503 = vshll.u32 %v502, 23
    %v504 = vor.u32 4788187, %v503
    %v505 = vand.u32 2147483647, %v504
    %v507 = vcvt.s32.f32 %v500
    %v508 = vmul.f32 %v507, %v505
    %v509 = vxor.u32 %v508, 2147483648
    %v510 = vsel %vm427, %v509, %v508
    %v511 = vsub.s32 4, %v487
    %v512 = vsel %vm427, %v511, %v487
    %v513 = vsel %vm426, %v307, %v510
    %v514 = vsel %vm426, 0, %v512
    %v515 = vcosq.f32.pop %v513
    %v516 = vsinq.f32.pop %v513
    %vm517 = vweird.f32 %v307
    %v518 = vand.u32 %v514, 3
    %vm519 = vcmp.lt.s32.totalorder %v518, 2
    %vm520 = vcmp.eq.s32.totalorder %v518, 0
    %v521 = vxor.u32 %v516, 2147483648
    %v522 = vsel %vm520, %v515, %v521
    %vm523 = vcmp.eq.s32.totalorder %v518, 2
    %v524 = vxor.u32 %v515, 2147483648
    %v525 = vsel %vm523, %v524, %v516
    %v526 = vsel %vm519, %v522, %v525
    %v527 = vsel %vm517, nan, %v526
    %v528 = vand.u32 2147483647, %v308
    %vm529 = vcmp.le.f32.partialorder %v528, 0.7853982
    %vm530 = vcmp.lt.s32.totalorder %v308, 0
    %v531 = vand.u32 %v308, 2139095040
    %v532 = vshrl.u32 %v531, 23
    %v533 = vsub.s32 %v532, 127
    %v534 = vand.u32 2147483647, %v308
    %v535 = vand.u32 %v534, 8388607
    %v536 = vor.u32 %v535, 8388608
    %v537 = vsub.s32 0, %v536
    %v538 = vadd.s32 %v533, 1
    %vm539 = vcmp.gt.s32.totalorder %v538, 0
    %v540 = vsel %vm539, %v538, 0
    %v541 = vshrl.u32 %v540, 5
    %v542 = vand.u32 %v540, 31
    %v543 = vsub.s32 32, %v542
    %v544 = vshrl.u32 683565275, %v543
    %v545 = vshll.u32 683565275, %v542
    %v546 = vshrl.u32 2475754826, %v543
    %v547 = vor.u32 %v545, %v546
    %v548 = vshll.u32 2475754826, %v542
    %v549 = vshrl.u32 2131351028, %v543
    %v550 = vor.u32 %v548, %v549
    %v551 = vshll.u32 2131351028, %v542
    %v552 = vshrl.u32 2102212464, %v543
    %v553 = vor.u32 %v551, %v552
    %v554 = vshll.u32 2102212464, %v542
    %v555 = vshrl.u32 920167782, %v543
    %v556 = vor.u32 %v554, %v555
    %v557 = vshll.u32 920167782, %v542
    %v558 = vshrl.u32 1326507024, %v543
    %v559 = vor.u32 %v557, %v558
    %vm560 = vcmp.lt.s32.totalorder %v541, 1
    %vm561 = vcmp.lt.s32.totalorder %v541, 2
    %vm562 = vcmp.lt.s32.totalorder %v541, 3
    %vm563 = vcmp.lt.s32.totalorder %v541, 4
    %v564 = vsel %vm560, %v544, %v547
    %v565 = vsel %vm563, %v553, 2102212464
    %v566 = vsel %vm562, %v550, %v565
    %v567 = vsel %vm561, %v564, %v566
    %v568 = vsel %vm560, %v547, %v550
    %v569 = vsel %vm563, %v556, 920167782
    %v570 = vsel %vm562, %v553, %v569
    %v571 = vsel %vm561, %v568, %v570
    %v572 = vsel %vm560, %v550, %v553
    %v573 = vsel %vm563, %v559, 1326507024
    %v574 = vsel %vm562, %v556, %v573
    %v575 = vsel %vm561, %v572, %v574
    %v576 = vshll.u32 %v536, 8
    %v577 = vmul.u32.u64.compose %v576, %v575
    %v578 = vextract.low.u32 %v577
    %v579 = vextract.high.u32 %v577
    %v580 = vmul.u32.u64.compose %v576, %v571
    %v581 = vextract.low.u32 %v580
    %v582 = vextract.high.u32 %v580
    %v583 = vmul.u32 %v576, %v567
    %v584 = vadd.s32 %v579, %v581
    %vm585 = vc.u32 %v579, %v581
    %v586 = vadd.s32 %v582, 1
    %v587 = vsel %vm585, %v586, %v582
    %v588 = vadd.s32 %v583, %v587
    %v589 = vadd.s32 %v588, 536870912
    %v590 = vshrl.u32 %v589, 30
    %v591 = vshll.u32 %v590, 30
    %v592 = vsub.s32 %v588, %v591
    %vm593 = vcmp.lt.s32.totalorder %v592, 0
    %v594 = vsub.s32 0, %v592
    %v595 = vsel %vm593, %v594, %v592
    %v596 = vclz %v595
    %v597 = vsub.s32 %v596, 2
    %vm598 = vcmp.gt.s32.totalorder 0, %v597
    %v599 = vsel %vm598, 0, %v597
    %v600 = vsub.s32 32, %v599
    %v601 = vshll.u32 %v592, %v599
    %v602 = vshrl.u32 %v584, %v600
    %v603 = vor.u32 %v601, %v602
    %v604 = vsub.s32 4294967266, %v599
    %v605 = vadd.s32 %v604, 127
    %v606 = vshll.u32 %v605, 23
    %v607 = vor.u32 4788187, %v606
    %v608 = vand.u32 2147483647, %v607
    %v610 = vcvt.s32.f32 %v603
    %v611 = vmul.f32 %v610, %v608
    %v612 = vxor.u32 %v611, 2147483648
    %v613 = vsel %vm530, %v612, %v611
    %v614 = vsub.s32 4, %v590
    %v615 = vsel %vm530, %v614, %v590
    %v616 = vsel %vm529, %v308, %v613
    %v617 = vsel %vm529, 0, %v615
    %v618 = vcosq.f32.pop %v616
    %v619 = vsinq.f32.pop %v616
    %vm620 = vweird.f32 %v308
    %v621 = vand.u32 %v617, 3
    %vm622 = vcmp.lt.s32.totalorder %v621, 2
    %vm623 = vcmp.eq.s32.totalorder %v621, 0
    %v624 = vxor.u32 %v619, 2147483648
    %v625 = vsel %vm623, %v618, %v624
    %vm626 = vcmp.eq.s32.totalorder %v621, 2
    %v627 = vxor.u32 %v618, 2147483648
    %v628 = vsel %vm626, %v627, %v619
    %v629 = vsel %vm622, %v625, %v628
    %v630 = vsel %vm620, nan, %v629
    %v631 = vand.u32 2147483647, %v309
    %vm632 = vcmp.le.f32.partialorder %v631, 0.7853982
    %vm633 = vcmp.lt.s32.totalorder %v309, 0
    %v634 = vand.u32 %v309, 2139095040
    %v635 = vshrl.u32 %v634, 23
    %v636 = vsub.s32 %v635, 127
    %v637 = vand.u32 2147483647, %v309
    %v638 = vand.u32 %v637, 8388607
    %v639 = vor.u32 %v638, 8388608
    %v640 = vsub.s32 0, %v639
    %v641 = vadd.s32 %v636, 1
    %vm642 = vcmp.gt.s32.totalorder %v641, 0
    %v643 = vsel %vm642, %v641, 0
    %v644 = vshrl.u32 %v643, 5
    %v645 = vand.u32 %v643, 31
    %v646 = vsub.s32 32, %v645
    %v647 = vshrl.u32 683565275, %v646
    %v648 = vshll.u32 683565275, %v645
    %v649 = vshrl.u32 2475754826, %v646
    %v650 = vor.u32 %v648, %v649
    %v651 = vshll.u32 2475754826, %v645
    %v652 = vshrl.u32 2131351028, %v646
    %v653 = vor.u32 %v651, %v652
    %v654 = vshll.u32 2131351028, %v645
    %v655 = vshrl.u32 2102212464, %v646
    %v656 = vor.u32 %v654, %v655
    %v657 = vshll.u32 2102212464, %v645
    %v658 = vshrl.u32 920167782, %v646
    %v659 = vor.u32 %v657, %v658
    %v660 = vshll.u32 920167782, %v645
    %v661 = vshrl.u32 1326507024, %v646
    %v662 = vor.u32 %v660, %v661
    %vm663 = vcmp.lt.s32.totalorder %v644, 1
    %vm664 = vcmp.lt.s32.totalorder %v644, 2
    %vm665 = vcmp.lt.s32.totalorder %v644, 3
    %vm666 = vcmp.lt.s32.totalorder %v644, 4
    %v667 = vsel %vm663, %v647, %v650
    %v668 = vsel %vm666, %v656, 2102212464
    %v669 = vsel %vm665, %v653, %v668
    %v670 = vsel %vm664, %v667, %v669
    %v671 = vsel %vm663, %v650, %v653
    %v672 = vsel %vm666, %v659, 920167782
    %v673 = vsel %vm665, %v656, %v672
    %v674 = vsel %vm664, %v671, %v673
    %v675 = vsel %vm663, %v653, %v656
    %v676 = vsel %vm666, %v662, 1326507024
    %v677 = vsel %vm665, %v659, %v676
    %v678 = vsel %vm664, %v675, %v677
    %v679 = vshll.u32 %v639, 8
    %v680 = vmul.u32.u64.compose %v679, %v678
    %v681 = vextract.low.u32 %v680
    %v682 = vextract.high.u32 %v680
    %v683 = vmul.u32.u64.compose %v679, %v674
    %v684 = vextract.low.u32 %v683
    %v685 = vextract.high.u32 %v683
    %v686 = vmul.u32 %v679, %v670
    %v687 = vadd.s32 %v682, %v684
    %vm688 = vc.u32 %v682, %v684
    %v689 = vadd.s32 %v685, 1
    %v690 = vsel %vm688, %v689, %v685
    %v691 = vadd.s32 %v686, %v690
    %v692 = vadd.s32 %v691, 536870912
    %v693 = vshrl.u32 %v692, 30
    %v694 = vshll.u32 %v693, 30
    %v695 = vsub.s32 %v691, %v694
    %vm696 = vcmp.lt.s32.totalorder %v695, 0
    %v697 = vsub.s32 0, %v695
    %v698 = vsel %vm696, %v697, %v695
    %v699 = vclz %v698
    %v700 = vsub.s32 %v699, 2
    %vm701 = vcmp.gt.s32.totalorder 0, %v700
    %v702 = vsel %vm701, 0, %v700
    %v703 = vsub.s32 32, %v702
    %v704 = vshll.u32 %v695, %v702
    %v705 = vshrl.u32 %v687, %v703
    %v706 = vor.u32 %v704, %v705
    %v707 = vsub.s32 4294967266, %v702
    %v708 = vadd.s32 %v707, 127
    %v709 = vshll.u32 %v708, 23
    %v710 = vor.u32 4788187, %v709
    %v711 = vand.u32 2147483647, %v710
    %v713 = vcvt.s32.f32 %v706
    %v714 = vmul.f32 %v713, %v711
    %v715 = vxor.u32 %v714, 2147483648
    %v716 = vsel %vm633, %v715, %v714
    %v717 = vsub.s32 4, %v693
    %v718 = vsel %vm633, %v717, %v693
    %v719 = vsel %vm632, %v309, %v716
    %v720 = vsel %vm632, 0, %v718
    %v721 = vcosq.f32.pop %v719
    %v722 = vsinq.f32.pop %v719
    %vm723 = vweird.f32 %v309
    %v724 = vand.u32 %v720, 3
    %vm725 = vcmp.lt.s32.totalorder %v724, 2
    %vm726 = vcmp.eq.s32.totalorder %v724, 0
    %v727 = vxor.u32 %v722, 2147483648
    %v728 = vsel %vm726, %v721, %v727
    %vm729 = vcmp.eq.s32.totalorder %v724, 2
    %v730 = vxor.u32 %v721, 2147483648
    %v731 = vsel %vm729, %v730, %v722
    %v732 = vsel %vm725, %v728, %v731
    %v733 = vsel %vm723, nan, %v732
    %v734 = vand.u32 2147483647, %v310
    %vm735 = vcmp.le.f32.partialorder %v734, 0.7853982
    %vm736 = vcmp.lt.s32.totalorder %v310, 0
    %v737 = vand.u32 %v310, 2139095040
    %v738 = vshrl.u32 %v737, 23
    %v739 = vsub.s32 %v738, 127
    %v740 = vand.u32 2147483647, %v310
    %v741 = vand.u32 %v740, 8388607
    %v742 = vor.u32 %v741, 8388608
    %v743 = vsub.s32 0, %v742
    %v744 = vadd.s32 %v739, 1
    %vm745 = vcmp.gt.s32.totalorder %v744, 0
    %v746 = vsel %vm745, %v744, 0
    %v747 = vshrl.u32 %v746, 5
    %v748 = vand.u32 %v746, 31
    %v749 = vsub.s32 32, %v748
    %v750 = vshrl.u32 683565275, %v749
    %v751 = vshll.u32 683565275, %v748
    %v752 = vshrl.u32 2475754826, %v749
    %v753 = vor.u32 %v751, %v752
    %v754 = vshll.u32 2475754826, %v748
    %v755 = vshrl.u32 2131351028, %v749
    %v756 = vor.u32 %v754, %v755
    %v757 = vshll.u32 2131351028, %v748
    %v758 = vshrl.u32 2102212464, %v749
    %v759 = vor.u32 %v757, %v758
    %v760 = vshll.u32 2102212464, %v748
    %v761 = vshrl.u32 920167782, %v749
    %v762 = vor.u32 %v760, %v761
    %v763 = vshll.u32 920167782, %v748
    %v764 = vshrl.u32 1326507024, %v749
    %v765 = vor.u32 %v763, %v764
    %vm766 = vcmp.lt.s32.totalorder %v747, 1
    %vm767 = vcmp.lt.s32.totalorder %v747, 2
    %vm768 = vcmp.lt.s32.totalorder %v747, 3
    %vm769 = vcmp.lt.s32.totalorder %v747, 4
    %v770 = vsel %vm766, %v750, %v753
    %v771 = vsel %vm769, %v759, 2102212464
    %v772 = vsel %vm768, %v756, %v771
    %v773 = vsel %vm767, %v770, %v772
    %v774 = vsel %vm766, %v753, %v756
    %v775 = vsel %vm769, %v762, 920167782
    %v776 = vsel %vm768, %v759, %v775
    %v777 = vsel %vm767, %v774, %v776
    %v778 = vsel %vm766, %v756, %v759
    %v779 = vsel %vm769, %v765, 1326507024
    %v780 = vsel %vm768, %v762, %v779
    %v781 = vsel %vm767, %v778, %v780
    %v782 = vshll.u32 %v742, 8
    %v783 = vmul.u32.u64.compose %v782, %v781
    %v784 = vextract.low.u32 %v783
    %v785 = vextract.high.u32 %v783
    %v786 = vmul.u32.u64.compose %v782, %v777
    %v787 = vextract.low.u32 %v786
    %v788 = vextract.high.u32 %v786
    %v789 = vmul.u32 %v782, %v773
    %v790 = vadd.s32 %v785, %v787
    %vm791 = vc.u32 %v785, %v787
    %v792 = vadd.s32 %v788, 1
    %v793 = vsel %vm791, %v792, %v788
    %v794 = vadd.s32 %v789, %v793
    %v795 = vadd.s32 %v794, 536870912
    %v796 = vshrl.u32 %v795, 30
    %v797 = vshll.u32 %v796, 30
    %v798 = vsub.s32 %v794, %v797
    %vm799 = vcmp.lt.s32.totalorder %v798, 0
    %v800 = vsub.s32 0, %v798
    %v801 = vsel %vm799, %v800, %v798
    %v802 = vclz %v801
    %v803 = vsub.s32 %v802, 2
    %vm804 = vcmp.gt.s32.totalorder 0, %v803
    %v805 = vsel %vm804, 0, %v803
    %v806 = vsub.s32 32, %v805
    %v807 = vshll.u32 %v798, %v805
    %v808 = vshrl.u32 %v790, %v806
    %v809 = vor.u32 %v807, %v808
    %v810 = vsub.s32 4294967266, %v805
    %v811 = vadd.s32 %v810, 127
    %v812 = vshll.u32 %v811, 23
    %v813 = vor.u32 4788187, %v812
    %v814 = vand.u32 2147483647, %v813
    %v816 = vcvt.s32.f32 %v809
    %v817 = vmul.f32 %v816, %v814
    %v818 = vxor.u32 %v817, 2147483648
    %v819 = vsel %vm736, %v818, %v817
    %v820 = vsub.s32 4, %v796
    %v821 = vsel %vm736, %v820, %v796
    %v822 = vsel %vm735, %v310, %v819
    %v823 = vsel %vm735, 0, %v821
    %v824 = vcosq.f32.pop %v822
    %v825 = vsinq.f32.pop %v822
    %vm826 = vweird.f32 %v310
    %v827 = vand.u32 %v823, 3
    %vm828 = vcmp.lt.s32.totalorder %v827, 2
    %vm829 = vcmp.eq.s32.totalorder %v827, 0
    %v830 = vxor.u32 %v825, 2147483648
    %v831 = vsel %vm829, %v824, %v830
    %vm832 = vcmp.eq.s32.totalorder %v827, 2
    %v833 = vxor.u32 %v824, 2147483648
    %v834 = vsel %vm832, %v833, %v825
    %v835 = vsel %vm828, %v831, %v834
    %v836 = vsel %vm826, nan, %v835
    %v837 = vand.u32 2147483647, %v311
    %vm838 = vcmp.le.f32.partialorder %v837, 0.7853982
    %vm839 = vcmp.lt.s32.totalorder %v311, 0
    %v840 = vand.u32 %v311, 2139095040
    %v841 = vshrl.u32 %v840, 23
    %v842 = vsub.s32 %v841, 127
    %v843 = vand.u32 2147483647, %v311
    %v844 = vand.u32 %v843, 8388607
    %v845 = vor.u32 %v844, 8388608
    %v846 = vsub.s32 0, %v845
    %v847 = vadd.s32 %v842, 1
    %vm848 = vcmp.gt.s32.totalorder %v847, 0
    %v849 = vsel %vm848, %v847, 0
    %v850 = vshrl.u32 %v849, 5
    %v851 = vand.u32 %v849, 31
    %v852 = vsub.s32 32, %v851
    %v853 = vshrl.u32 683565275, %v852
    %v854 = vshll.u32 683565275, %v851
    %v855 = vshrl.u32 2475754826, %v852
    %v856 = vor.u32 %v854, %v855
    %v857 = vshll.u32 2475754826, %v851
    %v858 = vshrl.u32 2131351028, %v852
    %v859 = vor.u32 %v857, %v858
    %v860 = vshll.u32 2131351028, %v851
    %v861 = vshrl.u32 2102212464, %v852
    %v862 = vor.u32 %v860, %v861
    %v863 = vshll.u32 2102212464, %v851
    %v864 = vshrl.u32 920167782, %v852
    %v865 = vor.u32 %v863, %v864
    %v866 = vshll.u32 920167782, %v851
    %v867 = vshrl.u32 1326507024, %v852
    %v868 = vor.u32 %v866, %v867
    %vm869 = vcmp.lt.s32.totalorder %v850, 1
    %vm870 = vcmp.lt.s32.totalorder %v850, 2
    %vm871 = vcmp.lt.s32.totalorder %v850, 3
    %vm872 = vcmp.lt.s32.totalorder %v850, 4
    %v873 = vsel %vm869, %v853, %v856
    %v874 = vsel %vm872, %v862, 2102212464
    %v875 = vsel %vm871, %v859, %v874
    %v876 = vsel %vm870, %v873, %v875
    %v877 = vsel %vm869, %v856, %v859
    %v878 = vsel %vm872, %v865, 920167782
    %v879 = vsel %vm871, %v862, %v878
    %v880 = vsel %vm870, %v877, %v879
    %v881 = vsel %vm869, %v859, %v862
    %v882 = vsel %vm872, %v868, 1326507024
    %v883 = vsel %vm871, %v865, %v882
    %v884 = vsel %vm870, %v881, %v883
    %v885 = vshll.u32 %v845, 8
    %v886 = vmul.u32.u64.compose %v885, %v884
    %v887 = vextract.low.u32 %v886
    %v888 = vextract.high.u32 %v886
    %v889 = vmul.u32.u64.compose %v885, %v880
    %v890 = vextract.low.u32 %v889
    %v891 = vextract.high.u32 %v889
    %v892 = vmul.u32 %v885, %v876
    %v893 = vadd.s32 %v888, %v890
    %vm894 = vc.u32 %v888, %v890
    %v895 = vadd.s32 %v891, 1
    %v896 = vsel %vm894, %v895, %v891
    %v897 = vadd.s32 %v892, %v896
    %v898 = vadd.s32 %v897, 536870912
    %v899 = vshrl.u32 %v898, 30
    %v900 = vshll.u32 %v899, 30
    %v901 = vsub.s32 %v897, %v900
    %vm902 = vcmp.lt.s32.totalorder %v901, 0
    %v903 = vsub.s32 0, %v901
    %v904 = vsel %vm902, %v903, %v901
    %v905 = vclz %v904
    %v906 = vsub.s32 %v905, 2
    %vm907 = vcmp.gt.s32.totalorder 0, %v906
    %v908 = vsel %vm907, 0, %v906
    %v909 = vsub.s32 32, %v908
    %v910 = vshll.u32 %v901, %v908
    %v911 = vshrl.u32 %v893, %v909
    %v912 = vor.u32 %v910, %v911
    %v913 = vsub.s32 4294967266, %v908
    %v914 = vadd.s32 %v913, 127
    %v915 = vshll.u32 %v914, 23
    %v916 = vor.u32 4788187, %v915
    %v917 = vand.u32 2147483647, %v916
    %v919 = vcvt.s32.f32 %v912
    %v920 = vmul.f32 %v919, %v917
    %v921 = vxor.u32 %v920, 2147483648
    %v922 = vsel %vm839, %v921, %v920
    %v923 = vsub.s32 4, %v899
    %v924 = vsel %vm839, %v923, %v899
    %v925 = vsel %vm838, %v311, %v922
    %v926 = vsel %vm838, 0, %v924
    %v927 = vcosq.f32.pop %v925
    %v928 = vsinq.f32.pop %v925
    %vm929 = vweird.f32 %v311
    %v930 = vand.u32 %v926, 3
    %vm931 = vcmp.lt.s32.totalorder %v930, 2
    %vm932 = vcmp.eq.s32.totalorder %v930, 0
    %v933 = vxor.u32 %v928, 2147483648
    %v934 = vsel %vm932, %v927, %v933
    %vm935 = vcmp.eq.s32.totalorder %v930, 2
    %v936 = vxor.u32 %v927, 2147483648
    %v937 = vsel %vm935, %v936, %v928
    %v938 = vsel %vm931, %v934, %v937
    %v939 = vsel %vm929, nan, %v938
    %v940 = vand.u32 2147483647, %v312
    %vm941 = vcmp.le.f32.partialorder %v940, 0.7853982
    %vm942 = vcmp.lt.s32.totalorder %v312, 0
    %v943 = vand.u32 %v312, 2139095040
    %v944 = vshrl.u32 %v943, 23
    %v945 = vsub.s32 %v944, 127
    %v946 = vand.u32 2147483647, %v312
    %v947 = vand.u32 %v946, 8388607
    %v948 = vor.u32 %v947, 8388608
    %v949 = vsub.s32 0, %v948
    %v950 = vadd.s32 %v945, 1
    %vm951 = vcmp.gt.s32.totalorder %v950, 0
    %v952 = vsel %vm951, %v950, 0
    %v953 = vshrl.u32 %v952, 5
    %v954 = vand.u32 %v952, 31
    %v955 = vsub.s32 32, %v954
    %v956 = vshrl.u32 683565275, %v955
    %v957 = vshll.u32 683565275, %v954
    %v958 = vshrl.u32 2475754826, %v955
    %v959 = vor.u32 %v957, %v958
    %v960 = vshll.u32 2475754826, %v954
    %v961 = vshrl.u32 2131351028, %v955
    %v962 = vor.u32 %v960, %v961
    %v963 = vshll.u32 2131351028, %v954
    %v964 = vshrl.u32 2102212464, %v955
    %v965 = vor.u32 %v963, %v964
    %v966 = vshll.u32 2102212464, %v954
    %v967 = vshrl.u32 920167782, %v955
    %v968 = vor.u32 %v966, %v967
    %v969 = vshll.u32 920167782, %v954
    %v970 = vshrl.u32 1326507024, %v955
    %v971 = vor.u32 %v969, %v970
    %vm972 = vcmp.lt.s32.totalorder %v953, 1
    %vm973 = vcmp.lt.s32.totalorder %v953, 2
    %vm974 = vcmp.lt.s32.totalorder %v953, 3
    %vm975 = vcmp.lt.s32.totalorder %v953, 4
    %v976 = vsel %vm972, %v956, %v959
    %v977 = vsel %vm975, %v965, 2102212464
    %v978 = vsel %vm974, %v962, %v977
    %v979 = vsel %vm973, %v976, %v978
    %v980 = vsel %vm972, %v959, %v962
    %v981 = vsel %vm975, %v968, 920167782
    %v982 = vsel %vm974, %v965, %v981
    %v983 = vsel %vm973, %v980, %v982
    %v984 = vsel %vm972, %v962, %v965
    %v985 = vsel %vm975, %v971, 1326507024
    %v986 = vsel %vm974, %v968, %v985
    %v987 = vsel %vm973, %v984, %v986
    %v988 = vshll.u32 %v948, 8
    %v989 = vmul.u32.u64.compose %v988, %v987
    %v990 = vextract.low.u32 %v989
    %v991 = vextract.high.u32 %v989
    %v992 = vmul.u32.u64.compose %v988, %v983
    %v993 = vextract.low.u32 %v992
    %v994 = vextract.high.u32 %v992
    %v995 = vmul.u32 %v988, %v979
    %v996 = vadd.s32 %v991, %v993
    %vm997 = vc.u32 %v991, %v993
    %v998 = vadd.s32 %v994, 1
    %v999 = vsel %vm997, %v998, %v994
    %v1000 = vadd.s32 %v995, %v999
    %v1001 = vadd.s32 %v1000, 536870912
    %v1002 = vshrl.u32 %v1001, 30
    %v1003 = vshll.u32 %v1002, 30
    %v1004 = vsub.s32 %v1000, %v1003
    %vm1005 = vcmp.lt.s32.totalorder %v1004, 0
    %v1006 = vsub.s32 0, %v1004
    %v1007 = vsel %vm1005, %v1006, %v1004
    %v1008 = vclz %v1007
    %v1009 = vsub.s32 %v1008, 2
    %vm1010 = vcmp.gt.s32.totalorder 0, %v1009
    %v1011 = vsel %vm1010, 0, %v1009
    %v1012 = vsub.s32 32, %v1011
    %v1013 = vshll.u32 %v1004, %v1011
    %v1014 = vshrl.u32 %v996, %v1012
    %v1015 = vor.u32 %v1013, %v1014
    %v1016 = vsub.s32 4294967266, %v1011
    %v1017 = vadd.s32 %v1016, 127
    %v1018 = vshll.u32 %v1017, 23
    %v1019 = vor.u32 4788187, %v1018
    %v1020 = vand.u32 2147483647, %v1019
    %v1022 = vcvt.s32.f32 %v1015
    %v1023 = vmul.f32 %v1022, %v1020
    %v1024 = vxor.u32 %v1023, 2147483648
    %v1025 = vsel %vm942, %v1024, %v1023
    %v1026 = vsub.s32 4, %v1002
    %v1027 = vsel %vm942, %v1026, %v1002
    %v1028 = vsel %vm941, %v312, %v1025
    %v1029 = vsel %vm941, 0, %v1027
    %v1030 = vcosq.f32.pop %v1028
    %v1031 = vsinq.f32.pop %v1028
    %vm1032 = vweird.f32 %v312
    %v1033 = vand.u32 %v1029, 3
    %vm1034 = vcmp.lt.s32.totalorder %v1033, 2
    %vm1035 = vcmp.eq.s32.totalorder %v1033, 0
    %v1036 = vxor.u32 %v1031, 2147483648
    %v1037 = vsel %vm1035, %v1030, %v1036
    %vm1038 = vcmp.eq.s32.totalorder %v1033, 2
    %v1039 = vxor.u32 %v1030, 2147483648
    %v1040 = vsel %vm1038, %v1039, %v1031
    %v1041 = vsel %vm1034, %v1037, %v1040
    %v1042 = vsel %vm1032, nan, %v1041
    %v1043 = vand.u32 2147483647, %v313
    %vm1044 = vcmp.le.f32.partialorder %v1043, 0.7853982
    %vm1045 = vcmp.lt.s32.totalorder %v313, 0
    %v1046 = vand.u32 %v313, 2139095040
    %v1047 = vshrl.u32 %v1046, 23
    %v1048 = vsub.s32 %v1047, 127
    %v1049 = vand.u32 2147483647, %v313
    %v1050 = vand.u32 %v1049, 8388607
    %v1051 = vor.u32 %v1050, 8388608
    %v1052 = vsub.s32 0, %v1051
    %v1053 = vadd.s32 %v1048, 1
    %vm1054 = vcmp.gt.s32.totalorder %v1053, 0
    %v1055 = vsel %vm1054, %v1053, 0
    %v1056 = vshrl.u32 %v1055, 5
    %v1057 = vand.u32 %v1055, 31
    %v1058 = vsub.s32 32, %v1057
    %v1059 = vshrl.u32 683565275, %v1058
    %v1060 = vshll.u32 683565275, %v1057
    %v1061 = vshrl.u32 2475754826, %v1058
    %v1062 = vor.u32 %v1060, %v1061
    %v1063 = vshll.u32 2475754826, %v1057
    %v1064 = vshrl.u32 2131351028, %v1058
    %v1065 = vor.u32 %v1063, %v1064
    %v1066 = vshll.u32 2131351028, %v1057
    %v1067 = vshrl.u32 2102212464, %v1058
    %v1068 = vor.u32 %v1066, %v1067
    %v1069 = vshll.u32 2102212464, %v1057
    %v1070 = vshrl.u32 920167782, %v1058
    %v1071 = vor.u32 %v1069, %v1070
    %v1072 = vshll.u32 920167782, %v1057
    %v1073 = vshrl.u32 1326507024, %v1058
    %v1074 = vor.u32 %v1072, %v1073
    %vm1075 = vcmp.lt.s32.totalorder %v1056, 1
    %vm1076 = vcmp.lt.s32.totalorder %v1056, 2
    %vm1077 = vcmp.lt.s32.totalorder %v1056, 3
    %vm1078 = vcmp.lt.s32.totalorder %v1056, 4
    %v1079 = vsel %vm1075, %v1059, %v1062
    %v1080 = vsel %vm1078, %v1068, 2102212464
    %v1081 = vsel %vm1077, %v1065, %v1080
    %v1082 = vsel %vm1076, %v1079, %v1081
    %v1083 = vsel %vm1075, %v1062, %v1065
    %v1084 = vsel %vm1078, %v1071, 920167782
    %v1085 = vsel %vm1077, %v1068, %v1084
    %v1086 = vsel %vm1076, %v1083, %v1085
    %v1087 = vsel %vm1075, %v1065, %v1068
    %v1088 = vsel %vm1078, %v1074, 1326507024
    %v1089 = vsel %vm1077, %v1071, %v1088
    %v1090 = vsel %vm1076, %v1087, %v1089
    %v1091 = vshll.u32 %v1051, 8
    %v1092 = vmul.u32.u64.compose %v1091, %v1090
    %v1093 = vextract.low.u32 %v1092
    %v1094 = vextract.high.u32 %v1092
    %v1095 = vmul.u32.u64.compose %v1091, %v1086
    %v1096 = vextract.low.u32 %v1095
    %v1097 = vextract.high.u32 %v1095
    %v1098 = vmul.u32 %v1091, %v1082
    %v1099 = vadd.s32 %v1094, %v1096
    %vm1100 = vc.u32 %v1094, %v1096
    %v1101 = vadd.s32 %v1097, 1
    %v1102 = vsel %vm1100, %v1101, %v1097
    %v1103 = vadd.s32 %v1098, %v1102
    %v1104 = vadd.s32 %v1103, 536870912
    %v1105 = vshrl.u32 %v1104, 30
    %v1106 = vshll.u32 %v1105, 30
    %v1107 = vsub.s32 %v1103, %v1106
    %vm1108 = vcmp.lt.s32.totalorder %v1107, 0
    %v1109 = vsub.s32 0, %v1107
    %v1110 = vsel %vm1108, %v1109, %v1107
    %v1111 = vclz %v1110
    %v1112 = vsub.s32 %v1111, 2
    %vm1113 = vcmp.gt.s32.totalorder 0, %v1112
    %v1114 = vsel %vm1113, 0, %v1112
    %v1115 = vsub.s32 32, %v1114
    %v1116 = vshll.u32 %v1107, %v1114
    %v1117 = vshrl.u32 %v1099, %v1115
    %v1118 = vor.u32 %v1116, %v1117
    %v1119 = vsub.s32 4294967266, %v1114
    %v1120 = vadd.s32 %v1119, 127
    %v1121 = vshll.u32 %v1120, 23
    %v1122 = vor.u32 4788187, %v1121
    %v1123 = vand.u32 2147483647, %v1122
    %v1125 = vcvt.s32.f32 %v1118
    %v1126 = vmul.f32 %v1125, %v1123
    %v1127 = vxor.u32 %v1126, 2147483648
    %v1128 = vsel %vm1045, %v1127, %v1126
    %v1129 = vsub.s32 4, %v1105
    %v1130 = vsel %vm1045, %v1129, %v1105
    %v1131 = vsel %vm1044, %v313, %v1128
    %v1132 = vsel %vm1044, 0, %v1130
    %v1133 = vcosq.f32.pop %v1131
    %v1134 = vsinq.f32.pop %v1131
    %vm1135 = vweird.f32 %v313
    %v1136 = vand.u32 %v1132, 3
    %vm1137 = vcmp.lt.s32.totalorder %v1136, 2
    %vm1138 = vcmp.eq.s32.totalorder %v1136, 0
    %v1139 = vxor.u32 %v1134, 2147483648
    %v1140 = vsel %vm1138, %v1133, %v1139
    %vm1141 = vcmp.eq.s32.totalorder %v1136, 2
    %v1142 = vxor.u32 %v1133, 2147483648
    %v1143 = vsel %vm1141, %v1142, %v1134
    %v1144 = vsel %vm1137, %v1140, %v1143
    %v1145 = vsel %vm1135, nan, %v1144
    %v1146 = vand.u32 2147483647, %v314
    %vm1147 = vcmp.le.f32.partialorder %v1146, 0.7853982
    %vm1148 = vcmp.lt.s32.totalorder %v314, 0
    %v1149 = vand.u32 %v314, 2139095040
    %v1150 = vshrl.u32 %v1149, 23
    %v1151 = vsub.s32 %v1150, 127
    %v1152 = vand.u32 2147483647, %v314
    %v1153 = vand.u32 %v1152, 8388607
    %v1154 = vor.u32 %v1153, 8388608
    %v1155 = vsub.s32 0, %v1154
    %v1156 = vadd.s32 %v1151, 1
    %vm1157 = vcmp.gt.s32.totalorder %v1156, 0
    %v1158 = vsel %vm1157, %v1156, 0
    %v1159 = vshrl.u32 %v1158, 5
    %v1160 = vand.u32 %v1158, 31
    %v1161 = vsub.s32 32, %v1160
    %v1162 = vshrl.u32 683565275, %v1161
    %v1163 = vshll.u32 683565275, %v1160
    %v1164 = vshrl.u32 2475754826, %v1161
    %v1165 = vor.u32 %v1163, %v1164
    %v1166 = vshll.u32 2475754826, %v1160
    %v1167 = vshrl.u32 2131351028, %v1161
    %v1168 = vor.u32 %v1166, %v1167
    %v1169 = vshll.u32 2131351028, %v1160
    %v1170 = vshrl.u32 2102212464, %v1161
    %v1171 = vor.u32 %v1169, %v1170
    %v1172 = vshll.u32 2102212464, %v1160
    %v1173 = vshrl.u32 920167782, %v1161
    %v1174 = vor.u32 %v1172, %v1173
    %v1175 = vshll.u32 920167782, %v1160
    %v1176 = vshrl.u32 1326507024, %v1161
    %v1177 = vor.u32 %v1175, %v1176
    %vm1178 = vcmp.lt.s32.totalorder %v1159, 1
    %vm1179 = vcmp.lt.s32.totalorder %v1159, 2
    %vm1180 = vcmp.lt.s32.totalorder %v1159, 3
    %vm1181 = vcmp.lt.s32.totalorder %v1159, 4
    %v1182 = vsel %vm1178, %v1162, %v1165
    %v1183 = vsel %vm1181, %v1171, 2102212464
    %v1184 = vsel %vm1180, %v1168, %v1183
    %v1185 = vsel %vm1179, %v1182, %v1184
    %v1186 = vsel %vm1178, %v1165, %v1168
    %v1187 = vsel %vm1181, %v1174, 920167782
    %v1188 = vsel %vm1180, %v1171, %v1187
    %v1189 = vsel %vm1179, %v1186, %v1188
    %v1190 = vsel %vm1178, %v1168, %v1171
    %v1191 = vsel %vm1181, %v1177, 1326507024
    %v1192 = vsel %vm1180, %v1174, %v1191
    %v1193 = vsel %vm1179, %v1190, %v1192
    %v1194 = vshll.u32 %v1154, 8
    %v1195 = vmul.u32.u64.compose %v1194, %v1193
    %v1196 = vextract.low.u32 %v1195
    %v1197 = vextract.high.u32 %v1195
    %v1198 = vmul.u32.u64.compose %v1194, %v1189
    %v1199 = vextract.low.u32 %v1198
    %v1200 = vextract.high.u32 %v1198
    %v1201 = vmul.u32 %v1194, %v1185
    %v1202 = vadd.s32 %v1197, %v1199
    %vm1203 = vc.u32 %v1197, %v1199
    %v1204 = vadd.s32 %v1200, 1
    %v1205 = vsel %vm1203, %v1204, %v1200
    %v1206 = vadd.s32 %v1201, %v1205
    %v1207 = vadd.s32 %v1206, 536870912
    %v1208 = vshrl.u32 %v1207, 30
    %v1209 = vshll.u32 %v1208, 30
    %v1210 = vsub.s32 %v1206, %v1209
    %vm1211 = vcmp.lt.s32.totalorder %v1210, 0
    %v1212 = vsub.s32 0, %v1210
    %v1213 = vsel %vm1211, %v1212, %v1210
    %v1214 = vclz %v1213
    %v1215 = vsub.s32 %v1214, 2
    %vm1216 = vcmp.gt.s32.totalorder 0, %v1215
    %v1217 = vsel %vm1216, 0, %v1215
    %v1218 = vsub.s32 32, %v1217
    %v1219 = vshll.u32 %v1210, %v1217
    %v1220 = vshrl.u32 %v1202, %v1218
    %v1221 = vor.u32 %v1219, %v1220
    %v1222 = vsub.s32 4294967266, %v1217
    %v1223 = vadd.s32 %v1222, 127
    %v1224 = vshll.u32 %v1223, 23
    %v1225 = vor.u32 4788187, %v1224
    %v1226 = vand.u32 2147483647, %v1225
    %v1228 = vcvt.s32.f32 %v1221
    %v1229 = vmul.f32 %v1228, %v1226
    %v1230 = vxor.u32 %v1229, 2147483648
    %v1231 = vsel %vm1148, %v1230, %v1229
    %v1232 = vsub.s32 4, %v1208
    %v1233 = vsel %vm1148, %v1232, %v1208
    %v1234 = vsel %vm1147, %v314, %v1231
    %v1235 = vsel %vm1147, 0, %v1233
    %v1236 = vcosq.f32.pop %v1234
    %v1237 = vsinq.f32.pop %v1234
    %vm1238 = vweird.f32 %v314
    %v1239 = vand.u32 %v1235, 3
    %vm1240 = vcmp.lt.s32.totalorder %v1239, 2
    %vm1241 = vcmp.eq.s32.totalorder %v1239, 0
    %v1242 = vxor.u32 %v1237, 2147483648
    %v1243 = vsel %vm1241, %v1236, %v1242
    %vm1244 = vcmp.eq.s32.totalorder %v1239, 2
    %v1245 = vxor.u32 %v1236, 2147483648
    %v1246 = vsel %vm1244, %v1245, %v1237
    %v1247 = vsel %vm1240, %v1243, %v1246
    %v1248 = vsel %vm1238, nan, %v1247
    %v1249 = vand.u32 2147483647, %v315
    %vm1250 = vcmp.le.f32.partialorder %v1249, 0.7853982
    %vm1251 = vcmp.lt.s32.totalorder %v315, 0
    %v1252 = vand.u32 %v315, 2139095040
    %v1253 = vshrl.u32 %v1252, 23
    %v1254 = vsub.s32 %v1253, 127
    %v1255 = vand.u32 2147483647, %v315
    %v1256 = vand.u32 %v1255, 8388607
    %v1257 = vor.u32 %v1256, 8388608
    %v1258 = vsub.s32 0, %v1257
    %v1259 = vadd.s32 %v1254, 1
    %vm1260 = vcmp.gt.s32.totalorder %v1259, 0
    %v1261 = vsel %vm1260, %v1259, 0
    %v1262 = vshrl.u32 %v1261, 5
    %v1263 = vand.u32 %v1261, 31
    %v1264 = vsub.s32 32, %v1263
    %v1265 = vshrl.u32 683565275, %v1264
    %v1266 = vshll.u32 683565275, %v1263
    %v1267 = vshrl.u32 2475754826, %v1264
    %v1268 = vor.u32 %v1266, %v1267
    %v1269 = vshll.u32 2475754826, %v1263
    %v1270 = vshrl.u32 2131351028, %v1264
    %v1271 = vor.u32 %v1269, %v1270
    %v1272 = vshll.u32 2131351028, %v1263
    %v1273 = vshrl.u32 2102212464, %v1264
    %v1274 = vor.u32 %v1272, %v1273
    %v1275 = vshll.u32 2102212464, %v1263
    %v1276 = vshrl.u32 920167782, %v1264
    %v1277 = vor.u32 %v1275, %v1276
    %v1278 = vshll.u32 920167782, %v1263
    %v1279 = vshrl.u32 1326507024, %v1264
    %v1280 = vor.u32 %v1278, %v1279
    %vm1281 = vcmp.lt.s32.totalorder %v1262, 1
    %vm1282 = vcmp.lt.s32.totalorder %v1262, 2
    %vm1283 = vcmp.lt.s32.totalorder %v1262, 3
    %vm1284 = vcmp.lt.s32.totalorder %v1262, 4
    %v1285 = vsel %vm1281, %v1265, %v1268
    %v1286 = vsel %vm1284, %v1274, 2102212464
    %v1287 = vsel %vm1283, %v1271, %v1286
    %v1288 = vsel %vm1282, %v1285, %v1287
    %v1289 = vsel %vm1281, %v1268, %v1271
    %v1290 = vsel %vm1284, %v1277, 920167782
    %v1291 = vsel %vm1283, %v1274, %v1290
    %v1292 = vsel %vm1282, %v1289, %v1291
    %v1293 = vsel %vm1281, %v1271, %v1274
    %v1294 = vsel %vm1284, %v1280, 1326507024
    %v1295 = vsel %vm1283, %v1277, %v1294
    %v1296 = vsel %vm1282, %v1293, %v1295
    %v1297 = vshll.u32 %v1257, 8
    %v1298 = vmul.u32.u64.compose %v1297, %v1296
    %v1299 = vextract.low.u32 %v1298
    %v1300 = vextract.high.u32 %v1298
    %v1301 = vmul.u32.u64.compose %v1297, %v1292
    %v1302 = vextract.low.u32 %v1301
    %v1303 = vextract.high.u32 %v1301
    %v1304 = vmul.u32 %v1297, %v1288
    %v1305 = vadd.s32 %v1300, %v1302
    %vm1306 = vc.u32 %v1300, %v1302
    %v1307 = vadd.s32 %v1303, 1
    %v1308 = vsel %vm1306, %v1307, %v1303
    %v1309 = vadd.s32 %v1304, %v1308
    %v1310 = vadd.s32 %v1309, 536870912
    %v1311 = vshrl.u32 %v1310, 30
    %v1312 = vshll.u32 %v1311, 30
    %v1313 = vsub.s32 %v1309, %v1312
    %vm1314 = vcmp.lt.s32.totalorder %v1313, 0
    %v1315 = vsub.s32 0, %v1313
    %v1316 = vsel %vm1314, %v1315, %v1313
    %v1317 = vclz %v1316
    %v1318 = vsub.s32 %v1317, 2
    %vm1319 = vcmp.gt.s32.totalorder 0, %v1318
    %v1320 = vsel %vm1319, 0, %v1318
    %v1321 = vsub.s32 32, %v1320
    %v1322 = vshll.u32 %v1313, %v1320
    %v1323 = vshrl.u32 %v1305, %v1321
    %v1324 = vor.u32 %v1322, %v1323
    %v1325 = vsub.s32 4294967266, %v1320
    %v1326 = vadd.s32 %v1325, 127
    %v1327 = vshll.u32 %v1326, 23
    %v1328 = vor.u32 4788187, %v1327
    %v1329 = vand.u32 2147483647, %v1328
    %v1331 = vcvt.s32.f32 %v1324
    %v1332 = vmul.f32 %v1331, %v1329
    %v1333 = vxor.u32 %v1332, 2147483648
    %v1334 = vsel %vm1251, %v1333, %v1332
    %v1335 = vsub.s32 4, %v1311
    %v1336 = vsel %vm1251, %v1335, %v1311
    %v1337 = vsel %vm1250, %v315, %v1334
    %v1338 = vsel %vm1250, 0, %v1336
    %v1339 = vcosq.f32.pop %v1337
    %v1340 = vsinq.f32.pop %v1337
    %vm1341 = vweird.f32 %v315
    %v1342 = vand.u32 %v1338, 3
    %vm1343 = vcmp.lt.s32.totalorder %v1342, 2
    %vm1344 = vcmp.eq.s32.totalorder %v1342, 0
    %v1345 = vxor.u32 %v1340, 2147483648
    %v1346 = vsel %vm1344, %v1339, %v1345
    %vm1347 = vcmp.eq.s32.totalorder %v1342, 2
    %v1348 = vxor.u32 %v1339, 2147483648
    %v1349 = vsel %vm1347, %v1348, %v1340
    %v1350 = vsel %vm1343, %v1346, %v1349
    %v1351 = vsel %vm1341, nan, %v1350
    %v1352 = vand.u32 2147483647, %v316
    %vm1353 = vcmp.le.f32.partialorder %v1352, 0.7853982
    %vm1354 = vcmp.lt.s32.totalorder %v316, 0
    %v1355 = vand.u32 %v316, 2139095040
    %v1356 = vshrl.u32 %v1355, 23
    %v1357 = vsub.s32 %v1356, 127
    %v1358 = vand.u32 2147483647, %v316
    %v1359 = vand.u32 %v1358, 8388607
    %v1360 = vor.u32 %v1359, 8388608
    %v1361 = vsub.s32 0, %v1360
    %v1362 = vadd.s32 %v1357, 1
    %vm1363 = vcmp.gt.s32.totalorder %v1362, 0
    %v1364 = vsel %vm1363, %v1362, 0
    %v1365 = vshrl.u32 %v1364, 5
    %v1366 = vand.u32 %v1364, 31
    %v1367 = vsub.s32 32, %v1366
    %v1368 = vshrl.u32 683565275, %v1367
    %v1369 = vshll.u32 683565275, %v1366
    %v1370 = vshrl.u32 2475754826, %v1367
    %v1371 = vor.u32 %v1369, %v1370
    %v1372 = vshll.u32 2475754826, %v1366
    %v1373 = vshrl.u32 2131351028, %v1367
    %v1374 = vor.u32 %v1372, %v1373
    %v1375 = vshll.u32 2131351028, %v1366
    %v1376 = vshrl.u32 2102212464, %v1367
    %v1377 = vor.u32 %v1375, %v1376
    %v1378 = vshll.u32 2102212464, %v1366
    %v1379 = vshrl.u32 920167782, %v1367
    %v1380 = vor.u32 %v1378, %v1379
    %v1381 = vshll.u32 920167782, %v1366
    %v1382 = vshrl.u32 1326507024, %v1367
    %v1383 = vor.u32 %v1381, %v1382
    %vm1384 = vcmp.lt.s32.totalorder %v1365, 1
    %vm1385 = vcmp.lt.s32.totalorder %v1365, 2
    %vm1386 = vcmp.lt.s32.totalorder %v1365, 3
    %vm1387 = vcmp.lt.s32.totalorder %v1365, 4
    %v1388 = vsel %vm1384, %v1368, %v1371
    %v1389 = vsel %vm1387, %v1377, 2102212464
    %v1390 = vsel %vm1386, %v1374, %v1389
    %v1391 = vsel %vm1385, %v1388, %v1390
    %v1392 = vsel %vm1384, %v1371, %v1374
    %v1393 = vsel %vm1387, %v1380, 920167782
    %v1394 = vsel %vm1386, %v1377, %v1393
    %v1395 = vsel %vm1385, %v1392, %v1394
    %v1396 = vsel %vm1384, %v1374, %v1377
    %v1397 = vsel %vm1387, %v1383, 1326507024
    %v1398 = vsel %vm1386, %v1380, %v1397
    %v1399 = vsel %vm1385, %v1396, %v1398
    %v1400 = vshll.u32 %v1360, 8
    %v1401 = vmul.u32.u64.compose %v1400, %v1399
    %v1402 = vextract.low.u32 %v1401
    %v1403 = vextract.high.u32 %v1401
    %v1404 = vmul.u32.u64.compose %v1400, %v1395
    %v1405 = vextract.low.u32 %v1404
    %v1406 = vextract.high.u32 %v1404
    %v1407 = vmul.u32 %v1400, %v1391
    %v1408 = vadd.s32 %v1403, %v1405
    %vm1409 = vc.u32 %v1403, %v1405
    %v1410 = vadd.s32 %v1406, 1
    %v1411 = vsel %vm1409, %v1410, %v1406
    %v1412 = vadd.s32 %v1407, %v1411
    %v1413 = vadd.s32 %v1412, 536870912
    %v1414 = vshrl.u32 %v1413, 30
    %v1415 = vshll.u32 %v1414, 30
    %v1416 = vsub.s32 %v1412, %v1415
    %vm1417 = vcmp.lt.s32.totalorder %v1416, 0
    %v1418 = vsub.s32 0, %v1416
    %v1419 = vsel %vm1417, %v1418, %v1416
    %v1420 = vclz %v1419
    %v1421 = vsub.s32 %v1420, 2
    %vm1422 = vcmp.gt.s32.totalorder 0, %v1421
    %v1423 = vsel %vm1422, 0, %v1421
    %v1424 = vsub.s32 32, %v1423
    %v1425 = vshll.u32 %v1416, %v1423
    %v1426 = vshrl.u32 %v1408, %v1424
    %v1427 = vor.u32 %v1425, %v1426
    %v1428 = vsub.s32 4294967266, %v1423
    %v1429 = vadd.s32 %v1428, 127
    %v1430 = vshll.u32 %v1429, 23
    %v1431 = vor.u32 4788187, %v1430
    %v1432 = vand.u32 2147483647, %v1431
    %v1434 = vcvt.s32.f32 %v1427
    %v1435 = vmul.f32 %v1434, %v1432
    %v1436 = vxor.u32 %v1435, 2147483648
    %v1437 = vsel %vm1354, %v1436, %v1435
    %v1438 = vsub.s32 4, %v1414
    %v1439 = vsel %vm1354, %v1438, %v1414
    %v1440 = vsel %vm1353, %v316, %v1437
    %v1441 = vsel %vm1353, 0, %v1439
    %v1442 = vcosq.f32.pop %v1440
    %v1443 = vsinq.f32.pop %v1440
    %vm1444 = vweird.f32 %v316
    %v1445 = vand.u32 %v1441, 3
    %vm1446 = vcmp.lt.s32.totalorder %v1445, 2
    %vm1447 = vcmp.eq.s32.totalorder %v1445, 0
    %v1448 = vxor.u32 %v1443, 2147483648
    %v1449 = vsel %vm1447, %v1442, %v1448
    %vm1450 = vcmp.eq.s32.totalorder %v1445, 2
    %v1451 = vxor.u32 %v1442, 2147483648
    %v1452 = vsel %vm1450, %v1451, %v1443
    %v1453 = vsel %vm1446, %v1449, %v1452
    %v1454 = vsel %vm1444, nan, %v1453
    %v1455 = vand.u32 2147483647, %v317
    %vm1456 = vcmp.le.f32.partialorder %v1455, 0.7853982
    %vm1457 = vcmp.lt.s32.totalorder %v317, 0
    %v1458 = vand.u32 %v317, 2139095040
    %v1459 = vshrl.u32 %v1458, 23
    %v1460 = vsub.s32 %v1459, 127
    %v1461 = vand.u32 2147483647, %v317
    %v1462 = vand.u32 %v1461, 8388607
    %v1463 = vor.u32 %v1462, 8388608
    %v1464 = vsub.s32 0, %v1463
    %v1465 = vadd.s32 %v1460, 1
    %vm1466 = vcmp.gt.s32.totalorder %v1465, 0
    %v1467 = vsel %vm1466, %v1465, 0
    %v1468 = vshrl.u32 %v1467, 5
    %v1469 = vand.u32 %v1467, 31
    %v1470 = vsub.s32 32, %v1469
    %v1471 = vshrl.u32 683565275, %v1470
    %v1472 = vshll.u32 683565275, %v1469
    %v1473 = vshrl.u32 2475754826, %v1470
    %v1474 = vor.u32 %v1472, %v1473
    %v1475 = vshll.u32 2475754826, %v1469
    %v1476 = vshrl.u32 2131351028, %v1470
    %v1477 = vor.u32 %v1475, %v1476
    %v1478 = vshll.u32 2131351028, %v1469
    %v1479 = vshrl.u32 2102212464, %v1470
    %v1480 = vor.u32 %v1478, %v1479
    %v1481 = vshll.u32 2102212464, %v1469
    %v1482 = vshrl.u32 920167782, %v1470
    %v1483 = vor.u32 %v1481, %v1482
    %v1484 = vshll.u32 920167782, %v1469
    %v1485 = vshrl.u32 1326507024, %v1470
    %v1486 = vor.u32 %v1484, %v1485
    %vm1487 = vcmp.lt.s32.totalorder %v1468, 1
    %vm1488 = vcmp.lt.s32.totalorder %v1468, 2
    %vm1489 = vcmp.lt.s32.totalorder %v1468, 3
    %vm1490 = vcmp.lt.s32.totalorder %v1468, 4
    %v1491 = vsel %vm1487, %v1471, %v1474
    %v1492 = vsel %vm1490, %v1480, 2102212464
    %v1493 = vsel %vm1489, %v1477, %v1492
    %v1494 = vsel %vm1488, %v1491, %v1493
    %v1495 = vsel %vm1487, %v1474, %v1477
    %v1496 = vsel %vm1490, %v1483, 920167782
    %v1497 = vsel %vm1489, %v1480, %v1496
    %v1498 = vsel %vm1488, %v1495, %v1497
    %v1499 = vsel %vm1487, %v1477, %v1480
    %v1500 = vsel %vm1490, %v1486, 1326507024
    %v1501 = vsel %vm1489, %v1483, %v1500
    %v1502 = vsel %vm1488, %v1499, %v1501
    %v1503 = vshll.u32 %v1463, 8
    %v1504 = vmul.u32.u64.compose %v1503, %v1502
    %v1505 = vextract.low.u32 %v1504
    %v1506 = vextract.high.u32 %v1504
    %v1507 = vmul.u32.u64.compose %v1503, %v1498
    %v1508 = vextract.low.u32 %v1507
    %v1509 = vextract.high.u32 %v1507
    %v1510 = vmul.u32 %v1503, %v1494
    %v1511 = vadd.s32 %v1506, %v1508
    %vm1512 = vc.u32 %v1506, %v1508
    %v1513 = vadd.s32 %v1509, 1
    %v1514 = vsel %vm1512, %v1513, %v1509
    %v1515 = vadd.s32 %v1510, %v1514
    %v1516 = vadd.s32 %v1515, 536870912
    %v1517 = vshrl.u32 %v1516, 30
    %v1518 = vshll.u32 %v1517, 30
    %v1519 = vsub.s32 %v1515, %v1518
    %vm1520 = vcmp.lt.s32.totalorder %v1519, 0
    %v1521 = vsub.s32 0, %v1519
    %v1522 = vsel %vm1520, %v1521, %v1519
    %v1523 = vclz %v1522
    %v1524 = vsub.s32 %v1523, 2
    %vm1525 = vcmp.gt.s32.totalorder 0, %v1524
    %v1526 = vsel %vm1525, 0, %v1524
    %v1527 = vsub.s32 32, %v1526
    %v1528 = vshll.u32 %v1519, %v1526
    %v1529 = vshrl.u32 %v1511, %v1527
    %v1530 = vor.u32 %v1528, %v1529
    %v1531 = vsub.s32 4294967266, %v1526
    %v1532 = vadd.s32 %v1531, 127
    %v1533 = vshll.u32 %v1532, 23
    %v1534 = vor.u32 4788187, %v1533
    %v1535 = vand.u32 2147483647, %v1534
    %v1537 = vcvt.s32.f32 %v1530
    %v1538 = vmul.f32 %v1537, %v1535
    %v1539 = vxor.u32 %v1538, 2147483648
    %v1540 = vsel %vm1457, %v1539, %v1538
    %v1541 = vsub.s32 4, %v1517
    %v1542 = vsel %vm1457, %v1541, %v1517
    %v1543 = vsel %vm1456, %v317, %v1540
    %v1544 = vsel %vm1456, 0, %v1542
    %v1545 = vcosq.f32.pop %v1543
    %v1546 = vsinq.f32.pop %v1543
    %vm1547 = vweird.f32 %v317
    %v1548 = vand.u32 %v1544, 3
    %vm1549 = vcmp.lt.s32.totalorder %v1548, 2
    %vm1550 = vcmp.eq.s32.totalorder %v1548, 0
    %v1551 = vxor.u32 %v1546, 2147483648
    %v1552 = vsel %vm1550, %v1545, %v1551
    %vm1553 = vcmp.eq.s32.totalorder %v1548, 2
    %v1554 = vxor.u32 %v1545, 2147483648
    %v1555 = vsel %vm1553, %v1554, %v1546
    %v1556 = vsel %vm1549, %v1552, %v1555
    %v1557 = vsel %vm1547, nan, %v1556
    %v1558 = vand.u32 2147483647, %v318
    %vm1559 = vcmp.le.f32.partialorder %v1558, 0.7853982
    %vm1560 = vcmp.lt.s32.totalorder %v318, 0
    %v1561 = vand.u32 %v318, 2139095040
    %v1562 = vshrl.u32 %v1561, 23
    %v1563 = vsub.s32 %v1562, 127
    %v1564 = vand.u32 2147483647, %v318
    %v1565 = vand.u32 %v1564, 8388607
    %v1566 = vor.u32 %v1565, 8388608
    %v1567 = vsub.s32 0, %v1566
    %v1568 = vadd.s32 %v1563, 1
    %vm1569 = vcmp.gt.s32.totalorder %v1568, 0
    %v1570 = vsel %vm1569, %v1568, 0
    %v1571 = vshrl.u32 %v1570, 5
    %v1572 = vand.u32 %v1570, 31
    %v1573 = vsub.s32 32, %v1572
    %v1574 = vshrl.u32 683565275, %v1573
    %v1575 = vshll.u32 683565275, %v1572
    %v1576 = vshrl.u32 2475754826, %v1573
    %v1577 = vor.u32 %v1575, %v1576
    %v1578 = vshll.u32 2475754826, %v1572
    %v1579 = vshrl.u32 2131351028, %v1573
    %v1580 = vor.u32 %v1578, %v1579
    %v1581 = vshll.u32 2131351028, %v1572
    %v1582 = vshrl.u32 2102212464, %v1573
    %v1583 = vor.u32 %v1581, %v1582
    %v1584 = vshll.u32 2102212464, %v1572
    %v1585 = vshrl.u32 920167782, %v1573
    %v1586 = vor.u32 %v1584, %v1585
    %v1587 = vshll.u32 920167782, %v1572
    %v1588 = vshrl.u32 1326507024, %v1573
    %v1589 = vor.u32 %v1587, %v1588
    %vm1590 = vcmp.lt.s32.totalorder %v1571, 1
    %vm1591 = vcmp.lt.s32.totalorder %v1571, 2
    %vm1592 = vcmp.lt.s32.totalorder %v1571, 3
    %vm1593 = vcmp.lt.s32.totalorder %v1571, 4
    %v1594 = vsel %vm1590, %v1574, %v1577
    %v1595 = vsel %vm1593, %v1583, 2102212464
    %v1596 = vsel %vm1592, %v1580, %v1595
    %v1597 = vsel %vm1591, %v1594, %v1596
    %v1598 = vsel %vm1590, %v1577, %v1580
    %v1599 = vsel %vm1593, %v1586, 920167782
    %v1600 = vsel %vm1592, %v1583, %v1599
    %v1601 = vsel %vm1591, %v1598, %v1600
    %v1602 = vsel %vm1590, %v1580, %v1583
    %v1603 = vsel %vm1593, %v1589, 1326507024
    %v1604 = vsel %vm1592, %v1586, %v1603
    %v1605 = vsel %vm1591, %v1602, %v1604
    %v1606 = vshll.u32 %v1566, 8
    %v1607 = vmul.u32.u64.compose %v1606, %v1605
    %v1608 = vextract.low.u32 %v1607
    %v1609 = vextract.high.u32 %v1607
    %v1610 = vmul.u32.u64.compose %v1606, %v1601
    %v1611 = vextract.low.u32 %v1610
    %v1612 = vextract.high.u32 %v1610
    %v1613 = vmul.u32 %v1606, %v1597
    %v1614 = vadd.s32 %v1609, %v1611
    %vm1615 = vc.u32 %v1609, %v1611
    %v1616 = vadd.s32 %v1612, 1
    %v1617 = vsel %vm1615, %v1616, %v1612
    %v1618 = vadd.s32 %v1613, %v1617
    %v1619 = vadd.s32 %v1618, 536870912
    %v1620 = vshrl.u32 %v1619, 30
    %v1621 = vshll.u32 %v1620, 30
    %v1622 = vsub.s32 %v1618, %v1621
    %vm1623 = vcmp.lt.s32.totalorder %v1622, 0
    %v1624 = vsub.s32 0, %v1622
    %v1625 = vsel %vm1623, %v1624, %v1622
    %v1626 = vclz %v1625
    %v1627 = vsub.s32 %v1626, 2
    %vm1628 = vcmp.gt.s32.totalorder 0, %v1627
    %v1629 = vsel %vm1628, 0, %v1627
    %v1630 = vsub.s32 32, %v1629
    %v1631 = vshll.u32 %v1622, %v1629
    %v1632 = vshrl.u32 %v1614, %v1630
    %v1633 = vor.u32 %v1631, %v1632
    %v1634 = vsub.s32 4294967266, %v1629
    %v1635 = vadd.s32 %v1634, 127
    %v1636 = vshll.u32 %v1635, 23
    %v1637 = vor.u32 4788187, %v1636
    %v1638 = vand.u32 2147483647, %v1637
    %v1640 = vcvt.s32.f32 %v1633
    %v1641 = vmul.f32 %v1640, %v1638
    %v1642 = vxor.u32 %v1641, 2147483648
    %v1643 = vsel %vm1560, %v1642, %v1641
    %v1644 = vsub.s32 4, %v1620
    %v1645 = vsel %vm1560, %v1644, %v1620
    %v1646 = vsel %vm1559, %v318, %v1643
    %v1647 = vsel %vm1559, 0, %v1645
    %v1648 = vcosq.f32.pop %v1646
    %v1649 = vsinq.f32.pop %v1646
    %vm1650 = vweird.f32 %v318
    %v1651 = vand.u32 %v1647, 3
    %vm1652 = vcmp.lt.s32.totalorder %v1651, 2
    %vm1653 = vcmp.eq.s32.totalorder %v1651, 0
    %v1654 = vxor.u32 %v1649, 2147483648
    %v1655 = vsel %vm1653, %v1648, %v1654
    %vm1656 = vcmp.eq.s32.totalorder %v1651, 2
    %v1657 = vxor.u32 %v1648, 2147483648
    %v1658 = vsel %vm1656, %v1657, %v1649
    %v1659 = vsel %vm1652, %v1655, %v1658
    %v1660 = vsel %vm1650, nan, %v1659
    %v1661 = vand.u32 2147483647, %v319
    %vm1662 = vcmp.le.f32.partialorder %v1661, 0.7853982
    %vm1663 = vcmp.lt.s32.totalorder %v319, 0
    %v1664 = vand.u32 %v319, 2139095040
    %v1665 = vshrl.u32 %v1664, 23
    %v1666 = vsub.s32 %v1665, 127
    %v1667 = vand.u32 2147483647, %v319
    %v1668 = vand.u32 %v1667, 8388607
    %v1669 = vor.u32 %v1668, 8388608
    %v1670 = vsub.s32 0, %v1669
    %v1671 = vadd.s32 %v1666, 1
    %vm1672 = vcmp.gt.s32.totalorder %v1671, 0
    %v1673 = vsel %vm1672, %v1671, 0
    %v1674 = vshrl.u32 %v1673, 5
    %v1675 = vand.u32 %v1673, 31
    %v1676 = vsub.s32 32, %v1675
    %v1677 = vshrl.u32 683565275, %v1676
    %v1678 = vshll.u32 683565275, %v1675
    %v1679 = vshrl.u32 2475754826, %v1676
    %v1680 = vor.u32 %v1678, %v1679
    %v1681 = vshll.u32 2475754826, %v1675
    %v1682 = vshrl.u32 2131351028, %v1676
    %v1683 = vor.u32 %v1681, %v1682
    %v1684 = vshll.u32 2131351028, %v1675
    %v1685 = vshrl.u32 2102212464, %v1676
    %v1686 = vor.u32 %v1684, %v1685
    %v1687 = vshll.u32 2102212464, %v1675
    %v1688 = vshrl.u32 920167782, %v1676
    %v1689 = vor.u32 %v1687, %v1688
    %v1690 = vshll.u32 920167782, %v1675
    %v1691 = vshrl.u32 1326507024, %v1676
    %v1692 = vor.u32 %v1690, %v1691
    %vm1693 = vcmp.lt.s32.totalorder %v1674, 1
    %vm1694 = vcmp.lt.s32.totalorder %v1674, 2
    %vm1695 = vcmp.lt.s32.totalorder %v1674, 3
    %vm1696 = vcmp.lt.s32.totalorder %v1674, 4
    %v1697 = vsel %vm1693, %v1677, %v1680
    %v1698 = vsel %vm1696, %v1686, 2102212464
    %v1699 = vsel %vm1695, %v1683, %v1698
    %v1700 = vsel %vm1694, %v1697, %v1699
    %v1701 = vsel %vm1693, %v1680, %v1683
    %v1702 = vsel %vm1696, %v1689, 920167782
    %v1703 = vsel %vm1695, %v1686, %v1702
    %v1704 = vsel %vm1694, %v1701, %v1703
    %v1705 = vsel %vm1693, %v1683, %v1686
    %v1706 = vsel %vm1696, %v1692, 1326507024
    %v1707 = vsel %vm1695, %v1689, %v1706
    %v1708 = vsel %vm1694, %v1705, %v1707
    %v1709 = vshll.u32 %v1669, 8
    %v1710 = vmul.u32.u64.compose %v1709, %v1708
    %v1711 = vextract.low.u32 %v1710
    %v1712 = vextract.high.u32 %v1710
    %v1713 = vmul.u32.u64.compose %v1709, %v1704
    %v1714 = vextract.low.u32 %v1713
    %v1715 = vextract.high.u32 %v1713
    %v1716 = vmul.u32 %v1709, %v1700
    %v1717 = vadd.s32 %v1712, %v1714
    %vm1718 = vc.u32 %v1712, %v1714
    %v1719 = vadd.s32 %v1715, 1
    %v1720 = vsel %vm1718, %v1719, %v1715
    %v1721 = vadd.s32 %v1716, %v1720
    %v1722 = vadd.s32 %v1721, 536870912
    %v1723 = vshrl.u32 %v1722, 30
    %v1724 = vshll.u32 %v1723, 30
    %v1725 = vsub.s32 %v1721, %v1724
    %vm1726 = vcmp.lt.s32.totalorder %v1725, 0
    %v1727 = vsub.s32 0, %v1725
    %v1728 = vsel %vm1726, %v1727, %v1725
    %v1729 = vclz %v1728
    %v1730 = vsub.s32 %v1729, 2
    %vm1731 = vcmp.gt.s32.totalorder 0, %v1730
    %v1732 = vsel %vm1731, 0, %v1730
    %v1733 = vsub.s32 32, %v1732
    %v1734 = vshll.u32 %v1725, %v1732
    %v1735 = vshrl.u32 %v1717, %v1733
    %v1736 = vor.u32 %v1734, %v1735
    %v1737 = vsub.s32 4294967266, %v1732
    %v1738 = vadd.s32 %v1737, 127
    %v1739 = vshll.u32 %v1738, 23
    %v1740 = vor.u32 4788187, %v1739
    %v1741 = vand.u32 2147483647, %v1740
    %v1743 = vcvt.s32.f32 %v1736
    %v1744 = vmul.f32 %v1743, %v1741
    %v1745 = vxor.u32 %v1744, 2147483648
    %v1746 = vsel %vm1663, %v1745, %v1744
    %v1747 = vsub.s32 4, %v1723
    %v1748 = vsel %vm1663, %v1747, %v1723
    %v1749 = vsel %vm1662, %v319, %v1746
    %v1750 = vsel %vm1662, 0, %v1748
    %v1751 = vcosq.f32.pop %v1749
    %v1752 = vsinq.f32.pop %v1749
    %vm1753 = vweird.f32 %v319
    %v1754 = vand.u32 %v1750, 3
    %vm1755 = vcmp.lt.s32.totalorder %v1754, 2
    %vm1756 = vcmp.eq.s32.totalorder %v1754, 0
    %v1757 = vxor.u32 %v1752, 2147483648
    %v1758 = vsel %vm1756, %v1751, %v1757
    %vm1759 = vcmp.eq.s32.totalorder %v1754, 2
    %v1760 = vxor.u32 %v1751, 2147483648
    %v1761 = vsel %vm1759, %v1760, %v1752
    %v1762 = vsel %vm1755, %v1758, %v1761
    %v1763 = vsel %vm1753, nan, %v1762
    %v1764 = vand.u32 2147483647, %v320
    %vm1765 = vcmp.le.f32.partialorder %v1764, 0.7853982
    %vm1766 = vcmp.lt.s32.totalorder %v320, 0
    %v1767 = vand.u32 %v320, 2139095040
    %v1768 = vshrl.u32 %v1767, 23
    %v1769 = vsub.s32 %v1768, 127
    %v1770 = vand.u32 2147483647, %v320
    %v1771 = vand.u32 %v1770, 8388607
    %v1772 = vor.u32 %v1771, 8388608
    %v1773 = vsub.s32 0, %v1772
    %v1774 = vadd.s32 %v1769, 1
    %vm1775 = vcmp.gt.s32.totalorder %v1774, 0
    %v1776 = vsel %vm1775, %v1774, 0
    %v1777 = vshrl.u32 %v1776, 5
    %v1778 = vand.u32 %v1776, 31
    %v1779 = vsub.s32 32, %v1778
    %v1780 = vshrl.u32 683565275, %v1779
    %v1781 = vshll.u32 683565275, %v1778
    %v1782 = vshrl.u32 2475754826, %v1779
    %v1783 = vor.u32 %v1781, %v1782
    %v1784 = vshll.u32 2475754826, %v1778
    %v1785 = vshrl.u32 2131351028, %v1779
    %v1786 = vor.u32 %v1784, %v1785
    %v1787 = vshll.u32 2131351028, %v1778
    %v1788 = vshrl.u32 2102212464, %v1779
    %v1789 = vor.u32 %v1787, %v1788
    %v1790 = vshll.u32 2102212464, %v1778
    %v1791 = vshrl.u32 920167782, %v1779
    %v1792 = vor.u32 %v1790, %v1791
    %v1793 = vshll.u32 920167782, %v1778
    %v1794 = vshrl.u32 1326507024, %v1779
    %v1795 = vor.u32 %v1793, %v1794
    %vm1796 = vcmp.lt.s32.totalorder %v1777, 1
    %vm1797 = vcmp.lt.s32.totalorder %v1777, 2
    %vm1798 = vcmp.lt.s32.totalorder %v1777, 3
    %vm1799 = vcmp.lt.s32.totalorder %v1777, 4
    %v1800 = vsel %vm1796, %v1780, %v1783
    %v1801 = vsel %vm1799, %v1789, 2102212464
    %v1802 = vsel %vm1798, %v1786, %v1801
    %v1803 = vsel %vm1797, %v1800, %v1802
    %v1804 = vsel %vm1796, %v1783, %v1786
    %v1805 = vsel %vm1799, %v1792, 920167782
    %v1806 = vsel %vm1798, %v1789, %v1805
    %v1807 = vsel %vm1797, %v1804, %v1806
    %v1808 = vsel %vm1796, %v1786, %v1789
    %v1809 = vsel %vm1799, %v1795, 1326507024
    %v1810 = vsel %vm1798, %v1792, %v1809
    %v1811 = vsel %vm1797, %v1808, %v1810
    %v1812 = vshll.u32 %v1772, 8
    %v1813 = vmul.u32.u64.compose %v1812, %v1811
    %v1814 = vextract.low.u32 %v1813
    %v1815 = vextract.high.u32 %v1813
    %v1816 = vmul.u32.u64.compose %v1812, %v1807
    %v1817 = vextract.low.u32 %v1816
    %v1818 = vextract.high.u32 %v1816
    %v1819 = vmul.u32 %v1812, %v1803
    %v1820 = vadd.s32 %v1815, %v1817
    %vm1821 = vc.u32 %v1815, %v1817
    %v1822 = vadd.s32 %v1818, 1
    %v1823 = vsel %vm1821, %v1822, %v1818
    %v1824 = vadd.s32 %v1819, %v1823
    %v1825 = vadd.s32 %v1824, 536870912
    %v1826 = vshrl.u32 %v1825, 30
    %v1827 = vshll.u32 %v1826, 30
    %v1828 = vsub.s32 %v1824, %v1827
    %vm1829 = vcmp.lt.s32.totalorder %v1828, 0
    %v1830 = vsub.s32 0, %v1828
    %v1831 = vsel %vm1829, %v1830, %v1828
    %v1832 = vclz %v1831
    %v1833 = vsub.s32 %v1832, 2
    %vm1834 = vcmp.gt.s32.totalorder 0, %v1833
    %v1835 = vsel %vm1834, 0, %v1833
    %v1836 = vsub.s32 32, %v1835
    %v1837 = vshll.u32 %v1828, %v1835
    %v1838 = vshrl.u32 %v1820, %v1836
    %v1839 = vor.u32 %v1837, %v1838
    %v1840 = vsub.s32 4294967266, %v1835
    %v1841 = vadd.s32 %v1840, 127
    %v1842 = vshll.u32 %v1841, 23
    %v1843 = vor.u32 4788187, %v1842
    %v1844 = vand.u32 2147483647, %v1843
    %v1846 = vcvt.s32.f32 %v1839
    %v1847 = vmul.f32 %v1846, %v1844
    %v1848 = vxor.u32 %v1847, 2147483648
    %v1849 = vsel %vm1766, %v1848, %v1847
    %v1850 = vsub.s32 4, %v1826
    %v1851 = vsel %vm1766, %v1850, %v1826
    %v1852 = vsel %vm1765, %v320, %v1849
    %v1853 = vsel %vm1765, 0, %v1851
    %v1854 = vcosq.f32.pop %v1852
    %v1855 = vsinq.f32.pop %v1852
    %vm1856 = vweird.f32 %v320
    %v1857 = vand.u32 %v1853, 3
    %vm1858 = vcmp.lt.s32.totalorder %v1857, 2
    %vm1859 = vcmp.eq.s32.totalorder %v1857, 0
    %v1860 = vxor.u32 %v1855, 2147483648
    %v1861 = vsel %vm1859, %v1854, %v1860
    %vm1862 = vcmp.eq.s32.totalorder %v1857, 2
    %v1863 = vxor.u32 %v1854, 2147483648
    %v1864 = vsel %vm1862, %v1863, %v1855
    %v1865 = vsel %vm1858, %v1861, %v1864
    %v1866 = vsel %vm1856, nan, %v1865
    %v1867 = vand.u32 2147483647, %v321
    %vm1868 = vcmp.le.f32.partialorder %v1867, 0.7853982
    %vm1869 = vcmp.lt.s32.totalorder %v321, 0
    %v1870 = vand.u32 %v321, 2139095040
    %v1871 = vshrl.u32 %v1870, 23
    %v1872 = vsub.s32 %v1871, 127
    %v1873 = vand.u32 2147483647, %v321
    %v1874 = vand.u32 %v1873, 8388607
    %v1875 = vor.u32 %v1874, 8388608
    %v1876 = vsub.s32 0, %v1875
    %v1877 = vadd.s32 %v1872, 1
    %vm1878 = vcmp.gt.s32.totalorder %v1877, 0
    %v1879 = vsel %vm1878, %v1877, 0
    %v1880 = vshrl.u32 %v1879, 5
    %v1881 = vand.u32 %v1879, 31
    %v1882 = vsub.s32 32, %v1881
    %v1883 = vshrl.u32 683565275, %v1882
    %v1884 = vshll.u32 683565275, %v1881
    %v1885 = vshrl.u32 2475754826, %v1882
    %v1886 = vor.u32 %v1884, %v1885
    %v1887 = vshll.u32 2475754826, %v1881
    %v1888 = vshrl.u32 2131351028, %v1882
    %v1889 = vor.u32 %v1887, %v1888
    %v1890 = vshll.u32 2131351028, %v1881
    %v1891 = vshrl.u32 2102212464, %v1882
    %v1892 = vor.u32 %v1890, %v1891
    %v1893 = vshll.u32 2102212464, %v1881
    %v1894 = vshrl.u32 920167782, %v1882
    %v1895 = vor.u32 %v1893, %v1894
    %v1896 = vshll.u32 920167782, %v1881
    %v1897 = vshrl.u32 1326507024, %v1882
    %v1898 = vor.u32 %v1896, %v1897
    %vm1899 = vcmp.lt.s32.totalorder %v1880, 1
    %vm1900 = vcmp.lt.s32.totalorder %v1880, 2
    %vm1901 = vcmp.lt.s32.totalorder %v1880, 3
    %vm1902 = vcmp.lt.s32.totalorder %v1880, 4
    %v1903 = vsel %vm1899, %v1883, %v1886
    %v1904 = vsel %vm1902, %v1892, 2102212464
    %v1905 = vsel %vm1901, %v1889, %v1904
    %v1906 = vsel %vm1900, %v1903, %v1905
    %v1907 = vsel %vm1899, %v1886, %v1889
    %v1908 = vsel %vm1902, %v1895, 920167782
    %v1909 = vsel %vm1901, %v1892, %v1908
    %v1910 = vsel %vm1900, %v1907, %v1909
    %v1911 = vsel %vm1899, %v1889, %v1892
    %v1912 = vsel %vm1902, %v1898, 1326507024
    %v1913 = vsel %vm1901, %v1895, %v1912
    %v1914 = vsel %vm1900, %v1911, %v1913
    %v1915 = vshll.u32 %v1875, 8
    %v1916 = vmul.u32.u64.compose %v1915, %v1914
    %v1917 = vextract.low.u32 %v1916
    %v1918 = vextract.high.u32 %v1916
    %v1919 = vmul.u32.u64.compose %v1915, %v1910
    %v1920 = vextract.low.u32 %v1919
    %v1921 = vextract.high.u32 %v1919
    %v1922 = vmul.u32 %v1915, %v1906
    %v1923 = vadd.s32 %v1918, %v1920
    %vm1924 = vc.u32 %v1918, %v1920
    %v1925 = vadd.s32 %v1921, 1
    %v1926 = vsel %vm1924, %v1925, %v1921
    %v1927 = vadd.s32 %v1922, %v1926
    %v1928 = vadd.s32 %v1927, 536870912
    %v1929 = vshrl.u32 %v1928, 30
    %v1930 = vshll.u32 %v1929, 30
    %v1931 = vsub.s32 %v1927, %v1930
    %vm1932 = vcmp.lt.s32.totalorder %v1931, 0
    %v1933 = vsub.s32 0, %v1931
    %v1934 = vsel %vm1932, %v1933, %v1931
    %v1935 = vclz %v1934
    %v1936 = vsub.s32 %v1935, 2
    %vm1937 = vcmp.gt.s32.totalorder 0, %v1936
    %v1938 = vsel %vm1937, 0, %v1936
    %v1939 = vsub.s32 32, %v1938
    %v1940 = vshll.u32 %v1931, %v1938
    %v1941 = vshrl.u32 %v1923, %v1939
    %v1942 = vor.u32 %v1940, %v1941
    %v1943 = vsub.s32 4294967266, %v1938
    %v1944 = vadd.s32 %v1943, 127
    %v1945 = vshll.u32 %v1944, 23
    %v1946 = vor.u32 4788187, %v1945
    %v1947 = vand.u32 2147483647, %v1946
    %v1949 = vcvt.s32.f32 %v1942
    %v1950 = vmul.f32 %v1949, %v1947
    %v1951 = vxor.u32 %v1950, 2147483648
    %v1952 = vsel %vm1869, %v1951, %v1950
    %v1953 = vsub.s32 4, %v1929
    %v1954 = vsel %vm1869, %v1953, %v1929
    %v1955 = vsel %vm1868, %v321, %v1952
    %v1956 = vsel %vm1868, 0, %v1954
    %v1957 = vcosq.f32.pop %v1955
    %v1958 = vsinq.f32.pop %v1955
    %vm1959 = vweird.f32 %v321
    %v1960 = vand.u32 %v1956, 3
    %vm1961 = vcmp.lt.s32.totalorder %v1960, 2
    %vm1962 = vcmp.eq.s32.totalorder %v1960, 0
    %v1963 = vxor.u32 %v1958, 2147483648
    %v1964 = vsel %vm1962, %v1957, %v1963
    %vm1965 = vcmp.eq.s32.totalorder %v1960, 2
    %v1966 = vxor.u32 %v1957, 2147483648
    %v1967 = vsel %vm1965, %v1966, %v1958
    %v1968 = vsel %vm1961, %v1964, %v1967
    %v1969 = vsel %vm1959, nan, %v1968
    %v1970 = vand.u32 2147483647, %v306
    %vm1971 = vcmp.le.f32.partialorder %v1970, 0.7853982
    %vm1972 = vcmp.lt.s32.totalorder %v306, 0
    %v1973 = vand.u32 %v306, 2139095040
    %v1974 = vshrl.u32 %v1973, 23
    %v1975 = vsub.s32 %v1974, 127
    %v1976 = vand.u32 2147483647, %v306
    %v1977 = vand.u32 %v1976, 8388607
    %v1978 = vor.u32 %v1977, 8388608
    %v1979 = vsub.s32 0, %v1978
    %v1980 = vadd.s32 %v1975, 1
    %vm1981 = vcmp.gt.s32.totalorder %v1980, 0
    %v1982 = vsel %vm1981, %v1980, 0
    %v1983 = vshrl.u32 %v1982, 5
    %v1984 = vand.u32 %v1982, 31
    %v1985 = vsub.s32 32, %v1984
    %v1986 = vshrl.u32 683565275, %v1985
    %v1987 = vshll.u32 683565275, %v1984
    %v1988 = vshrl.u32 2475754826, %v1985
    %v1989 = vor.u32 %v1987, %v1988
    %v1990 = vshll.u32 2475754826, %v1984
    %v1991 = vshrl.u32 2131351028, %v1985
    %v1992 = vor.u32 %v1990, %v1991
    %v1993 = vshll.u32 2131351028, %v1984
    %v1994 = vshrl.u32 2102212464, %v1985
    %v1995 = vor.u32 %v1993, %v1994
    %v1996 = vshll.u32 2102212464, %v1984
    %v1997 = vshrl.u32 920167782, %v1985
    %v1998 = vor.u32 %v1996, %v1997
    %v1999 = vshll.u32 920167782, %v1984
    %v2000 = vshrl.u32 1326507024, %v1985
    %v2001 = vor.u32 %v1999, %v2000
    %vm2002 = vcmp.lt.s32.totalorder %v1983, 1
    %vm2003 = vcmp.lt.s32.totalorder %v1983, 2
    %vm2004 = vcmp.lt.s32.totalorder %v1983, 3
    %vm2005 = vcmp.lt.s32.totalorder %v1983, 4
    %v2006 = vsel %vm2002, %v1986, %v1989
    %v2007 = vsel %vm2005, %v1995, 2102212464
    %v2008 = vsel %vm2004, %v1992, %v2007
    %v2009 = vsel %vm2003, %v2006, %v2008
    %v2010 = vsel %vm2002, %v1989, %v1992
    %v2011 = vsel %vm2005, %v1998, 920167782
    %v2012 = vsel %vm2004, %v1995, %v2011
    %v2013 = vsel %vm2003, %v2010, %v2012
    %v2014 = vsel %vm2002, %v1992, %v1995
    %v2015 = vsel %vm2005, %v2001, 1326507024
    %v2016 = vsel %vm2004, %v1998, %v2015
    %v2017 = vsel %vm2003, %v2014, %v2016
    %v2018 = vshll.u32 %v1978, 8
    %v2019 = vmul.u32.u64.compose %v2018, %v2017
    %v2020 = vextract.low.u32 %v2019
    %v2021 = vextract.high.u32 %v2019
    %v2022 = vmul.u32.u64.compose %v2018, %v2013
    %v2023 = vextract.low.u32 %v2022
    %v2024 = vextract.high.u32 %v2022
    %v2025 = vmul.u32 %v2018, %v2009
    %v2026 = vadd.s32 %v2021, %v2023
    %vm2027 = vc.u32 %v2021, %v2023
    %v2028 = vadd.s32 %v2024, 1
    %v2029 = vsel %vm2027, %v2028, %v2024
    %v2030 = vadd.s32 %v2025, %v2029
    %v2031 = vadd.s32 %v2030, 536870912
    %v2032 = vshrl.u32 %v2031, 30
    %v2033 = vshll.u32 %v2032, 30
    %v2034 = vsub.s32 %v2030, %v2033
    %vm2035 = vcmp.lt.s32.totalorder %v2034, 0
    %v2036 = vsub.s32 0, %v2034
    %v2037 = vsel %vm2035, %v2036, %v2034
    %v2038 = vclz %v2037
    %v2039 = vsub.s32 %v2038, 2
    %vm2040 = vcmp.gt.s32.totalorder 0, %v2039
    %v2041 = vsel %vm2040, 0, %v2039
    %v2042 = vsub.s32 32, %v2041
    %v2043 = vshll.u32 %v2034, %v2041
    %v2044 = vshrl.u32 %v2026, %v2042
    %v2045 = vor.u32 %v2043, %v2044
    %v2046 = vsub.s32 4294967266, %v2041
    %v2047 = vadd.s32 %v2046, 127
    %v2048 = vshll.u32 %v2047, 23
    %v2049 = vor.u32 4788187, %v2048
    %v2050 = vand.u32 2147483647, %v2049
    %v2052 = vcvt.s32.f32 %v2045
    %v2053 = vmul.f32 %v2052, %v2050
    %v2054 = vxor.u32 %v2053, 2147483648
    %v2055 = vsel %vm1972, %v2054, %v2053
    %v2056 = vsub.s32 4, %v2032
    %v2057 = vsel %vm1972, %v2056, %v2032
    %v2058 = vsel %vm1971, %v306, %v2055
    %v2059 = vsel %vm1971, 0, %v2057
    %v2060 = vcosq.f32.pop %v2058
    %v2061 = vsinq.f32.pop %v2058
    %vm2062 = vweird.f32 %v306
    %v2063 = vadd.s32 %v2059, 3
    %v2064 = vand.u32 %v2063, 3
    %vm2065 = vcmp.lt.s32.totalorder %v2064, 2
    %vm2066 = vcmp.eq.s32.totalorder %v2064, 0
    %v2067 = vxor.u32 %v2061, 2147483648
    %v2068 = vsel %vm2066, %v2060, %v2067
    %vm2069 = vcmp.eq.s32.totalorder %v2064, 2
    %v2070 = vxor.u32 %v2060, 2147483648
    %v2071 = vsel %vm2069, %v2070, %v2061
    %v2072 = vsel %vm2065, %v2068, %v2071
    %v2073 = vsel %vm2062, nan, %v2072
    %v2074 = vand.u32 2147483647, %v307
    %vm2075 = vcmp.le.f32.partialorder %v2074, 0.7853982
    %vm2076 = vcmp.lt.s32.totalorder %v307, 0
    %v2077 = vand.u32 %v307, 2139095040
    %v2078 = vshrl.u32 %v2077, 23
    %v2079 = vsub.s32 %v2078, 127
    %v2080 = vand.u32 2147483647, %v307
    %v2081 = vand.u32 %v2080, 8388607
    %v2082 = vor.u32 %v2081, 8388608
    %v2083 = vsub.s32 0, %v2082
    %v2084 = vadd.s32 %v2079, 1
    %vm2085 = vcmp.gt.s32.totalorder %v2084, 0
    %v2086 = vsel %vm2085, %v2084, 0
    %v2087 = vshrl.u32 %v2086, 5
    %v2088 = vand.u32 %v2086, 31
    %v2089 = vsub.s32 32, %v2088
    %v2090 = vshrl.u32 683565275, %v2089
    %v2091 = vshll.u32 683565275, %v2088
    %v2092 = vshrl.u32 2475754826, %v2089
    %v2093 = vor.u32 %v2091, %v2092
    %v2094 = vshll.u32 2475754826, %v2088
    %v2095 = vshrl.u32 2131351028, %v2089
    %v2096 = vor.u32 %v2094, %v2095
    %v2097 = vshll.u32 2131351028, %v2088
    %v2098 = vshrl.u32 2102212464, %v2089
    %v2099 = vor.u32 %v2097, %v2098
    %v2100 = vshll.u32 2102212464, %v2088
    %v2101 = vshrl.u32 920167782, %v2089
    %v2102 = vor.u32 %v2100, %v2101
    %v2103 = vshll.u32 920167782, %v2088
    %v2104 = vshrl.u32 1326507024, %v2089
    %v2105 = vor.u32 %v2103, %v2104
    %vm2106 = vcmp.lt.s32.totalorder %v2087, 1
    %vm2107 = vcmp.lt.s32.totalorder %v2087, 2
    %vm2108 = vcmp.lt.s32.totalorder %v2087, 3
    %vm2109 = vcmp.lt.s32.totalorder %v2087, 4
    %v2110 = vsel %vm2106, %v2090, %v2093
    %v2111 = vsel %vm2109, %v2099, 2102212464
    %v2112 = vsel %vm2108, %v2096, %v2111
    %v2113 = vsel %vm2107, %v2110, %v2112
    %v2114 = vsel %vm2106, %v2093, %v2096
    %v2115 = vsel %vm2109, %v2102, 920167782
    %v2116 = vsel %vm2108, %v2099, %v2115
    %v2117 = vsel %vm2107, %v2114, %v2116
    %v2118 = vsel %vm2106, %v2096, %v2099
    %v2119 = vsel %vm2109, %v2105, 1326507024
    %v2120 = vsel %vm2108, %v2102, %v2119
    %v2121 = vsel %vm2107, %v2118, %v2120
    %v2122 = vshll.u32 %v2082, 8
    %v2123 = vmul.u32.u64.compose %v2122, %v2121
    %v2124 = vextract.low.u32 %v2123
    %v2125 = vextract.high.u32 %v2123
    %v2126 = vmul.u32.u64.compose %v2122, %v2117
    %v2127 = vextract.low.u32 %v2126
    %v2128 = vextract.high.u32 %v2126
    %v2129 = vmul.u32 %v2122, %v2113
    %v2130 = vadd.s32 %v2125, %v2127
    %vm2131 = vc.u32 %v2125, %v2127
    %v2132 = vadd.s32 %v2128, 1
    %v2133 = vsel %vm2131, %v2132, %v2128
    %v2134 = vadd.s32 %v2129, %v2133
    %v2135 = vadd.s32 %v2134, 536870912
    %v2136 = vshrl.u32 %v2135, 30
    %v2137 = vshll.u32 %v2136, 30
    %v2138 = vsub.s32 %v2134, %v2137
    %vm2139 = vcmp.lt.s32.totalorder %v2138, 0
    %v2140 = vsub.s32 0, %v2138
    %v2141 = vsel %vm2139, %v2140, %v2138
    %v2142 = vclz %v2141
    %v2143 = vsub.s32 %v2142, 2
    %vm2144 = vcmp.gt.s32.totalorder 0, %v2143
    %v2145 = vsel %vm2144, 0, %v2143
    %v2146 = vsub.s32 32, %v2145
    %v2147 = vshll.u32 %v2138, %v2145
    %v2148 = vshrl.u32 %v2130, %v2146
    %v2149 = vor.u32 %v2147, %v2148
    %v2150 = vsub.s32 4294967266, %v2145
    %v2151 = vadd.s32 %v2150, 127
    %v2152 = vshll.u32 %v2151, 23
    %v2153 = vor.u32 4788187, %v2152
    %v2154 = vand.u32 2147483647, %v2153
    %v2156 = vcvt.s32.f32 %v2149
    %v2157 = vmul.f32 %v2156, %v2154
    %v2158 = vxor.u32 %v2157, 2147483648
    %v2159 = vsel %vm2076, %v2158, %v2157
    %v2160 = vsub.s32 4, %v2136
    %v2161 = vsel %vm2076, %v2160, %v2136
    %v2162 = vsel %vm2075, %v307, %v2159
    %v2163 = vsel %vm2075, 0, %v2161
    %v2164 = vcosq.f32.pop %v2162
    %v2165 = vsinq.f32.pop %v2162
    %vm2166 = vweird.f32 %v307
    %v2167 = vadd.s32 %v2163, 3
    %v2168 = vand.u32 %v2167, 3
    %vm2169 = vcmp.lt.s32.totalorder %v2168, 2
    %vm2170 = vcmp.eq.s32.totalorder %v2168, 0
    %v2171 = vxor.u32 %v2165, 2147483648
    %v2172 = vsel %vm2170, %v2164, %v2171
    %vm2173 = vcmp.eq.s32.totalorder %v2168, 2
    %v2174 = vxor.u32 %v2164, 2147483648
    %v2175 = vsel %vm2173, %v2174, %v2165
    %v2176 = vsel %vm2169, %v2172, %v2175
    %v2177 = vsel %vm2166, nan, %v2176
    %v2178 = vand.u32 2147483647, %v308
    %vm2179 = vcmp.le.f32.partialorder %v2178, 0.7853982
    %vm2180 = vcmp.lt.s32.totalorder %v308, 0
    %v2181 = vand.u32 %v308, 2139095040
    %v2182 = vshrl.u32 %v2181, 23
    %v2183 = vsub.s32 %v2182, 127
    %v2184 = vand.u32 2147483647, %v308
    %v2185 = vand.u32 %v2184, 8388607
    %v2186 = vor.u32 %v2185, 8388608
    %v2187 = vsub.s32 0, %v2186
    %v2188 = vadd.s32 %v2183, 1
    %vm2189 = vcmp.gt.s32.totalorder %v2188, 0
    %v2190 = vsel %vm2189, %v2188, 0
    %v2191 = vshrl.u32 %v2190, 5
    %v2192 = vand.u32 %v2190, 31
    %v2193 = vsub.s32 32, %v2192
    %v2194 = vshrl.u32 683565275, %v2193
    %v2195 = vshll.u32 683565275, %v2192
    %v2196 = vshrl.u32 2475754826, %v2193
    %v2197 = vor.u32 %v2195, %v2196
    %v2198 = vshll.u32 2475754826, %v2192
    %v2199 = vshrl.u32 2131351028, %v2193
    %v2200 = vor.u32 %v2198, %v2199
    %v2201 = vshll.u32 2131351028, %v2192
    %v2202 = vshrl.u32 2102212464, %v2193
    %v2203 = vor.u32 %v2201, %v2202
    %v2204 = vshll.u32 2102212464, %v2192
    %v2205 = vshrl.u32 920167782, %v2193
    %v2206 = vor.u32 %v2204, %v2205
    %v2207 = vshll.u32 920167782, %v2192
    %v2208 = vshrl.u32 1326507024, %v2193
    %v2209 = vor.u32 %v2207, %v2208
    %vm2210 = vcmp.lt.s32.totalorder %v2191, 1
    %vm2211 = vcmp.lt.s32.totalorder %v2191, 2
    %vm2212 = vcmp.lt.s32.totalorder %v2191, 3
    %vm2213 = vcmp.lt.s32.totalorder %v2191, 4
    %v2214 = vsel %vm2210, %v2194, %v2197
    %v2215 = vsel %vm2213, %v2203, 2102212464
    %v2216 = vsel %vm2212, %v2200, %v2215
    %v2217 = vsel %vm2211, %v2214, %v2216
    %v2218 = vsel %vm2210, %v2197, %v2200
    %v2219 = vsel %vm2213, %v2206, 920167782
    %v2220 = vsel %vm2212, %v2203, %v2219
    %v2221 = vsel %vm2211, %v2218, %v2220
    %v2222 = vsel %vm2210, %v2200, %v2203
    %v2223 = vsel %vm2213, %v2209, 1326507024
    %v2224 = vsel %vm2212, %v2206, %v2223
    %v2225 = vsel %vm2211, %v2222, %v2224
    %v2226 = vshll.u32 %v2186, 8
    %v2227 = vmul.u32.u64.compose %v2226, %v2225
    %v2228 = vextract.low.u32 %v2227
    %v2229 = vextract.high.u32 %v2227
    %v2230 = vmul.u32.u64.compose %v2226, %v2221
    %v2231 = vextract.low.u32 %v2230
    %v2232 = vextract.high.u32 %v2230
    %v2233 = vmul.u32 %v2226, %v2217
    %v2234 = vadd.s32 %v2229, %v2231
    %vm2235 = vc.u32 %v2229, %v2231
    %v2236 = vadd.s32 %v2232, 1
    %v2237 = vsel %vm2235, %v2236, %v2232
    %v2238 = vadd.s32 %v2233, %v2237
    %v2239 = vadd.s32 %v2238, 536870912
    %v2240 = vshrl.u32 %v2239, 30
    %v2241 = vshll.u32 %v2240, 30
    %v2242 = vsub.s32 %v2238, %v2241
    %vm2243 = vcmp.lt.s32.totalorder %v2242, 0
    %v2244 = vsub.s32 0, %v2242
    %v2245 = vsel %vm2243, %v2244, %v2242
    %v2246 = vclz %v2245
    %v2247 = vsub.s32 %v2246, 2
    %vm2248 = vcmp.gt.s32.totalorder 0, %v2247
    %v2249 = vsel %vm2248, 0, %v2247
    %v2250 = vsub.s32 32, %v2249
    %v2251 = vshll.u32 %v2242, %v2249
    %v2252 = vshrl.u32 %v2234, %v2250
    %v2253 = vor.u32 %v2251, %v2252
    %v2254 = vsub.s32 4294967266, %v2249
    %v2255 = vadd.s32 %v2254, 127
    %v2256 = vshll.u32 %v2255, 23
    %v2257 = vor.u32 4788187, %v2256
    %v2258 = vand.u32 2147483647, %v2257
    %v2260 = vcvt.s32.f32 %v2253
    %v2261 = vmul.f32 %v2260, %v2258
    %v2262 = vxor.u32 %v2261, 2147483648
    %v2263 = vsel %vm2180, %v2262, %v2261
    %v2264 = vsub.s32 4, %v2240
    %v2265 = vsel %vm2180, %v2264, %v2240
    %v2266 = vsel %vm2179, %v308, %v2263
    %v2267 = vsel %vm2179, 0, %v2265
    %v2268 = vcosq.f32.pop %v2266
    %v2269 = vsinq.f32.pop %v2266
    %vm2270 = vweird.f32 %v308
    %v2271 = vadd.s32 %v2267, 3
    %v2272 = vand.u32 %v2271, 3
    %vm2273 = vcmp.lt.s32.totalorder %v2272, 2
    %vm2274 = vcmp.eq.s32.totalorder %v2272, 0
    %v2275 = vxor.u32 %v2269, 2147483648
    %v2276 = vsel %vm2274, %v2268, %v2275
    %vm2277 = vcmp.eq.s32.totalorder %v2272, 2
    %v2278 = vxor.u32 %v2268, 2147483648
    %v2279 = vsel %vm2277, %v2278, %v2269
    %v2280 = vsel %vm2273, %v2276, %v2279
    %v2281 = vsel %vm2270, nan, %v2280
    %v2282 = vand.u32 2147483647, %v309
    %vm2283 = vcmp.le.f32.partialorder %v2282, 0.7853982
    %vm2284 = vcmp.lt.s32.totalorder %v309, 0
    %v2285 = vand.u32 %v309, 2139095040
    %v2286 = vshrl.u32 %v2285, 23
    %v2287 = vsub.s32 %v2286, 127
    %v2288 = vand.u32 2147483647, %v309
    %v2289 = vand.u32 %v2288, 8388607
    %v2290 = vor.u32 %v2289, 8388608
    %v2291 = vsub.s32 0, %v2290
    %v2292 = vadd.s32 %v2287, 1
    %vm2293 = vcmp.gt.s32.totalorder %v2292, 0
    %v2294 = vsel %vm2293, %v2292, 0
    %v2295 = vshrl.u32 %v2294, 5
    %v2296 = vand.u32 %v2294, 31
    %v2297 = vsub.s32 32, %v2296
    %v2298 = vshrl.u32 683565275, %v2297
    %v2299 = vshll.u32 683565275, %v2296
    %v2300 = vshrl.u32 2475754826, %v2297
    %v2301 = vor.u32 %v2299, %v2300
    %v2302 = vshll.u32 2475754826, %v2296
    %v2303 = vshrl.u32 2131351028, %v2297
    %v2304 = vor.u32 %v2302, %v2303
    %v2305 = vshll.u32 2131351028, %v2296
    %v2306 = vshrl.u32 2102212464, %v2297
    %v2307 = vor.u32 %v2305, %v2306
    %v2308 = vshll.u32 2102212464, %v2296
    %v2309 = vshrl.u32 920167782, %v2297
    %v2310 = vor.u32 %v2308, %v2309
    %v2311 = vshll.u32 920167782, %v2296
    %v2312 = vshrl.u32 1326507024, %v2297
    %v2313 = vor.u32 %v2311, %v2312
    %vm2314 = vcmp.lt.s32.totalorder %v2295, 1
    %vm2315 = vcmp.lt.s32.totalorder %v2295, 2
    %vm2316 = vcmp.lt.s32.totalorder %v2295, 3
    %vm2317 = vcmp.lt.s32.totalorder %v2295, 4
    %v2318 = vsel %vm2314, %v2298, %v2301
    %v2319 = vsel %vm2317, %v2307, 2102212464
    %v2320 = vsel %vm2316, %v2304, %v2319
    %v2321 = vsel %vm2315, %v2318, %v2320
    %v2322 = vsel %vm2314, %v2301, %v2304
    %v2323 = vsel %vm2317, %v2310, 920167782
    %v2324 = vsel %vm2316, %v2307, %v2323
    %v2325 = vsel %vm2315, %v2322, %v2324
    %v2326 = vsel %vm2314, %v2304, %v2307
    %v2327 = vsel %vm2317, %v2313, 1326507024
    %v2328 = vsel %vm2316, %v2310, %v2327
    %v2329 = vsel %vm2315, %v2326, %v2328
    %v2330 = vshll.u32 %v2290, 8
    %v2331 = vmul.u32.u64.compose %v2330, %v2329
    %v2332 = vextract.low.u32 %v2331
    %v2333 = vextract.high.u32 %v2331
    %v2334 = vmul.u32.u64.compose %v2330, %v2325
    %v2335 = vextract.low.u32 %v2334
    %v2336 = vextract.high.u32 %v2334
    %v2337 = vmul.u32 %v2330, %v2321
    %v2338 = vadd.s32 %v2333, %v2335
    %vm2339 = vc.u32 %v2333, %v2335
    %v2340 = vadd.s32 %v2336, 1
    %v2341 = vsel %vm2339, %v2340, %v2336
    %v2342 = vadd.s32 %v2337, %v2341
    %v2343 = vadd.s32 %v2342, 536870912
    %v2344 = vshrl.u32 %v2343, 30
    %v2345 = vshll.u32 %v2344, 30
    %v2346 = vsub.s32 %v2342, %v2345
    %vm2347 = vcmp.lt.s32.totalorder %v2346, 0
    %v2348 = vsub.s32 0, %v2346
    %v2349 = vsel %vm2347, %v2348, %v2346
    %v2350 = vclz %v2349
    %v2351 = vsub.s32 %v2350, 2
    %vm2352 = vcmp.gt.s32.totalorder 0, %v2351
    %v2353 = vsel %vm2352, 0, %v2351
    %v2354 = vsub.s32 32, %v2353
    %v2355 = vshll.u32 %v2346, %v2353
    %v2356 = vshrl.u32 %v2338, %v2354
    %v2357 = vor.u32 %v2355, %v2356
    %v2358 = vsub.s32 4294967266, %v2353
    %v2359 = vadd.s32 %v2358, 127
    %v2360 = vshll.u32 %v2359, 23
    %v2361 = vor.u32 4788187, %v2360
    %v2362 = vand.u32 2147483647, %v2361
    %v2364 = vcvt.s32.f32 %v2357
    %v2365 = vmul.f32 %v2364, %v2362
    %v2366 = vxor.u32 %v2365, 2147483648
    %v2367 = vsel %vm2284, %v2366, %v2365
    %v2368 = vsub.s32 4, %v2344
    %v2369 = vsel %vm2284, %v2368, %v2344
    %v2370 = vsel %vm2283, %v309, %v2367
    %v2371 = vsel %vm2283, 0, %v2369
    %v2372 = vcosq.f32.pop %v2370
    %v2373 = vsinq.f32.pop %v2370
    %vm2374 = vweird.f32 %v309
    %v2375 = vadd.s32 %v2371, 3
    %v2376 = vand.u32 %v2375, 3
    %vm2377 = vcmp.lt.s32.totalorder %v2376, 2
    %vm2378 = vcmp.eq.s32.totalorder %v2376, 0
    %v2379 = vxor.u32 %v2373, 2147483648
    %v2380 = vsel %vm2378, %v2372, %v2379
    %vm2381 = vcmp.eq.s32.totalorder %v2376, 2
    %v2382 = vxor.u32 %v2372, 2147483648
    %v2383 = vsel %vm2381, %v2382, %v2373
    %v2384 = vsel %vm2377, %v2380, %v2383
    %v2385 = vsel %vm2374, nan, %v2384
    %v2386 = vand.u32 2147483647, %v310
    %vm2387 = vcmp.le.f32.partialorder %v2386, 0.7853982
    %vm2388 = vcmp.lt.s32.totalorder %v310, 0
    %v2389 = vand.u32 %v310, 2139095040
    %v2390 = vshrl.u32 %v2389, 23
    %v2391 = vsub.s32 %v2390, 127
    %v2392 = vand.u32 2147483647, %v310
    %v2393 = vand.u32 %v2392, 8388607
    %v2394 = vor.u32 %v2393, 8388608
    %v2395 = vsub.s32 0, %v2394
    %v2396 = vadd.s32 %v2391, 1
    %vm2397 = vcmp.gt.s32.totalorder %v2396, 0
    %v2398 = vsel %vm2397, %v2396, 0
    %v2399 = vshrl.u32 %v2398, 5
    %v2400 = vand.u32 %v2398, 31
    %v2401 = vsub.s32 32, %v2400
    %v2402 = vshrl.u32 683565275, %v2401
    %v2403 = vshll.u32 683565275, %v2400
    %v2404 = vshrl.u32 2475754826, %v2401
    %v2405 = vor.u32 %v2403, %v2404
    %v2406 = vshll.u32 2475754826, %v2400
    %v2407 = vshrl.u32 2131351028, %v2401
    %v2408 = vor.u32 %v2406, %v2407
    %v2409 = vshll.u32 2131351028, %v2400
    %v2410 = vshrl.u32 2102212464, %v2401
    %v2411 = vor.u32 %v2409, %v2410
    %v2412 = vshll.u32 2102212464, %v2400
    %v2413 = vshrl.u32 920167782, %v2401
    %v2414 = vor.u32 %v2412, %v2413
    %v2415 = vshll.u32 920167782, %v2400
    %v2416 = vshrl.u32 1326507024, %v2401
    %v2417 = vor.u32 %v2415, %v2416
    %vm2418 = vcmp.lt.s32.totalorder %v2399, 1
    %vm2419 = vcmp.lt.s32.totalorder %v2399, 2
    %vm2420 = vcmp.lt.s32.totalorder %v2399, 3
    %vm2421 = vcmp.lt.s32.totalorder %v2399, 4
    %v2422 = vsel %vm2418, %v2402, %v2405
    %v2423 = vsel %vm2421, %v2411, 2102212464
    %v2424 = vsel %vm2420, %v2408, %v2423
    %v2425 = vsel %vm2419, %v2422, %v2424
    %v2426 = vsel %vm2418, %v2405, %v2408
    %v2427 = vsel %vm2421, %v2414, 920167782
    %v2428 = vsel %vm2420, %v2411, %v2427
    %v2429 = vsel %vm2419, %v2426, %v2428
    %v2430 = vsel %vm2418, %v2408, %v2411
    %v2431 = vsel %vm2421, %v2417, 1326507024
    %v2432 = vsel %vm2420, %v2414, %v2431
    %v2433 = vsel %vm2419, %v2430, %v2432
    %v2434 = vshll.u32 %v2394, 8
    %v2435 = vmul.u32.u64.compose %v2434, %v2433
    %v2436 = vextract.low.u32 %v2435
    %v2437 = vextract.high.u32 %v2435
    %v2438 = vmul.u32.u64.compose %v2434, %v2429
    %v2439 = vextract.low.u32 %v2438
    %v2440 = vextract.high.u32 %v2438
    %v2441 = vmul.u32 %v2434, %v2425
    %v2442 = vadd.s32 %v2437, %v2439
    %vm2443 = vc.u32 %v2437, %v2439
    %v2444 = vadd.s32 %v2440, 1
    %v2445 = vsel %vm2443, %v2444, %v2440
    %v2446 = vadd.s32 %v2441, %v2445
    %v2447 = vadd.s32 %v2446, 536870912
    %v2448 = vshrl.u32 %v2447, 30
    %v2449 = vshll.u32 %v2448, 30
    %v2450 = vsub.s32 %v2446, %v2449
    %vm2451 = vcmp.lt.s32.totalorder %v2450, 0
    %v2452 = vsub.s32 0, %v2450
    %v2453 = vsel %vm2451, %v2452, %v2450
    %v2454 = vclz %v2453
    %v2455 = vsub.s32 %v2454, 2
    %vm2456 = vcmp.gt.s32.totalorder 0, %v2455
    %v2457 = vsel %vm2456, 0, %v2455
    %v2458 = vsub.s32 32, %v2457
    %v2459 = vshll.u32 %v2450, %v2457
    %v2460 = vshrl.u32 %v2442, %v2458
    %v2461 = vor.u32 %v2459, %v2460
    %v2462 = vsub.s32 4294967266, %v2457
    %v2463 = vadd.s32 %v2462, 127
    %v2464 = vshll.u32 %v2463, 23
    %v2465 = vor.u32 4788187, %v2464
    %v2466 = vand.u32 2147483647, %v2465
    %v2468 = vcvt.s32.f32 %v2461
    %v2469 = vmul.f32 %v2468, %v2466
    %v2470 = vxor.u32 %v2469, 2147483648
    %v2471 = vsel %vm2388, %v2470, %v2469
    %v2472 = vsub.s32 4, %v2448
    %v2473 = vsel %vm2388, %v2472, %v2448
    %v2474 = vsel %vm2387, %v310, %v2471
    %v2475 = vsel %vm2387, 0, %v2473
    %v2476 = vcosq.f32.pop %v2474
    %v2477 = vsinq.f32.pop %v2474
    %vm2478 = vweird.f32 %v310
    %v2479 = vadd.s32 %v2475, 3
    %v2480 = vand.u32 %v2479, 3
    %vm2481 = vcmp.lt.s32.totalorder %v2480, 2
    %vm2482 = vcmp.eq.s32.totalorder %v2480, 0
    %v2483 = vxor.u32 %v2477, 2147483648
    %v2484 = vsel %vm2482, %v2476, %v2483
    %vm2485 = vcmp.eq.s32.totalorder %v2480, 2
    %v2486 = vxor.u32 %v2476, 2147483648
    %v2487 = vsel %vm2485, %v2486, %v2477
    %v2488 = vsel %vm2481, %v2484, %v2487
    %v2489 = vsel %vm2478, nan, %v2488
    %v2490 = vand.u32 2147483647, %v311
    %vm2491 = vcmp.le.f32.partialorder %v2490, 0.7853982
    %vm2492 = vcmp.lt.s32.totalorder %v311, 0
    %v2493 = vand.u32 %v311, 2139095040
    %v2494 = vshrl.u32 %v2493, 23
    %v2495 = vsub.s32 %v2494, 127
    %v2496 = vand.u32 2147483647, %v311
    %v2497 = vand.u32 %v2496, 8388607
    %v2498 = vor.u32 %v2497, 8388608
    %v2499 = vsub.s32 0, %v2498
    %v2500 = vadd.s32 %v2495, 1
    %vm2501 = vcmp.gt.s32.totalorder %v2500, 0
    %v2502 = vsel %vm2501, %v2500, 0
    %v2503 = vshrl.u32 %v2502, 5
    %v2504 = vand.u32 %v2502, 31
    %v2505 = vsub.s32 32, %v2504
    %v2506 = vshrl.u32 683565275, %v2505
    %v2507 = vshll.u32 683565275, %v2504
    %v2508 = vshrl.u32 2475754826, %v2505
    %v2509 = vor.u32 %v2507, %v2508
    %v2510 = vshll.u32 2475754826, %v2504
    %v2511 = vshrl.u32 2131351028, %v2505
    %v2512 = vor.u32 %v2510, %v2511
    %v2513 = vshll.u32 2131351028, %v2504
    %v2514 = vshrl.u32 2102212464, %v2505
    %v2515 = vor.u32 %v2513, %v2514
    %v2516 = vshll.u32 2102212464, %v2504
    %v2517 = vshrl.u32 920167782, %v2505
    %v2518 = vor.u32 %v2516, %v2517
    %v2519 = vshll.u32 920167782, %v2504
    %v2520 = vshrl.u32 1326507024, %v2505
    %v2521 = vor.u32 %v2519, %v2520
    %vm2522 = vcmp.lt.s32.totalorder %v2503, 1
    %vm2523 = vcmp.lt.s32.totalorder %v2503, 2
    %vm2524 = vcmp.lt.s32.totalorder %v2503, 3
    %vm2525 = vcmp.lt.s32.totalorder %v2503, 4
    %v2526 = vsel %vm2522, %v2506, %v2509
    %v2527 = vsel %vm2525, %v2515, 2102212464
    %v2528 = vsel %vm2524, %v2512, %v2527
    %v2529 = vsel %vm2523, %v2526, %v2528
    %v2530 = vsel %vm2522, %v2509, %v2512
    %v2531 = vsel %vm2525, %v2518, 920167782
    %v2532 = vsel %vm2524, %v2515, %v2531
    %v2533 = vsel %vm2523, %v2530, %v2532
    %v2534 = vsel %vm2522, %v2512, %v2515
    %v2535 = vsel %vm2525, %v2521, 1326507024
    %v2536 = vsel %vm2524, %v2518, %v2535
    %v2537 = vsel %vm2523, %v2534, %v2536
    %v2538 = vshll.u32 %v2498, 8
    %v2539 = vmul.u32.u64.compose %v2538, %v2537
    %v2540 = vextract.low.u32 %v2539
    %v2541 = vextract.high.u32 %v2539
    %v2542 = vmul.u32.u64.compose %v2538, %v2533
    %v2543 = vextract.low.u32 %v2542
    %v2544 = vextract.high.u32 %v2542
    %v2545 = vmul.u32 %v2538, %v2529
    %v2546 = vadd.s32 %v2541, %v2543
    %vm2547 = vc.u32 %v2541, %v2543
    %v2548 = vadd.s32 %v2544, 1
    %v2549 = vsel %vm2547, %v2548, %v2544
    %v2550 = vadd.s32 %v2545, %v2549
    %v2551 = vadd.s32 %v2550, 536870912
    %v2552 = vshrl.u32 %v2551, 30
    %v2553 = vshll.u32 %v2552, 30
    %v2554 = vsub.s32 %v2550, %v2553
    %vm2555 = vcmp.lt.s32.totalorder %v2554, 0
    %v2556 = vsub.s32 0, %v2554
    %v2557 = vsel %vm2555, %v2556, %v2554
    %v2558 = vclz %v2557
    %v2559 = vsub.s32 %v2558, 2
    %vm2560 = vcmp.gt.s32.totalorder 0, %v2559
    %v2561 = vsel %vm2560, 0, %v2559
    %v2562 = vsub.s32 32, %v2561
    %v2563 = vshll.u32 %v2554, %v2561
    %v2564 = vshrl.u32 %v2546, %v2562
    %v2565 = vor.u32 %v2563, %v2564
    %v2566 = vsub.s32 4294967266, %v2561
    %v2567 = vadd.s32 %v2566, 127
    %v2568 = vshll.u32 %v2567, 23
    %v2569 = vor.u32 4788187, %v2568
    %v2570 = vand.u32 2147483647, %v2569
    %v2572 = vcvt.s32.f32 %v2565
    %v2573 = vmul.f32 %v2572, %v2570
    %v2574 = vxor.u32 %v2573, 2147483648
    %v2575 = vsel %vm2492, %v2574, %v2573
    %v2576 = vsub.s32 4, %v2552
    %v2577 = vsel %vm2492, %v2576, %v2552
    %v2578 = vsel %vm2491, %v311, %v2575
    %v2579 = vsel %vm2491, 0, %v2577
    %v2580 = vcosq.f32.pop %v2578
    %v2581 = vsinq.f32.pop %v2578
    %vm2582 = vweird.f32 %v311
    %v2583 = vadd.s32 %v2579, 3
    %v2584 = vand.u32 %v2583, 3
    %vm2585 = vcmp.lt.s32.totalorder %v2584, 2
    %vm2586 = vcmp.eq.s32.totalorder %v2584, 0
    %v2587 = vxor.u32 %v2581, 2147483648
    %v2588 = vsel %vm2586, %v2580, %v2587
    %vm2589 = vcmp.eq.s32.totalorder %v2584, 2
    %v2590 = vxor.u32 %v2580, 2147483648
    %v2591 = vsel %vm2589, %v2590, %v2581
    %v2592 = vsel %vm2585, %v2588, %v2591
    %v2593 = vsel %vm2582, nan, %v2592
    %v2594 = vand.u32 2147483647, %v312
    %vm2595 = vcmp.le.f32.partialorder %v2594, 0.7853982
    %vm2596 = vcmp.lt.s32.totalorder %v312, 0
    %v2597 = vand.u32 %v312, 2139095040
    %v2598 = vshrl.u32 %v2597, 23
    %v2599 = vsub.s32 %v2598, 127
    %v2600 = vand.u32 2147483647, %v312
    %v2601 = vand.u32 %v2600, 8388607
    %v2602 = vor.u32 %v2601, 8388608
    %v2603 = vsub.s32 0, %v2602
    %v2604 = vadd.s32 %v2599, 1
    %vm2605 = vcmp.gt.s32.totalorder %v2604, 0
    %v2606 = vsel %vm2605, %v2604, 0
    %v2607 = vshrl.u32 %v2606, 5
    %v2608 = vand.u32 %v2606, 31
    %v2609 = vsub.s32 32, %v2608
    %v2610 = vshrl.u32 683565275, %v2609
    %v2611 = vshll.u32 683565275, %v2608
    %v2612 = vshrl.u32 2475754826, %v2609
    %v2613 = vor.u32 %v2611, %v2612
    %v2614 = vshll.u32 2475754826, %v2608
    %v2615 = vshrl.u32 2131351028, %v2609
    %v2616 = vor.u32 %v2614, %v2615
    %v2617 = vshll.u32 2131351028, %v2608
    %v2618 = vshrl.u32 2102212464, %v2609
    %v2619 = vor.u32 %v2617, %v2618
    %v2620 = vshll.u32 2102212464, %v2608
    %v2621 = vshrl.u32 920167782, %v2609
    %v2622 = vor.u32 %v2620, %v2621
    %v2623 = vshll.u32 920167782, %v2608
    %v2624 = vshrl.u32 1326507024, %v2609
    %v2625 = vor.u32 %v2623, %v2624
    %vm2626 = vcmp.lt.s32.totalorder %v2607, 1
    %vm2627 = vcmp.lt.s32.totalorder %v2607, 2
    %vm2628 = vcmp.lt.s32.totalorder %v2607, 3
    %vm2629 = vcmp.lt.s32.totalorder %v2607, 4
    %v2630 = vsel %vm2626, %v2610, %v2613
    %v2631 = vsel %vm2629, %v2619, 2102212464
    %v2632 = vsel %vm2628, %v2616, %v2631
    %v2633 = vsel %vm2627, %v2630, %v2632
    %v2634 = vsel %vm2626, %v2613, %v2616
    %v2635 = vsel %vm2629, %v2622, 920167782
    %v2636 = vsel %vm2628, %v2619, %v2635
    %v2637 = vsel %vm2627, %v2634, %v2636
    %v2638 = vsel %vm2626, %v2616, %v2619
    %v2639 = vsel %vm2629, %v2625, 1326507024
    %v2640 = vsel %vm2628, %v2622, %v2639
    %v2641 = vsel %vm2627, %v2638, %v2640
    %v2642 = vshll.u32 %v2602, 8
    %v2643 = vmul.u32.u64.compose %v2642, %v2641
    %v2644 = vextract.low.u32 %v2643
    %v2645 = vextract.high.u32 %v2643
    %v2646 = vmul.u32.u64.compose %v2642, %v2637
    %v2647 = vextract.low.u32 %v2646
    %v2648 = vextract.high.u32 %v2646
    %v2649 = vmul.u32 %v2642, %v2633
    %v2650 = vadd.s32 %v2645, %v2647
    %vm2651 = vc.u32 %v2645, %v2647
    %v2652 = vadd.s32 %v2648, 1
    %v2653 = vsel %vm2651, %v2652, %v2648
    %v2654 = vadd.s32 %v2649, %v2653
    %v2655 = vadd.s32 %v2654, 536870912
    %v2656 = vshrl.u32 %v2655, 30
    %v2657 = vshll.u32 %v2656, 30
    %v2658 = vsub.s32 %v2654, %v2657
    %vm2659 = vcmp.lt.s32.totalorder %v2658, 0
    %v2660 = vsub.s32 0, %v2658
    %v2661 = vsel %vm2659, %v2660, %v2658
    %v2662 = vclz %v2661
    %v2663 = vsub.s32 %v2662, 2
    %vm2664 = vcmp.gt.s32.totalorder 0, %v2663
    %v2665 = vsel %vm2664, 0, %v2663
    %v2666 = vsub.s32 32, %v2665
    %v2667 = vshll.u32 %v2658, %v2665
    %v2668 = vshrl.u32 %v2650, %v2666
    %v2669 = vor.u32 %v2667, %v2668
    %v2670 = vsub.s32 4294967266, %v2665
    %v2671 = vadd.s32 %v2670, 127
    %v2672 = vshll.u32 %v2671, 23
    %v2673 = vor.u32 4788187, %v2672
    %v2674 = vand.u32 2147483647, %v2673
    %v2676 = vcvt.s32.f32 %v2669
    %v2677 = vmul.f32 %v2676, %v2674
    %v2678 = vxor.u32 %v2677, 2147483648
    %v2679 = vsel %vm2596, %v2678, %v2677
    %v2680 = vsub.s32 4, %v2656
    %v2681 = vsel %vm2596, %v2680, %v2656
    %v2682 = vsel %vm2595, %v312, %v2679
    %v2683 = vsel %vm2595, 0, %v2681
    %v2684 = vcosq.f32.pop %v2682
    %v2685 = vsinq.f32.pop %v2682
    %vm2686 = vweird.f32 %v312
    %v2687 = vadd.s32 %v2683, 3
    %v2688 = vand.u32 %v2687, 3
    %vm2689 = vcmp.lt.s32.totalorder %v2688, 2
    %vm2690 = vcmp.eq.s32.totalorder %v2688, 0
    %v2691 = vxor.u32 %v2685, 2147483648
    %v2692 = vsel %vm2690, %v2684, %v2691
    %vm2693 = vcmp.eq.s32.totalorder %v2688, 2
    %v2694 = vxor.u32 %v2684, 2147483648
    %v2695 = vsel %vm2693, %v2694, %v2685
    %v2696 = vsel %vm2689, %v2692, %v2695
    %v2697 = vsel %vm2686, nan, %v2696
    %v2698 = vand.u32 2147483647, %v313
    %vm2699 = vcmp.le.f32.partialorder %v2698, 0.7853982
    %vm2700 = vcmp.lt.s32.totalorder %v313, 0
    %v2701 = vand.u32 %v313, 2139095040
    %v2702 = vshrl.u32 %v2701, 23
    %v2703 = vsub.s32 %v2702, 127
    %v2704 = vand.u32 2147483647, %v313
    %v2705 = vand.u32 %v2704, 8388607
    %v2706 = vor.u32 %v2705, 8388608
    %v2707 = vsub.s32 0, %v2706
    %v2708 = vadd.s32 %v2703, 1
    %vm2709 = vcmp.gt.s32.totalorder %v2708, 0
    %v2710 = vsel %vm2709, %v2708, 0
    %v2711 = vshrl.u32 %v2710, 5
    %v2712 = vand.u32 %v2710, 31
    %v2713 = vsub.s32 32, %v2712
    %v2714 = vshrl.u32 683565275, %v2713
    %v2715 = vshll.u32 683565275, %v2712
    %v2716 = vshrl.u32 2475754826, %v2713
    %v2717 = vor.u32 %v2715, %v2716
    %v2718 = vshll.u32 2475754826, %v2712
    %v2719 = vshrl.u32 2131351028, %v2713
    %v2720 = vor.u32 %v2718, %v2719
    %v2721 = vshll.u32 2131351028, %v2712
    %v2722 = vshrl.u32 2102212464, %v2713
    %v2723 = vor.u32 %v2721, %v2722
    %v2724 = vshll.u32 2102212464, %v2712
    %v2725 = vshrl.u32 920167782, %v2713
    %v2726 = vor.u32 %v2724, %v2725
    %v2727 = vshll.u32 920167782, %v2712
    %v2728 = vshrl.u32 1326507024, %v2713
    %v2729 = vor.u32 %v2727, %v2728
    %vm2730 = vcmp.lt.s32.totalorder %v2711, 1
    %vm2731 = vcmp.lt.s32.totalorder %v2711, 2
    %vm2732 = vcmp.lt.s32.totalorder %v2711, 3
    %vm2733 = vcmp.lt.s32.totalorder %v2711, 4
    %v2734 = vsel %vm2730, %v2714, %v2717
    %v2735 = vsel %vm2733, %v2723, 2102212464
    %v2736 = vsel %vm2732, %v2720, %v2735
    %v2737 = vsel %vm2731, %v2734, %v2736
    %v2738 = vsel %vm2730, %v2717, %v2720
    %v2739 = vsel %vm2733, %v2726, 920167782
    %v2740 = vsel %vm2732, %v2723, %v2739
    %v2741 = vsel %vm2731, %v2738, %v2740
    %v2742 = vsel %vm2730, %v2720, %v2723
    %v2743 = vsel %vm2733, %v2729, 1326507024
    %v2744 = vsel %vm2732, %v2726, %v2743
    %v2745 = vsel %vm2731, %v2742, %v2744
    %v2746 = vshll.u32 %v2706, 8
    %v2747 = vmul.u32.u64.compose %v2746, %v2745
    %v2748 = vextract.low.u32 %v2747
    %v2749 = vextract.high.u32 %v2747
    %v2750 = vmul.u32.u64.compose %v2746, %v2741
    %v2751 = vextract.low.u32 %v2750
    %v2752 = vextract.high.u32 %v2750
    %v2753 = vmul.u32 %v2746, %v2737
    %v2754 = vadd.s32 %v2749, %v2751
    %vm2755 = vc.u32 %v2749, %v2751
    %v2756 = vadd.s32 %v2752, 1
    %v2757 = vsel %vm2755, %v2756, %v2752
    %v2758 = vadd.s32 %v2753, %v2757
    %v2759 = vadd.s32 %v2758, 536870912
    %v2760 = vshrl.u32 %v2759, 30
    %v2761 = vshll.u32 %v2760, 30
    %v2762 = vsub.s32 %v2758, %v2761
    %vm2763 = vcmp.lt.s32.totalorder %v2762, 0
    %v2764 = vsub.s32 0, %v2762
    %v2765 = vsel %vm2763, %v2764, %v2762
    %v2766 = vclz %v2765
    %v2767 = vsub.s32 %v2766, 2
    %vm2768 = vcmp.gt.s32.totalorder 0, %v2767
    %v2769 = vsel %vm2768, 0, %v2767
    %v2770 = vsub.s32 32, %v2769
    %v2771 = vshll.u32 %v2762, %v2769
    %v2772 = vshrl.u32 %v2754, %v2770
    %v2773 = vor.u32 %v2771, %v2772
    %v2774 = vsub.s32 4294967266, %v2769
    %v2775 = vadd.s32 %v2774, 127
    %v2776 = vshll.u32 %v2775, 23
    %v2777 = vor.u32 4788187, %v2776
    %v2778 = vand.u32 2147483647, %v2777
    %v2780 = vcvt.s32.f32 %v2773
    %v2781 = vmul.f32 %v2780, %v2778
    %v2782 = vxor.u32 %v2781, 2147483648
    %v2783 = vsel %vm2700, %v2782, %v2781
    %v2784 = vsub.s32 4, %v2760
    %v2785 = vsel %vm2700, %v2784, %v2760
    %v2786 = vsel %vm2699, %v313, %v2783
    %v2787 = vsel %vm2699, 0, %v2785
    %v2788 = vcosq.f32.pop %v2786
    %v2789 = vsinq.f32.pop %v2786
    %vm2790 = vweird.f32 %v313
    %v2791 = vadd.s32 %v2787, 3
    %v2792 = vand.u32 %v2791, 3
    %vm2793 = vcmp.lt.s32.totalorder %v2792, 2
    %vm2794 = vcmp.eq.s32.totalorder %v2792, 0
    %v2795 = vxor.u32 %v2789, 2147483648
    %v2796 = vsel %vm2794, %v2788, %v2795
    %vm2797 = vcmp.eq.s32.totalorder %v2792, 2
    %v2798 = vxor.u32 %v2788, 2147483648
    %v2799 = vsel %vm2797, %v2798, %v2789
    %v2800 = vsel %vm2793, %v2796, %v2799
    %v2801 = vsel %vm2790, nan, %v2800
    %v2802 = vand.u32 2147483647, %v314
    %vm2803 = vcmp.le.f32.partialorder %v2802, 0.7853982
    %vm2804 = vcmp.lt.s32.totalorder %v314, 0
    %v2805 = vand.u32 %v314, 2139095040
    %v2806 = vshrl.u32 %v2805, 23
    %v2807 = vsub.s32 %v2806, 127
    %v2808 = vand.u32 2147483647, %v314
    %v2809 = vand.u32 %v2808, 8388607
    %v2810 = vor.u32 %v2809, 8388608
    %v2811 = vsub.s32 0, %v2810
    %v2812 = vadd.s32 %v2807, 1
    %vm2813 = vcmp.gt.s32.totalorder %v2812, 0
    %v2814 = vsel %vm2813, %v2812, 0
    %v2815 = vshrl.u32 %v2814, 5
    %v2816 = vand.u32 %v2814, 31
    %v2817 = vsub.s32 32, %v2816
    %v2818 = vshrl.u32 683565275, %v2817
    %v2819 = vshll.u32 683565275, %v2816
    %v2820 = vshrl.u32 2475754826, %v2817
    %v2821 = vor.u32 %v2819, %v2820
    %v2822 = vshll.u32 2475754826, %v2816
    %v2823 = vshrl.u32 2131351028, %v2817
    %v2824 = vor.u32 %v2822, %v2823
    %v2825 = vshll.u32 2131351028, %v2816
    %v2826 = vshrl.u32 2102212464, %v2817
    %v2827 = vor.u32 %v2825, %v2826
    %v2828 = vshll.u32 2102212464, %v2816
    %v2829 = vshrl.u32 920167782, %v2817
    %v2830 = vor.u32 %v2828, %v2829
    %v2831 = vshll.u32 920167782, %v2816
    %v2832 = vshrl.u32 1326507024, %v2817
    %v2833 = vor.u32 %v2831, %v2832
    %vm2834 = vcmp.lt.s32.totalorder %v2815, 1
    %vm2835 = vcmp.lt.s32.totalorder %v2815, 2
    %vm2836 = vcmp.lt.s32.totalorder %v2815, 3
    %vm2837 = vcmp.lt.s32.totalorder %v2815, 4
    %v2838 = vsel %vm2834, %v2818, %v2821
    %v2839 = vsel %vm2837, %v2827, 2102212464
    %v2840 = vsel %vm2836, %v2824, %v2839
    %v2841 = vsel %vm2835, %v2838, %v2840
    %v2842 = vsel %vm2834, %v2821, %v2824
    %v2843 = vsel %vm2837, %v2830, 920167782
    %v2844 = vsel %vm2836, %v2827, %v2843
    %v2845 = vsel %vm2835, %v2842, %v2844
    %v2846 = vsel %vm2834, %v2824, %v2827
    %v2847 = vsel %vm2837, %v2833, 1326507024
    %v2848 = vsel %vm2836, %v2830, %v2847
    %v2849 = vsel %vm2835, %v2846, %v2848
    %v2850 = vshll.u32 %v2810, 8
    %v2851 = vmul.u32.u64.compose %v2850, %v2849
    %v2852 = vextract.low.u32 %v2851
    %v2853 = vextract.high.u32 %v2851
    %v2854 = vmul.u32.u64.compose %v2850, %v2845
    %v2855 = vextract.low.u32 %v2854
    %v2856 = vextract.high.u32 %v2854
    %v2857 = vmul.u32 %v2850, %v2841
    %v2858 = vadd.s32 %v2853, %v2855
    %vm2859 = vc.u32 %v2853, %v2855
    %v2860 = vadd.s32 %v2856, 1
    %v2861 = vsel %vm2859, %v2860, %v2856
    %v2862 = vadd.s32 %v2857, %v2861
    %v2863 = vadd.s32 %v2862, 536870912
    %v2864 = vshrl.u32 %v2863, 30
    %v2865 = vshll.u32 %v2864, 30
    %v2866 = vsub.s32 %v2862, %v2865
    %vm2867 = vcmp.lt.s32.totalorder %v2866, 0
    %v2868 = vsub.s32 0, %v2866
    %v2869 = vsel %vm2867, %v2868, %v2866
    %v2870 = vclz %v2869
    %v2871 = vsub.s32 %v2870, 2
    %vm2872 = vcmp.gt.s32.totalorder 0, %v2871
    %v2873 = vsel %vm2872, 0, %v2871
    %v2874 = vsub.s32 32, %v2873
    %v2875 = vshll.u32 %v2866, %v2873
    %v2876 = vshrl.u32 %v2858, %v2874
    %v2877 = vor.u32 %v2875, %v2876
    %v2878 = vsub.s32 4294967266, %v2873
    %v2879 = vadd.s32 %v2878, 127
    %v2880 = vshll.u32 %v2879, 23
    %v2881 = vor.u32 4788187, %v2880
    %v2882 = vand.u32 2147483647, %v2881
    %v2884 = vcvt.s32.f32 %v2877
    %v2885 = vmul.f32 %v2884, %v2882
    %v2886 = vxor.u32 %v2885, 2147483648
    %v2887 = vsel %vm2804, %v2886, %v2885
    %v2888 = vsub.s32 4, %v2864
    %v2889 = vsel %vm2804, %v2888, %v2864
    %v2890 = vsel %vm2803, %v314, %v2887
    %v2891 = vsel %vm2803, 0, %v2889
    %v2892 = vcosq.f32.pop %v2890
    %v2893 = vsinq.f32.pop %v2890
    %vm2894 = vweird.f32 %v314
    %v2895 = vadd.s32 %v2891, 3
    %v2896 = vand.u32 %v2895, 3
    %vm2897 = vcmp.lt.s32.totalorder %v2896, 2
    %vm2898 = vcmp.eq.s32.totalorder %v2896, 0
    %v2899 = vxor.u32 %v2893, 2147483648
    %v2900 = vsel %vm2898, %v2892, %v2899
    %vm2901 = vcmp.eq.s32.totalorder %v2896, 2
    %v2902 = vxor.u32 %v2892, 2147483648
    %v2903 = vsel %vm2901, %v2902, %v2893
    %v2904 = vsel %vm2897, %v2900, %v2903
    %v2905 = vsel %vm2894, nan, %v2904
    %v2906 = vand.u32 2147483647, %v315
    %vm2907 = vcmp.le.f32.partialorder %v2906, 0.7853982
    %vm2908 = vcmp.lt.s32.totalorder %v315, 0
    %v2909 = vand.u32 %v315, 2139095040
    %v2910 = vshrl.u32 %v2909, 23
    %v2911 = vsub.s32 %v2910, 127
    %v2912 = vand.u32 2147483647, %v315
    %v2913 = vand.u32 %v2912, 8388607
    %v2914 = vor.u32 %v2913, 8388608
    %v2915 = vsub.s32 0, %v2914
    %v2916 = vadd.s32 %v2911, 1
    %vm2917 = vcmp.gt.s32.totalorder %v2916, 0
    %v2918 = vsel %vm2917, %v2916, 0
    %v2919 = vshrl.u32 %v2918, 5
    %v2920 = vand.u32 %v2918, 31
    %v2921 = vsub.s32 32, %v2920
    %v2922 = vshrl.u32 683565275, %v2921
    %v2923 = vshll.u32 683565275, %v2920
    %v2924 = vshrl.u32 2475754826, %v2921
    %v2925 = vor.u32 %v2923, %v2924
    %v2926 = vshll.u32 2475754826, %v2920
    %v2927 = vshrl.u32 2131351028, %v2921
    %v2928 = vor.u32 %v2926, %v2927
    %v2929 = vshll.u32 2131351028, %v2920
    %v2930 = vshrl.u32 2102212464, %v2921
    %v2931 = vor.u32 %v2929, %v2930
    %v2932 = vshll.u32 2102212464, %v2920
    %v2933 = vshrl.u32 920167782, %v2921
    %v2934 = vor.u32 %v2932, %v2933
    %v2935 = vshll.u32 920167782, %v2920
    %v2936 = vshrl.u32 1326507024, %v2921
    %v2937 = vor.u32 %v2935, %v2936
    %vm2938 = vcmp.lt.s32.totalorder %v2919, 1
    %vm2939 = vcmp.lt.s32.totalorder %v2919, 2
    %vm2940 = vcmp.lt.s32.totalorder %v2919, 3
    %vm2941 = vcmp.lt.s32.totalorder %v2919, 4
    %v2942 = vsel %vm2938, %v2922, %v2925
    %v2943 = vsel %vm2941, %v2931, 2102212464
    %v2944 = vsel %vm2940, %v2928, %v2943
    %v2945 = vsel %vm2939, %v2942, %v2944
    %v2946 = vsel %vm2938, %v2925, %v2928
    %v2947 = vsel %vm2941, %v2934, 920167782
    %v2948 = vsel %vm2940, %v2931, %v2947
    %v2949 = vsel %vm2939, %v2946, %v2948
    %v2950 = vsel %vm2938, %v2928, %v2931
    %v2951 = vsel %vm2941, %v2937, 1326507024
    %v2952 = vsel %vm2940, %v2934, %v2951
    %v2953 = vsel %vm2939, %v2950, %v2952
    %v2954 = vshll.u32 %v2914, 8
    %v2955 = vmul.u32.u64.compose %v2954, %v2953
    %v2956 = vextract.low.u32 %v2955
    %v2957 = vextract.high.u32 %v2955
    %v2958 = vmul.u32.u64.compose %v2954, %v2949
    %v2959 = vextract.low.u32 %v2958
    %v2960 = vextract.high.u32 %v2958
    %v2961 = vmul.u32 %v2954, %v2945
    %v2962 = vadd.s32 %v2957, %v2959
    %vm2963 = vc.u32 %v2957, %v2959
    %v2964 = vadd.s32 %v2960, 1
    %v2965 = vsel %vm2963, %v2964, %v2960
    %v2966 = vadd.s32 %v2961, %v2965
    %v2967 = vadd.s32 %v2966, 536870912
    %v2968 = vshrl.u32 %v2967, 30
    %v2969 = vshll.u32 %v2968, 30
    %v2970 = vsub.s32 %v2966, %v2969
    %vm2971 = vcmp.lt.s32.totalorder %v2970, 0
    %v2972 = vsub.s32 0, %v2970
    %v2973 = vsel %vm2971, %v2972, %v2970
    %v2974 = vclz %v2973
    %v2975 = vsub.s32 %v2974, 2
    %vm2976 = vcmp.gt.s32.totalorder 0, %v2975
    %v2977 = vsel %vm2976, 0, %v2975
    %v2978 = vsub.s32 32, %v2977
    %v2979 = vshll.u32 %v2970, %v2977
    %v2980 = vshrl.u32 %v2962, %v2978
    %v2981 = vor.u32 %v2979, %v2980
    %v2982 = vsub.s32 4294967266, %v2977
    %v2983 = vadd.s32 %v2982, 127
    %v2984 = vshll.u32 %v2983, 23
    %v2985 = vor.u32 4788187, %v2984
    %v2986 = vand.u32 2147483647, %v2985
    %v2988 = vcvt.s32.f32 %v2981
    %v2989 = vmul.f32 %v2988, %v2986
    %v2990 = vxor.u32 %v2989, 2147483648
    %v2991 = vsel %vm2908, %v2990, %v2989
    %v2992 = vsub.s32 4, %v2968
    %v2993 = vsel %vm2908, %v2992, %v2968
    %v2994 = vsel %vm2907, %v315, %v2991
    %v2995 = vsel %vm2907, 0, %v2993
    %v2996 = vcosq.f32.pop %v2994
    %v2997 = vsinq.f32.pop %v2994
    %vm2998 = vweird.f32 %v315
    %v2999 = vadd.s32 %v2995, 3
    %v3000 = vand.u32 %v2999, 3
    %vm3001 = vcmp.lt.s32.totalorder %v3000, 2
    %vm3002 = vcmp.eq.s32.totalorder %v3000, 0
    %v3003 = vxor.u32 %v2997, 2147483648
    %v3004 = vsel %vm3002, %v2996, %v3003
    %vm3005 = vcmp.eq.s32.totalorder %v3000, 2
    %v3006 = vxor.u32 %v2996, 2147483648
    %v3007 = vsel %vm3005, %v3006, %v2997
    %v3008 = vsel %vm3001, %v3004, %v3007
    %v3009 = vsel %vm2998, nan, %v3008
    %v3010 = vand.u32 2147483647, %v316
    %vm3011 = vcmp.le.f32.partialorder %v3010, 0.7853982
    %vm3012 = vcmp.lt.s32.totalorder %v316, 0
    %v3013 = vand.u32 %v316, 2139095040
    %v3014 = vshrl.u32 %v3013, 23
    %v3015 = vsub.s32 %v3014, 127
    %v3016 = vand.u32 2147483647, %v316
    %v3017 = vand.u32 %v3016, 8388607
    %v3018 = vor.u32 %v3017, 8388608
    %v3019 = vsub.s32 0, %v3018
    %v3020 = vadd.s32 %v3015, 1
    %vm3021 = vcmp.gt.s32.totalorder %v3020, 0
    %v3022 = vsel %vm3021, %v3020, 0
    %v3023 = vshrl.u32 %v3022, 5
    %v3024 = vand.u32 %v3022, 31
    %v3025 = vsub.s32 32, %v3024
    %v3026 = vshrl.u32 683565275, %v3025
    %v3027 = vshll.u32 683565275, %v3024
    %v3028 = vshrl.u32 2475754826, %v3025
    %v3029 = vor.u32 %v3027, %v3028
    %v3030 = vshll.u32 2475754826, %v3024
    %v3031 = vshrl.u32 2131351028, %v3025
    %v3032 = vor.u32 %v3030, %v3031
    %v3033 = vshll.u32 2131351028, %v3024
    %v3034 = vshrl.u32 2102212464, %v3025
    %v3035 = vor.u32 %v3033, %v3034
    %v3036 = vshll.u32 2102212464, %v3024
    %v3037 = vshrl.u32 920167782, %v3025
    %v3038 = vor.u32 %v3036, %v3037
    %v3039 = vshll.u32 920167782, %v3024
    %v3040 = vshrl.u32 1326507024, %v3025
    %v3041 = vor.u32 %v3039, %v3040
    %vm3042 = vcmp.lt.s32.totalorder %v3023, 1
    %vm3043 = vcmp.lt.s32.totalorder %v3023, 2
    %vm3044 = vcmp.lt.s32.totalorder %v3023, 3
    %vm3045 = vcmp.lt.s32.totalorder %v3023, 4
    %v3046 = vsel %vm3042, %v3026, %v3029
    %v3047 = vsel %vm3045, %v3035, 2102212464
    %v3048 = vsel %vm3044, %v3032, %v3047
    %v3049 = vsel %vm3043, %v3046, %v3048
    %v3050 = vsel %vm3042, %v3029, %v3032
    %v3051 = vsel %vm3045, %v3038, 920167782
    %v3052 = vsel %vm3044, %v3035, %v3051
    %v3053 = vsel %vm3043, %v3050, %v3052
    %v3054 = vsel %vm3042, %v3032, %v3035
    %v3055 = vsel %vm3045, %v3041, 1326507024
    %v3056 = vsel %vm3044, %v3038, %v3055
    %v3057 = vsel %vm3043, %v3054, %v3056
    %v3058 = vshll.u32 %v3018, 8
    %v3059 = vmul.u32.u64.compose %v3058, %v3057
    %v3060 = vextract.low.u32 %v3059
    %v3061 = vextract.high.u32 %v3059
    %v3062 = vmul.u32.u64.compose %v3058, %v3053
    %v3063 = vextract.low.u32 %v3062
    %v3064 = vextract.high.u32 %v3062
    %v3065 = vmul.u32 %v3058, %v3049
    %v3066 = vadd.s32 %v3061, %v3063
    %vm3067 = vc.u32 %v3061, %v3063
    %v3068 = vadd.s32 %v3064, 1
    %v3069 = vsel %vm3067, %v3068, %v3064
    %v3070 = vadd.s32 %v3065, %v3069
    %v3071 = vadd.s32 %v3070, 536870912
    %v3072 = vshrl.u32 %v3071, 30
    %v3073 = vshll.u32 %v3072, 30
    %v3074 = vsub.s32 %v3070, %v3073
    %vm3075 = vcmp.lt.s32.totalorder %v3074, 0
    %v3076 = vsub.s32 0, %v3074
    %v3077 = vsel %vm3075, %v3076, %v3074
    %v3078 = vclz %v3077
    %v3079 = vsub.s32 %v3078, 2
    %vm3080 = vcmp.gt.s32.totalorder 0, %v3079
    %v3081 = vsel %vm3080, 0, %v3079
    %v3082 = vsub.s32 32, %v3081
    %v3083 = vshll.u32 %v3074, %v3081
    %v3084 = vshrl.u32 %v3066, %v3082
    %v3085 = vor.u32 %v3083, %v3084
    %v3086 = vsub.s32 4294967266, %v3081
    %v3087 = vadd.s32 %v3086, 127
    %v3088 = vshll.u32 %v3087, 23
    %v3089 = vor.u32 4788187, %v3088
    %v3090 = vand.u32 2147483647, %v3089
    %v3092 = vcvt.s32.f32 %v3085
    %v3093 = vmul.f32 %v3092, %v3090
    %v3094 = vxor.u32 %v3093, 2147483648
    %v3095 = vsel %vm3012, %v3094, %v3093
    %v3096 = vsub.s32 4, %v3072
    %v3097 = vsel %vm3012, %v3096, %v3072
    %v3098 = vsel %vm3011, %v316, %v3095
    %v3099 = vsel %vm3011, 0, %v3097
    %v3100 = vcosq.f32.pop %v3098
    %v3101 = vsinq.f32.pop %v3098
    %vm3102 = vweird.f32 %v316
    %v3103 = vadd.s32 %v3099, 3
    %v3104 = vand.u32 %v3103, 3
    %vm3105 = vcmp.lt.s32.totalorder %v3104, 2
    %vm3106 = vcmp.eq.s32.totalorder %v3104, 0
    %v3107 = vxor.u32 %v3101, 2147483648
    %v3108 = vsel %vm3106, %v3100, %v3107
    %vm3109 = vcmp.eq.s32.totalorder %v3104, 2
    %v3110 = vxor.u32 %v3100, 2147483648
    %v3111 = vsel %vm3109, %v3110, %v3101
    %v3112 = vsel %vm3105, %v3108, %v3111
    %v3113 = vsel %vm3102, nan, %v3112
    %v3114 = vand.u32 2147483647, %v317
    %vm3115 = vcmp.le.f32.partialorder %v3114, 0.7853982
    %vm3116 = vcmp.lt.s32.totalorder %v317, 0
    %v3117 = vand.u32 %v317, 2139095040
    %v3118 = vshrl.u32 %v3117, 23
    %v3119 = vsub.s32 %v3118, 127
    %v3120 = vand.u32 2147483647, %v317
    %v3121 = vand.u32 %v3120, 8388607
    %v3122 = vor.u32 %v3121, 8388608
    %v3123 = vsub.s32 0, %v3122
    %v3124 = vadd.s32 %v3119, 1
    %vm3125 = vcmp.gt.s32.totalorder %v3124, 0
    %v3126 = vsel %vm3125, %v3124, 0
    %v3127 = vshrl.u32 %v3126, 5
    %v3128 = vand.u32 %v3126, 31
    %v3129 = vsub.s32 32, %v3128
    %v3130 = vshrl.u32 683565275, %v3129
    %v3131 = vshll.u32 683565275, %v3128
    %v3132 = vshrl.u32 2475754826, %v3129
    %v3133 = vor.u32 %v3131, %v3132
    %v3134 = vshll.u32 2475754826, %v3128
    %v3135 = vshrl.u32 2131351028, %v3129
    %v3136 = vor.u32 %v3134, %v3135
    %v3137 = vshll.u32 2131351028, %v3128
    %v3138 = vshrl.u32 2102212464, %v3129
    %v3139 = vor.u32 %v3137, %v3138
    %v3140 = vshll.u32 2102212464, %v3128
    %v3141 = vshrl.u32 920167782, %v3129
    %v3142 = vor.u32 %v3140, %v3141
    %v3143 = vshll.u32 920167782, %v3128
    %v3144 = vshrl.u32 1326507024, %v3129
    %v3145 = vor.u32 %v3143, %v3144
    %vm3146 = vcmp.lt.s32.totalorder %v3127, 1
    %vm3147 = vcmp.lt.s32.totalorder %v3127, 2
    %vm3148 = vcmp.lt.s32.totalorder %v3127, 3
    %vm3149 = vcmp.lt.s32.totalorder %v3127, 4
    %v3150 = vsel %vm3146, %v3130, %v3133
    %v3151 = vsel %vm3149, %v3139, 2102212464
    %v3152 = vsel %vm3148, %v3136, %v3151
    %v3153 = vsel %vm3147, %v3150, %v3152
    %v3154 = vsel %vm3146, %v3133, %v3136
    %v3155 = vsel %vm3149, %v3142, 920167782
    %v3156 = vsel %vm3148, %v3139, %v3155
    %v3157 = vsel %vm3147, %v3154, %v3156
    %v3158 = vsel %vm3146, %v3136, %v3139
    %v3159 = vsel %vm3149, %v3145, 1326507024
    %v3160 = vsel %vm3148, %v3142, %v3159
    %v3161 = vsel %vm3147, %v3158, %v3160
    %v3162 = vshll.u32 %v3122, 8
    %v3163 = vmul.u32.u64.compose %v3162, %v3161
    %v3164 = vextract.low.u32 %v3163
    %v3165 = vextract.high.u32 %v3163
    %v3166 = vmul.u32.u64.compose %v3162, %v3157
    %v3167 = vextract.low.u32 %v3166
    %v3168 = vextract.high.u32 %v3166
    %v3169 = vmul.u32 %v3162, %v3153
    %v3170 = vadd.s32 %v3165, %v3167
    %vm3171 = vc.u32 %v3165, %v3167
    %v3172 = vadd.s32 %v3168, 1
    %v3173 = vsel %vm3171, %v3172, %v3168
    %v3174 = vadd.s32 %v3169, %v3173
    %v3175 = vadd.s32 %v3174, 536870912
    %v3176 = vshrl.u32 %v3175, 30
    %v3177 = vshll.u32 %v3176, 30
    %v3178 = vsub.s32 %v3174, %v3177
    %vm3179 = vcmp.lt.s32.totalorder %v3178, 0
    %v3180 = vsub.s32 0, %v3178
    %v3181 = vsel %vm3179, %v3180, %v3178
    %v3182 = vclz %v3181
    %v3183 = vsub.s32 %v3182, 2
    %vm3184 = vcmp.gt.s32.totalorder 0, %v3183
    %v3185 = vsel %vm3184, 0, %v3183
    %v3186 = vsub.s32 32, %v3185
    %v3187 = vshll.u32 %v3178, %v3185
    %v3188 = vshrl.u32 %v3170, %v3186
    %v3189 = vor.u32 %v3187, %v3188
    %v3190 = vsub.s32 4294967266, %v3185
    %v3191 = vadd.s32 %v3190, 127
    %v3192 = vshll.u32 %v3191, 23
    %v3193 = vor.u32 4788187, %v3192
    %v3194 = vand.u32 2147483647, %v3193
    %v3196 = vcvt.s32.f32 %v3189
    %v3197 = vmul.f32 %v3196, %v3194
    %v3198 = vxor.u32 %v3197, 2147483648
    %v3199 = vsel %vm3116, %v3198, %v3197
    %v3200 = vsub.s32 4, %v3176
    %v3201 = vsel %vm3116, %v3200, %v3176
    %v3202 = vsel %vm3115, %v317, %v3199
    %v3203 = vsel %vm3115, 0, %v3201
    %v3204 = vcosq.f32.pop %v3202
    %v3205 = vsinq.f32.pop %v3202
    %vm3206 = vweird.f32 %v317
    %v3207 = vadd.s32 %v3203, 3
    %v3208 = vand.u32 %v3207, 3
    %vm3209 = vcmp.lt.s32.totalorder %v3208, 2
    %vm3210 = vcmp.eq.s32.totalorder %v3208, 0
    %v3211 = vxor.u32 %v3205, 2147483648
    %v3212 = vsel %vm3210, %v3204, %v3211
    %vm3213 = vcmp.eq.s32.totalorder %v3208, 2
    %v3214 = vxor.u32 %v3204, 2147483648
    %v3215 = vsel %vm3213, %v3214, %v3205
    %v3216 = vsel %vm3209, %v3212, %v3215
    %v3217 = vsel %vm3206, nan, %v3216
    %v3218 = vand.u32 2147483647, %v318
    %vm3219 = vcmp.le.f32.partialorder %v3218, 0.7853982
    %vm3220 = vcmp.lt.s32.totalorder %v318, 0
    %v3221 = vand.u32 %v318, 2139095040
    %v3222 = vshrl.u32 %v3221, 23
    %v3223 = vsub.s32 %v3222, 127
    %v3224 = vand.u32 2147483647, %v318
    %v3225 = vand.u32 %v3224, 8388607
    %v3226 = vor.u32 %v3225, 8388608
    %v3227 = vsub.s32 0, %v3226
    %v3228 = vadd.s32 %v3223, 1
    %vm3229 = vcmp.gt.s32.totalorder %v3228, 0
    %v3230 = vsel %vm3229, %v3228, 0
    %v3231 = vshrl.u32 %v3230, 5
    %v3232 = vand.u32 %v3230, 31
    %v3233 = vsub.s32 32, %v3232
    %v3234 = vshrl.u32 683565275, %v3233
    %v3235 = vshll.u32 683565275, %v3232
    %v3236 = vshrl.u32 2475754826, %v3233
    %v3237 = vor.u32 %v3235, %v3236
    %v3238 = vshll.u32 2475754826, %v3232
    %v3239 = vshrl.u32 2131351028, %v3233
    %v3240 = vor.u32 %v3238, %v3239
    %v3241 = vshll.u32 2131351028, %v3232
    %v3242 = vshrl.u32 2102212464, %v3233
    %v3243 = vor.u32 %v3241, %v3242
    %v3244 = vshll.u32 2102212464, %v3232
    %v3245 = vshrl.u32 920167782, %v3233
    %v3246 = vor.u32 %v3244, %v3245
    %v3247 = vshll.u32 920167782, %v3232
    %v3248 = vshrl.u32 1326507024, %v3233
    %v3249 = vor.u32 %v3247, %v3248
    %vm3250 = vcmp.lt.s32.totalorder %v3231, 1
    %vm3251 = vcmp.lt.s32.totalorder %v3231, 2
    %vm3252 = vcmp.lt.s32.totalorder %v3231, 3
    %vm3253 = vcmp.lt.s32.totalorder %v3231, 4
    %v3254 = vsel %vm3250, %v3234, %v3237
    %v3255 = vsel %vm3253, %v3243, 2102212464
    %v3256 = vsel %vm3252, %v3240, %v3255
    %v3257 = vsel %vm3251, %v3254, %v3256
    %v3258 = vsel %vm3250, %v3237, %v3240
    %v3259 = vsel %vm3253, %v3246, 920167782
    %v3260 = vsel %vm3252, %v3243, %v3259
    %v3261 = vsel %vm3251, %v3258, %v3260
    %v3262 = vsel %vm3250, %v3240, %v3243
    %v3263 = vsel %vm3253, %v3249, 1326507024
    %v3264 = vsel %vm3252, %v3246, %v3263
    %v3265 = vsel %vm3251, %v3262, %v3264
    %v3266 = vshll.u32 %v3226, 8
    %v3267 = vmul.u32.u64.compose %v3266, %v3265
    %v3268 = vextract.low.u32 %v3267
    %v3269 = vextract.high.u32 %v3267
    %v3270 = vmul.u32.u64.compose %v3266, %v3261
    %v3271 = vextract.low.u32 %v3270
    %v3272 = vextract.high.u32 %v3270
    %v3273 = vmul.u32 %v3266, %v3257
    %v3274 = vadd.s32 %v3269, %v3271
    %vm3275 = vc.u32 %v3269, %v3271
    %v3276 = vadd.s32 %v3272, 1
    %v3277 = vsel %vm3275, %v3276, %v3272
    %v3278 = vadd.s32 %v3273, %v3277
    %v3279 = vadd.s32 %v3278, 536870912
    %v3280 = vshrl.u32 %v3279, 30
    %v3281 = vshll.u32 %v3280, 30
    %v3282 = vsub.s32 %v3278, %v3281
    %vm3283 = vcmp.lt.s32.totalorder %v3282, 0
    %v3284 = vsub.s32 0, %v3282
    %v3285 = vsel %vm3283, %v3284, %v3282
    %v3286 = vclz %v3285
    %v3287 = vsub.s32 %v3286, 2
    %vm3288 = vcmp.gt.s32.totalorder 0, %v3287
    %v3289 = vsel %vm3288, 0, %v3287
    %v3290 = vsub.s32 32, %v3289
    %v3291 = vshll.u32 %v3282, %v3289
    %v3292 = vshrl.u32 %v3274, %v3290
    %v3293 = vor.u32 %v3291, %v3292
    %v3294 = vsub.s32 4294967266, %v3289
    %v3295 = vadd.s32 %v3294, 127
    %v3296 = vshll.u32 %v3295, 23
    %v3297 = vor.u32 4788187, %v3296
    %v3298 = vand.u32 2147483647, %v3297
    %v3300 = vcvt.s32.f32 %v3293
    %v3301 = vmul.f32 %v3300, %v3298
    %v3302 = vxor.u32 %v3301, 2147483648
    %v3303 = vsel %vm3220, %v3302, %v3301
    %v3304 = vsub.s32 4, %v3280
    %v3305 = vsel %vm3220, %v3304, %v3280
    %v3306 = vsel %vm3219, %v318, %v3303
    %v3307 = vsel %vm3219, 0, %v3305
    %v3308 = vcosq.f32.pop %v3306
    %v3309 = vsinq.f32.pop %v3306
    %vm3310 = vweird.f32 %v318
    %v3311 = vadd.s32 %v3307, 3
    %v3312 = vand.u32 %v3311, 3
    %vm3313 = vcmp.lt.s32.totalorder %v3312, 2
    %vm3314 = vcmp.eq.s32.totalorder %v3312, 0
    %v3315 = vxor.u32 %v3309, 2147483648
    %v3316 = vsel %vm3314, %v3308, %v3315
    %vm3317 = vcmp.eq.s32.totalorder %v3312, 2
    %v3318 = vxor.u32 %v3308, 2147483648
    %v3319 = vsel %vm3317, %v3318, %v3309
    %v3320 = vsel %vm3313, %v3316, %v3319
    %v3321 = vsel %vm3310, nan, %v3320
    %v3322 = vand.u32 2147483647, %v319
    %vm3323 = vcmp.le.f32.partialorder %v3322, 0.7853982
    %vm3324 = vcmp.lt.s32.totalorder %v319, 0
    %v3325 = vand.u32 %v319, 2139095040
    %v3326 = vshrl.u32 %v3325, 23
    %v3327 = vsub.s32 %v3326, 127
    %v3328 = vand.u32 2147483647, %v319
    %v3329 = vand.u32 %v3328, 8388607
    %v3330 = vor.u32 %v3329, 8388608
    %v3331 = vsub.s32 0, %v3330
    %v3332 = vadd.s32 %v3327, 1
    %vm3333 = vcmp.gt.s32.totalorder %v3332, 0
    %v3334 = vsel %vm3333, %v3332, 0
    %v3335 = vshrl.u32 %v3334, 5
    %v3336 = vand.u32 %v3334, 31
    %v3337 = vsub.s32 32, %v3336
    %v3338 = vshrl.u32 683565275, %v3337
    %v3339 = vshll.u32 683565275, %v3336
    %v3340 = vshrl.u32 2475754826, %v3337
    %v3341 = vor.u32 %v3339, %v3340
    %v3342 = vshll.u32 2475754826, %v3336
    %v3343 = vshrl.u32 2131351028, %v3337
    %v3344 = vor.u32 %v3342, %v3343
    %v3345 = vshll.u32 2131351028, %v3336
    %v3346 = vshrl.u32 2102212464, %v3337
    %v3347 = vor.u32 %v3345, %v3346
    %v3348 = vshll.u32 2102212464, %v3336
    %v3349 = vshrl.u32 920167782, %v3337
    %v3350 = vor.u32 %v3348, %v3349
    %v3351 = vshll.u32 920167782, %v3336
    %v3352 = vshrl.u32 1326507024, %v3337
    %v3353 = vor.u32 %v3351, %v3352
    %vm3354 = vcmp.lt.s32.totalorder %v3335, 1
    %vm3355 = vcmp.lt.s32.totalorder %v3335, 2
    %vm3356 = vcmp.lt.s32.totalorder %v3335, 3
    %vm3357 = vcmp.lt.s32.totalorder %v3335, 4
    %v3358 = vsel %vm3354, %v3338, %v3341
    %v3359 = vsel %vm3357, %v3347, 2102212464
    %v3360 = vsel %vm3356, %v3344, %v3359
    %v3361 = vsel %vm3355, %v3358, %v3360
    %v3362 = vsel %vm3354, %v3341, %v3344
    %v3363 = vsel %vm3357, %v3350, 920167782
    %v3364 = vsel %vm3356, %v3347, %v3363
    %v3365 = vsel %vm3355, %v3362, %v3364
    %v3366 = vsel %vm3354, %v3344, %v3347
    %v3367 = vsel %vm3357, %v3353, 1326507024
    %v3368 = vsel %vm3356, %v3350, %v3367
    %v3369 = vsel %vm3355, %v3366, %v3368
    %v3370 = vshll.u32 %v3330, 8
    %v3371 = vmul.u32.u64.compose %v3370, %v3369
    %v3372 = vextract.low.u32 %v3371
    %v3373 = vextract.high.u32 %v3371
    %v3374 = vmul.u32.u64.compose %v3370, %v3365
    %v3375 = vextract.low.u32 %v3374
    %v3376 = vextract.high.u32 %v3374
    %v3377 = vmul.u32 %v3370, %v3361
    %v3378 = vadd.s32 %v3373, %v3375
    %vm3379 = vc.u32 %v3373, %v3375
    %v3380 = vadd.s32 %v3376, 1
    %v3381 = vsel %vm3379, %v3380, %v3376
    %v3382 = vadd.s32 %v3377, %v3381
    %v3383 = vadd.s32 %v3382, 536870912
    %v3384 = vshrl.u32 %v3383, 30
    %v3385 = vshll.u32 %v3384, 30
    %v3386 = vsub.s32 %v3382, %v3385
    %vm3387 = vcmp.lt.s32.totalorder %v3386, 0
    %v3388 = vsub.s32 0, %v3386
    %v3389 = vsel %vm3387, %v3388, %v3386
    %v3390 = vclz %v3389
    %v3391 = vsub.s32 %v3390, 2
    %vm3392 = vcmp.gt.s32.totalorder 0, %v3391
    %v3393 = vsel %vm3392, 0, %v3391
    %v3394 = vsub.s32 32, %v3393
    %v3395 = vshll.u32 %v3386, %v3393
    %v3396 = vshrl.u32 %v3378, %v3394
    %v3397 = vor.u32 %v3395, %v3396
    %v3398 = vsub.s32 4294967266, %v3393
    %v3399 = vadd.s32 %v3398, 127
    %v3400 = vshll.u32 %v3399, 23
    %v3401 = vor.u32 4788187, %v3400
    %v3402 = vand.u32 2147483647, %v3401
    %v3404 = vcvt.s32.f32 %v3397
    %v3405 = vmul.f32 %v3404, %v3402
    %v3406 = vxor.u32 %v3405, 2147483648
    %v3407 = vsel %vm3324, %v3406, %v3405
    %v3408 = vsub.s32 4, %v3384
    %v3409 = vsel %vm3324, %v3408, %v3384
    %v3410 = vsel %vm3323, %v319, %v3407
    %v3411 = vsel %vm3323, 0, %v3409
    %v3412 = vcosq.f32.pop %v3410
    %v3413 = vsinq.f32.pop %v3410
    %vm3414 = vweird.f32 %v319
    %v3415 = vadd.s32 %v3411, 3
    %v3416 = vand.u32 %v3415, 3
    %vm3417 = vcmp.lt.s32.totalorder %v3416, 2
    %vm3418 = vcmp.eq.s32.totalorder %v3416, 0
    %v3419 = vxor.u32 %v3413, 2147483648
    %v3420 = vsel %vm3418, %v3412, %v3419
    %vm3421 = vcmp.eq.s32.totalorder %v3416, 2
    %v3422 = vxor.u32 %v3412, 2147483648
    %v3423 = vsel %vm3421, %v3422, %v3413
    %v3424 = vsel %vm3417, %v3420, %v3423
    %v3425 = vsel %vm3414, nan, %v3424
    %v3426 = vand.u32 2147483647, %v320
    %vm3427 = vcmp.le.f32.partialorder %v3426, 0.7853982
    %vm3428 = vcmp.lt.s32.totalorder %v320, 0
    %v3429 = vand.u32 %v320, 2139095040
    %v3430 = vshrl.u32 %v3429, 23
    %v3431 = vsub.s32 %v3430, 127
    %v3432 = vand.u32 2147483647, %v320
    %v3433 = vand.u32 %v3432, 8388607
    %v3434 = vor.u32 %v3433, 8388608
    %v3435 = vsub.s32 0, %v3434
    %v3436 = vadd.s32 %v3431, 1
    %vm3437 = vcmp.gt.s32.totalorder %v3436, 0
    %v3438 = vsel %vm3437, %v3436, 0
    %v3439 = vshrl.u32 %v3438, 5
    %v3440 = vand.u32 %v3438, 31
    %v3441 = vsub.s32 32, %v3440
    %v3442 = vshrl.u32 683565275, %v3441
    %v3443 = vshll.u32 683565275, %v3440
    %v3444 = vshrl.u32 2475754826, %v3441
    %v3445 = vor.u32 %v3443, %v3444
    %v3446 = vshll.u32 2475754826, %v3440
    %v3447 = vshrl.u32 2131351028, %v3441
    %v3448 = vor.u32 %v3446, %v3447
    %v3449 = vshll.u32 2131351028, %v3440
    %v3450 = vshrl.u32 2102212464, %v3441
    %v3451 = vor.u32 %v3449, %v3450
    %v3452 = vshll.u32 2102212464, %v3440
    %v3453 = vshrl.u32 920167782, %v3441
    %v3454 = vor.u32 %v3452, %v3453
    %v3455 = vshll.u32 920167782, %v3440
    %v3456 = vshrl.u32 1326507024, %v3441
    %v3457 = vor.u32 %v3455, %v3456
    %vm3458 = vcmp.lt.s32.totalorder %v3439, 1
    %vm3459 = vcmp.lt.s32.totalorder %v3439, 2
    %vm3460 = vcmp.lt.s32.totalorder %v3439, 3
    %vm3461 = vcmp.lt.s32.totalorder %v3439, 4
    %v3462 = vsel %vm3458, %v3442, %v3445
    %v3463 = vsel %vm3461, %v3451, 2102212464
    %v3464 = vsel %vm3460, %v3448, %v3463
    %v3465 = vsel %vm3459, %v3462, %v3464
    %v3466 = vsel %vm3458, %v3445, %v3448
    %v3467 = vsel %vm3461, %v3454, 920167782
    %v3468 = vsel %vm3460, %v3451, %v3467
    %v3469 = vsel %vm3459, %v3466, %v3468
    %v3470 = vsel %vm3458, %v3448, %v3451
    %v3471 = vsel %vm3461, %v3457, 1326507024
    %v3472 = vsel %vm3460, %v3454, %v3471
    %v3473 = vsel %vm3459, %v3470, %v3472
    %v3474 = vshll.u32 %v3434, 8
    %v3475 = vmul.u32.u64.compose %v3474, %v3473
    %v3476 = vextract.low.u32 %v3475
    %v3477 = vextract.high.u32 %v3475
    %v3478 = vmul.u32.u64.compose %v3474, %v3469
    %v3479 = vextract.low.u32 %v3478
    %v3480 = vextract.high.u32 %v3478
    %v3481 = vmul.u32 %v3474, %v3465
    %v3482 = vadd.s32 %v3477, %v3479
    %vm3483 = vc.u32 %v3477, %v3479
    %v3484 = vadd.s32 %v3480, 1
    %v3485 = vsel %vm3483, %v3484, %v3480
    %v3486 = vadd.s32 %v3481, %v3485
    %v3487 = vadd.s32 %v3486, 536870912
    %v3488 = vshrl.u32 %v3487, 30
    %v3489 = vshll.u32 %v3488, 30
    %v3490 = vsub.s32 %v3486, %v3489
    %vm3491 = vcmp.lt.s32.totalorder %v3490, 0
    %v3492 = vsub.s32 0, %v3490
    %v3493 = vsel %vm3491, %v3492, %v3490
    %v3494 = vclz %v3493
    %v3495 = vsub.s32 %v3494, 2
    %vm3496 = vcmp.gt.s32.totalorder 0, %v3495
    %v3497 = vsel %vm3496, 0, %v3495
    %v3498 = vsub.s32 32, %v3497
    %v3499 = vshll.u32 %v3490, %v3497
    %v3500 = vshrl.u32 %v3482, %v3498
    %v3501 = vor.u32 %v3499, %v3500
    %v3502 = vsub.s32 4294967266, %v3497
    %v3503 = vadd.s32 %v3502, 127
    %v3504 = vshll.u32 %v3503, 23
    %v3505 = vor.u32 4788187, %v3504
    %v3506 = vand.u32 2147483647, %v3505
    %v3508 = vcvt.s32.f32 %v3501
    %v3509 = vmul.f32 %v3508, %v3506
    %v3510 = vxor.u32 %v3509, 2147483648
    %v3511 = vsel %vm3428, %v3510, %v3509
    %v3512 = vsub.s32 4, %v3488
    %v3513 = vsel %vm3428, %v3512, %v3488
    %v3514 = vsel %vm3427, %v320, %v3511
    %v3515 = vsel %vm3427, 0, %v3513
    %v3516 = vcosq.f32.pop %v3514
    %v3517 = vsinq.f32.pop %v3514
    %vm3518 = vweird.f32 %v320
    %v3519 = vadd.s32 %v3515, 3
    %v3520 = vand.u32 %v3519, 3
    %vm3521 = vcmp.lt.s32.totalorder %v3520, 2
    %vm3522 = vcmp.eq.s32.totalorder %v3520, 0
    %v3523 = vxor.u32 %v3517, 2147483648
    %v3524 = vsel %vm3522, %v3516, %v3523
    %vm3525 = vcmp.eq.s32.totalorder %v3520, 2
    %v3526 = vxor.u32 %v3516, 2147483648
    %v3527 = vsel %vm3525, %v3526, %v3517
    %v3528 = vsel %vm3521, %v3524, %v3527
    %v3529 = vsel %vm3518, nan, %v3528
    %v3530 = vand.u32 2147483647, %v321
    %vm3531 = vcmp.le.f32.partialorder %v3530, 0.7853982
    %vm3532 = vcmp.lt.s32.totalorder %v321, 0
    %v3533 = vand.u32 %v321, 2139095040
    %v3534 = vshrl.u32 %v3533, 23
    %v3535 = vsub.s32 %v3534, 127
    %v3536 = vand.u32 2147483647, %v321
    %v3537 = vand.u32 %v3536, 8388607
    %v3538 = vor.u32 %v3537, 8388608
    %v3539 = vsub.s32 0, %v3538
    %v3540 = vadd.s32 %v3535, 1
    %vm3541 = vcmp.gt.s32.totalorder %v3540, 0
    %v3542 = vsel %vm3541, %v3540, 0
    %v3543 = vshrl.u32 %v3542, 5
    %v3544 = vand.u32 %v3542, 31
    %v3545 = vsub.s32 32, %v3544
    %v3546 = vshrl.u32 683565275, %v3545
    %v3547 = vshll.u32 683565275, %v3544
    %v3548 = vshrl.u32 2475754826, %v3545
    %v3549 = vor.u32 %v3547, %v3548
    %v3550 = vshll.u32 2475754826, %v3544
    %v3551 = vshrl.u32 2131351028, %v3545
    %v3552 = vor.u32 %v3550, %v3551
    %v3553 = vshll.u32 2131351028, %v3544
    %v3554 = vshrl.u32 2102212464, %v3545
    %v3555 = vor.u32 %v3553, %v3554
    %v3556 = vshll.u32 2102212464, %v3544
    %v3557 = vshrl.u32 920167782, %v3545
    %v3558 = vor.u32 %v3556, %v3557
    %v3559 = vshll.u32 920167782, %v3544
    %v3560 = vshrl.u32 1326507024, %v3545
    %v3561 = vor.u32 %v3559, %v3560
    %vm3562 = vcmp.lt.s32.totalorder %v3543, 1
    %vm3563 = vcmp.lt.s32.totalorder %v3543, 2
    %vm3564 = vcmp.lt.s32.totalorder %v3543, 3
    %vm3565 = vcmp.lt.s32.totalorder %v3543, 4
    %v3566 = vsel %vm3562, %v3546, %v3549
    %v3567 = vsel %vm3565, %v3555, 2102212464
    %v3568 = vsel %vm3564, %v3552, %v3567
    %v3569 = vsel %vm3563, %v3566, %v3568
    %v3570 = vsel %vm3562, %v3549, %v3552
    %v3571 = vsel %vm3565, %v3558, 920167782
    %v3572 = vsel %vm3564, %v3555, %v3571
    %v3573 = vsel %vm3563, %v3570, %v3572
    %v3574 = vsel %vm3562, %v3552, %v3555
    %v3575 = vsel %vm3565, %v3561, 1326507024
    %v3576 = vsel %vm3564, %v3558, %v3575
    %v3577 = vsel %vm3563, %v3574, %v3576
    %v3578 = vshll.u32 %v3538, 8
    %v3579 = vmul.u32.u64.compose %v3578, %v3577
    %v3580 = vextract.low.u32 %v3579
    %v3581 = vextract.high.u32 %v3579
    %v3582 = vmul.u32.u64.compose %v3578, %v3573
    %v3583 = vextract.low.u32 %v3582
    %v3584 = vextract.high.u32 %v3582
    %v3585 = vmul.u32 %v3578, %v3569
    %v3586 = vadd.s32 %v3581, %v3583
    %vm3587 = vc.u32 %v3581, %v3583
    %v3588 = vadd.s32 %v3584, 1
    %v3589 = vsel %vm3587, %v3588, %v3584
    %v3590 = vadd.s32 %v3585, %v3589
    %v3591 = vadd.s32 %v3590, 536870912
    %v3592 = vshrl.u32 %v3591, 30
    %v3593 = vshll.u32 %v3592, 30
    %v3594 = vsub.s32 %v3590, %v3593
    %vm3595 = vcmp.lt.s32.totalorder %v3594, 0
    %v3596 = vsub.s32 0, %v3594
    %v3597 = vsel %vm3595, %v3596, %v3594
    %v3598 = vclz %v3597
    %v3599 = vsub.s32 %v3598, 2
    %vm3600 = vcmp.gt.s32.totalorder 0, %v3599
    %v3601 = vsel %vm3600, 0, %v3599
    %v3602 = vsub.s32 32, %v3601
    %v3603 = vshll.u32 %v3594, %v3601
    %v3604 = vshrl.u32 %v3586, %v3602
    %v3605 = vor.u32 %v3603, %v3604
    %v3606 = vsub.s32 4294967266, %v3601
    %v3607 = vadd.s32 %v3606, 127
    %v3608 = vshll.u32 %v3607, 23
    %v3609 = vor.u32 4788187, %v3608
    %v3610 = vand.u32 2147483647, %v3609
    %v3612 = vcvt.s32.f32 %v3605
    %v3613 = vmul.f32 %v3612, %v3610
    %v3614 = vxor.u32 %v3613, 2147483648
    %v3615 = vsel %vm3532, %v3614, %v3613
    %v3616 = vsub.s32 4, %v3592
    %v3617 = vsel %vm3532, %v3616, %v3592
    %v3618 = vsel %vm3531, %v321, %v3615
    %v3619 = vsel %vm3531, 0, %v3617
    %v3620 = vcosq.f32.pop %v3618
    %v3621 = vsinq.f32.pop %v3618
    %vm3622 = vweird.f32 %v321
    %v3623 = vadd.s32 %v3619, 3
    %v3624 = vand.u32 %v3623, 3
    %vm3625 = vcmp.lt.s32.totalorder %v3624, 2
    %vm3626 = vcmp.eq.s32.totalorder %v3624, 0
    %v3627 = vxor.u32 %v3621, 2147483648
    %v3628 = vsel %vm3626, %v3620, %v3627
    %vm3629 = vcmp.eq.s32.totalorder %v3624, 2
    %v3630 = vxor.u32 %v3620, 2147483648
    %v3631 = vsel %vm3629, %v3630, %v3621
    %v3632 = vsel %vm3625, %v3628, %v3631
    %v3633 = vsel %vm3622, nan, %v3632
    %v3634 = vld [vmem:[%s4] sm:$0x3]
    %3635 = vset.pattern.permute.xlu0 2
    %3636 = vperm.xlu0 %3635, %v51
    %v3637 = vpop.permute.xlu0 %3636
    %3639 = vset.pattern.permute.xlu0 2
    %3640 = vperm.xlu0 %3639, %v52
    %v3641 = vpop.permute.xlu0 %3640
    %3643 = vset.pattern.permute.xlu0 2
    %3644 = vperm.xlu0 %3643, %v53
    %v3645 = vpop.permute.xlu0 %3644
    %3647 = vset.pattern.permute.xlu0 2
    %3648 = vperm.xlu0 %3647, %v54
    %v3649 = vpop.permute.xlu0 %3648
    %3651 = vset.pattern.permute.xlu0 2
    %3652 = vperm.xlu0 %3651, %v55
    %v3653 = vpop.permute.xlu0 %3652
    %3655 = vset.pattern.permute.xlu0 2
    %3656 = vperm.xlu0 %3655, %v56
    %v3657 = vpop.permute.xlu0 %3656
    %3659 = vset.pattern.permute.xlu0 2
    %3660 = vperm.xlu0 %3659, %v57
    %v3661 = vpop.permute.xlu0 %3660
    %3663 = vset.pattern.permute.xlu0 2
    %3664 = vperm.xlu0 %3663, %v58
    %v3665 = vpop.permute.xlu0 %3664
    %3667 = vset.pattern.permute.xlu0 2
    %3668 = vperm.xlu0 %3667, %v59
    %v3669 = vpop.permute.xlu0 %3668
    %3671 = vset.pattern.permute.xlu0 2
    %3672 = vperm.xlu0 %3671, %v60
    %v3673 = vpop.permute.xlu0 %3672
    %3675 = vset.pattern.permute.xlu0 2
    %3676 = vperm.xlu0 %3675, %v61
    %v3677 = vpop.permute.xlu0 %3676
    %3679 = vset.pattern.permute.xlu0 2
    %3680 = vperm.xlu0 %3679, %v62
    %v3681 = vpop.permute.xlu0 %3680
    %3683 = vset.pattern.permute.xlu0 2
    %3684 = vperm.xlu0 %3683, %v63
    %v3685 = vpop.permute.xlu0 %3684
    %3687 = vset.pattern.permute.xlu0 2
    %3688 = vperm.xlu0 %3687, %v64
    %v3689 = vpop.permute.xlu0 %3688
    %3691 = vset.pattern.permute.xlu0 2
    %3692 = vperm.xlu0 %3691, %v65
    %v3693 = vpop.permute.xlu0 %3692
    %3695 = vset.pattern.permute.xlu0 2
    %3696 = vperm.xlu0 %3695, %v66
    %v3697 = vpop.permute.xlu0 %3696
    %v3700 = vlaneseq
    %v3701 = vshrl.u32 %v3700, 7
    %v3702 = vsub.s32 0, %v3701
    %v3703 = vrot.slane %v3634, %v3702
    %v3704 = vlaneseq
    %v3705 = vshrl.u32 %v3704, 7
    %v3706 = vsub.s32 1, %v3705
    %v3707 = vrot.slane %v3634, %v3706
    %v3710 = vmul.f32 %v3637, %v3703
    %v3711 = vmul.f32 %v3637, %v3707
    %v3712 = vmul.f32 %v3641, %v3703
    %v3713 = vmul.f32 %v3641, %v3707
    %v3714 = vmul.f32 %v3645, %v3703
    %v3715 = vmul.f32 %v3645, %v3707
    %v3716 = vmul.f32 %v3649, %v3703
    %v3717 = vmul.f32 %v3649, %v3707
    %v3718 = vmul.f32 %v3653, %v3703
    %v3719 = vmul.f32 %v3653, %v3707
    %v3720 = vmul.f32 %v3657, %v3703
    %v3721 = vmul.f32 %v3657, %v3707
    %v3722 = vmul.f32 %v3661, %v3703
    %v3723 = vmul.f32 %v3661, %v3707
    %v3724 = vmul.f32 %v3665, %v3703
    %v3725 = vmul.f32 %v3665, %v3707
    %v3726 = vmul.f32 %v3669, %v3703
    %v3727 = vmul.f32 %v3669, %v3707
    %v3728 = vmul.f32 %v3673, %v3703
    %v3729 = vmul.f32 %v3673, %v3707
    %v3730 = vmul.f32 %v3677, %v3703
    %v3731 = vmul.f32 %v3677, %v3707
    %v3732 = vmul.f32 %v3681, %v3703
    %v3733 = vmul.f32 %v3681, %v3707
    %v3734 = vmul.f32 %v3685, %v3703
    %v3735 = vmul.f32 %v3685, %v3707
    %v3736 = vmul.f32 %v3689, %v3703
    %v3737 = vmul.f32 %v3689, %v3707
    %v3738 = vmul.f32 %v3693, %v3703
    %v3739 = vmul.f32 %v3693, %v3707
    %v3740 = vmul.f32 %v3697, %v3703
    %v3741 = vmul.f32 %v3697, %v3707
    %v3742 = vld [vmem:[%s5] sm:$0x3]
    %v3744 = vlaneseq
    %v3745 = vshrl.u32 %v3744, 7
    %v3746 = vsub.s32 0, %v3745
    %v3747 = vrot.slane %v3742, %v3746
    %v3748 = vlaneseq
    %v3749 = vshrl.u32 %v3748, 7
    %v3750 = vsub.s32 1, %v3749
    %v3751 = vrot.slane %v3742, %v3750
    %v3754 = vadd.f32 %v3710, %v3747
    %v3755 = vadd.f32 %v3711, %v3751
    %v3756 = vadd.f32 %v3712, %v3747
    %v3757 = vadd.f32 %v3713, %v3751
    %v3758 = vadd.f32 %v3714, %v3747
    %v3759 = vadd.f32 %v3715, %v3751
    %v3760 = vadd.f32 %v3716, %v3747
    %v3761 = vadd.f32 %v3717, %v3751
    %v3762 = vadd.f32 %v3718, %v3747
    %v3763 = vadd.f32 %v3719, %v3751
    %v3764 = vadd.f32 %v3720, %v3747
    %v3765 = vadd.f32 %v3721, %v3751
    %v3766 = vadd.f32 %v3722, %v3747
    %v3767 = vadd.f32 %v3723, %v3751
    %v3768 = vadd.f32 %v3724, %v3747
    %v3769 = vadd.f32 %v3725, %v3751
    %v3770 = vadd.f32 %v3726, %v3747
    %v3771 = vadd.f32 %v3727, %v3751
    %v3772 = vadd.f32 %v3728, %v3747
    %v3773 = vadd.f32 %v3729, %v3751
    %v3774 = vadd.f32 %v3730, %v3747
    %v3775 = vadd.f32 %v3731, %v3751
    %v3776 = vadd.f32 %v3732, %v3747
    %v3777 = vadd.f32 %v3733, %v3751
    %v3778 = vadd.f32 %v3734, %v3747
    %v3779 = vadd.f32 %v3735, %v3751
    %v3780 = vadd.f32 %v3736, %v3747
    %v3781 = vadd.f32 %v3737, %v3751
    %v3782 = vadd.f32 %v3738, %v3747
    %v3783 = vadd.f32 %v3739, %v3751
    %v3784 = vadd.f32 %v3740, %v3747
    %v3785 = vadd.f32 %v3741, %v3751
    %v3786 = vadd.f32 %v204, %v424
    %v3787 = vadd.f32 %v205, %v2073
    %v3788 = vadd.f32 %v206, %v527
    %v3789 = vadd.f32 %v207, %v2177
    %v3790 = vadd.f32 %v208, %v630
    %v3791 = vadd.f32 %v209, %v2281
    %v3792 = vadd.f32 %v210, %v733
    %v3793 = vadd.f32 %v211, %v2385
    %v3794 = vadd.f32 %v212, %v836
    %v3795 = vadd.f32 %v213, %v2489
    %v3796 = vadd.f32 %v214, %v939
    %v3797 = vadd.f32 %v215, %v2593
    %v3798 = vadd.f32 %v216, %v1042
    %v3799 = vadd.f32 %v217, %v2697
    %v3800 = vadd.f32 %v218, %v1145
    %v3801 = vadd.f32 %v219, %v2801
    %v3802 = vadd.f32 %v220, %v1248
    %v3803 = vadd.f32 %v221, %v2905
    %v3804 = vadd.f32 %v222, %v1351
    %v3805 = vadd.f32 %v223, %v3009
    %v3806 = vadd.f32 %v224, %v1454
    %v3807 = vadd.f32 %v225, %v3113
    %v3808 = vadd.f32 %v226, %v1557
    %v3809 = vadd.f32 %v227, %v3217
    %v3810 = vadd.f32 %v228, %v1660
    %v3811 = vadd.f32 %v229, %v3321
    %v3812 = vadd.f32 %v230, %v1763
    %v3813 = vadd.f32 %v231, %v3425
    %v3814 = vadd.f32 %v232, %v1866
    %v3815 = vadd.f32 %v233, %v3529
    %v3816 = vadd.f32 %v234, %v1969
    %v3817 = vadd.f32 %v235, %v3633
    %v3818 = vadd.f32 %v3786, %v3754
    %v3819 = vadd.f32 %v3787, %v3755
    %v3820 = vadd.f32 %v3788, %v3756
    %v3821 = vadd.f32 %v3789, %v3757
    %v3822 = vadd.f32 %v3790, %v3758
    %v3823 = vadd.f32 %v3791, %v3759
    %v3824 = vadd.f32 %v3792, %v3760
    %v3825 = vadd.f32 %v3793, %v3761
    %v3826 = vadd.f32 %v3794, %v3762
    %v3827 = vadd.f32 %v3795, %v3763
    %v3828 = vadd.f32 %v3796, %v3764
    %v3829 = vadd.f32 %v3797, %v3765
    %v3830 = vadd.f32 %v3798, %v3766
    %v3831 = vadd.f32 %v3799, %v3767
    %v3832 = vadd.f32 %v3800, %v3768
    %v3833 = vadd.f32 %v3801, %v3769
    %v3834 = vadd.f32 %v3802, %v3770
    %v3835 = vadd.f32 %v3803, %v3771
    %v3836 = vadd.f32 %v3804, %v3772
    %v3837 = vadd.f32 %v3805, %v3773
    %v3838 = vadd.f32 %v3806, %v3774
    %v3839 = vadd.f32 %v3807, %v3775
    %v3840 = vadd.f32 %v3808, %v3776
    %v3841 = vadd.f32 %v3809, %v3777
    %v3842 = vadd.f32 %v3810, %v3778
    %v3843 = vadd.f32 %v3811, %v3779
    %v3844 = vadd.f32 %v3812, %v3780
    %v3845 = vadd.f32 %v3813, %v3781
    %v3846 = vadd.f32 %v3814, %v3782
    %v3847 = vadd.f32 %v3815, %v3783
    %v3848 = vadd.f32 %v3816, %v3784
    %v3849 = vadd.f32 %v3817, %v3785
    %v3850 = vxor.u32 %v3818, 2147483648
    %v3851 = vxor.u32 %v3819, 2147483648
    %v3852 = vxor.u32 %v3820, 2147483648
    %v3853 = vxor.u32 %v3821, 2147483648
    %v3854 = vxor.u32 %v3822, 2147483648
    %v3855 = vxor.u32 %v3823, 2147483648
    %v3856 = vxor.u32 %v3824, 2147483648
    %v3857 = vxor.u32 %v3825, 2147483648
    %v3858 = vxor.u32 %v3826, 2147483648
    %v3859 = vxor.u32 %v3827, 2147483648
    %v3860 = vxor.u32 %v3828, 2147483648
    %v3861 = vxor.u32 %v3829, 2147483648
    %v3862 = vxor.u32 %v3830, 2147483648
    %v3863 = vxor.u32 %v3831, 2147483648
    %v3864 = vxor.u32 %v3832, 2147483648
    %v3865 = vxor.u32 %v3833, 2147483648
    %v3866 = vxor.u32 %v3834, 2147483648
    %v3867 = vxor.u32 %v3835, 2147483648
    %v3868 = vxor.u32 %v3836, 2147483648
    %v3869 = vxor.u32 %v3837, 2147483648
    %v3870 = vxor.u32 %v3838, 2147483648
    %v3871 = vxor.u32 %v3839, 2147483648
    %v3872 = vxor.u32 %v3840, 2147483648
    %v3873 = vxor.u32 %v3841, 2147483648
    %v3874 = vxor.u32 %v3842, 2147483648
    %v3875 = vxor.u32 %v3843, 2147483648
    %v3876 = vxor.u32 %v3844, 2147483648
    %v3877 = vxor.u32 %v3845, 2147483648
    %v3878 = vxor.u32 %v3846, 2147483648
    %v3879 = vxor.u32 %v3847, 2147483648
    %v3880 = vxor.u32 %v3848, 2147483648
    %v3881 = vxor.u32 %v3849, 2147483648
    %v3882 = vmul.f32 %v3850, 1.442695
    %v3883 = vpow.pop %v3882
    %v3884 = vmul.f32 %v3851, 1.442695
    %v3885 = vpow.pop %v3884
    %v3886 = vmul.f32 %v3852, 1.442695
    %v3887 = vpow.pop %v3886
    %v3888 = vmul.f32 %v3853, 1.442695
    %v3889 = vpow.pop %v3888
    %v3890 = vmul.f32 %v3854, 1.442695
    %v3891 = vpow.pop %v3890
    %v3892 = vmul.f32 %v3855, 1.442695
    %v3893 = vpow.pop %v3892
    %v3894 = vmul.f32 %v3856, 1.442695
    %v3895 = vpow.pop %v3894
    %v3896 = vmul.f32 %v3857, 1.442695
    %v3897 = vpow.pop %v3896
    %v3898 = vmul.f32 %v3858, 1.442695
    %v3899 = vpow.pop %v3898
    %v3900 = vmul.f32 %v3859, 1.442695
    %v3901 = vpow.pop %v3900
    %v3902 = vmul.f32 %v3860, 1.442695
    %v3903 = vpow.pop %v3902
    %v3904 = vmul.f32 %v3861, 1.442695
    %v3905 = vpow.pop %v3904
    %v3906 = vmul.f32 %v3862, 1.442695
    %v3907 = vpow.pop %v3906
    %v3908 = vmul.f32 %v3863, 1.442695
    %v3909 = vpow.pop %v3908
    %v3910 = vmul.f32 %v3864, 1.442695
    %v3911 = vpow.pop %v3910
    %v3912 = vmul.f32 %v3865, 1.442695
    %v3913 = vpow.pop %v3912
    %v3914 = vmul.f32 %v3866, 1.442695
    %v3915 = vpow.pop %v3914
    %v3916 = vmul.f32 %v3867, 1.442695
    %v3917 = vpow.pop %v3916
    %v3918 = vmul.f32 %v3868, 1.442695
    %v3919 = vpow.pop %v3918
    %v3920 = vmul.f32 %v3869, 1.442695
    %v3921 = vpow.pop %v3920
    %v3922 = vmul.f32 %v3870, 1.442695
    %v3923 = vpow.pop %v3922
    %v3924 = vmul.f32 %v3871, 1.442695
    %v3925 = vpow.pop %v3924
    %v3926 = vmul.f32 %v3872, 1.442695
    %v3927 = vpow.pop %v3926
    %v3928 = vmul.f32 %v3873, 1.442695
    %v3929 = vpow.pop %v3928
    %v3930 = vmul.f32 %v3874, 1.442695
    %v3931 = vpow.pop %v3930
    %v3932 = vmul.f32 %v3875, 1.442695
    %v3933 = vpow.pop %v3932
    %v3934 = vmul.f32 %v3876, 1.442695
    %v3935 = vpow.pop %v3934
    %v3936 = vmul.f32 %v3877, 1.442695
    %v3937 = vpow.pop %v3936
    %v3938 = vmul.f32 %v3878, 1.442695
    %v3939 = vpow.pop %v3938
    %v3940 = vmul.f32 %v3879, 1.442695
    %v3941 = vpow.pop %v3940
    %v3942 = vmul.f32 %v3880, 1.442695
    %v3943 = vpow.pop %v3942
    %v3944 = vmul.f32 %v3881, 1.442695
    %v3945 = vpow.pop %v3944
    %v3946 = vadd.f32 %v3883, 1.0
    %v3947 = vadd.f32 %v3885, 1.0
    %v3948 = vadd.f32 %v3887, 1.0
    %v3949 = vadd.f32 %v3889, 1.0
    %v3950 = vadd.f32 %v3891, 1.0
    %v3951 = vadd.f32 %v3893, 1.0
    %v3952 = vadd.f32 %v3895, 1.0
    %v3953 = vadd.f32 %v3897, 1.0
    %v3954 = vadd.f32 %v3899, 1.0
    %v3955 = vadd.f32 %v3901, 1.0
    %v3956 = vadd.f32 %v3903, 1.0
    %v3957 = vadd.f32 %v3905, 1.0
    %v3958 = vadd.f32 %v3907, 1.0
    %v3959 = vadd.f32 %v3909, 1.0
    %v3960 = vadd.f32 %v3911, 1.0
    %v3961 = vadd.f32 %v3913, 1.0
    %v3962 = vadd.f32 %v3915, 1.0
    %v3963 = vadd.f32 %v3917, 1.0
    %v3964 = vadd.f32 %v3919, 1.0
    %v3965 = vadd.f32 %v3921, 1.0
    %v3966 = vadd.f32 %v3923, 1.0
    %v3967 = vadd.f32 %v3925, 1.0
    %v3968 = vadd.f32 %v3927, 1.0
    %v3969 = vadd.f32 %v3929, 1.0
    %v3970 = vadd.f32 %v3931, 1.0
    %v3971 = vadd.f32 %v3933, 1.0
    %v3972 = vadd.f32 %v3935, 1.0
    %v3973 = vadd.f32 %v3937, 1.0
    %v3974 = vadd.f32 %v3939, 1.0
    %v3975 = vadd.f32 %v3941, 1.0
    %v3976 = vadd.f32 %v3943, 1.0
    %v3977 = vadd.f32 %v3945, 1.0
    %v3978 = vrcp.pop %v3946
    %v3979 = vmul.f32 1.0, %v3978
    %v3980 = vrcp.pop %v3947
    %v3981 = vmul.f32 1.0, %v3980
    %v3982 = vrcp.pop %v3948
    %v3983 = vmul.f32 1.0, %v3982
    %v3984 = vrcp.pop %v3949
    %v3985 = vmul.f32 1.0, %v3984
    %v3986 = vrcp.pop %v3950
    %v3987 = vmul.f32 1.0, %v3986
    %v3988 = vrcp.pop %v3951
    %v3989 = vmul.f32 1.0, %v3988
    %v3990 = vrcp.pop %v3952
    %v3991 = vmul.f32 1.0, %v3990
    %v3992 = vrcp.pop %v3953
    %v3993 = vmul.f32 1.0, %v3992
    %v3994 = vrcp.pop %v3954
    %v3995 = vmul.f32 1.0, %v3994
    %v3996 = vrcp.pop %v3955
    %v3997 = vmul.f32 1.0, %v3996
    %v3998 = vrcp.pop %v3956
    %v3999 = vmul.f32 1.0, %v3998
    %v4000 = vrcp.pop %v3957
    %v4001 = vmul.f32 1.0, %v4000
    %v4002 = vrcp.pop %v3958
    %v4003 = vmul.f32 1.0, %v4002
    %v4004 = vrcp.pop %v3959
    %v4005 = vmul.f32 1.0, %v4004
    %v4006 = vrcp.pop %v3960
    %v4007 = vmul.f32 1.0, %v4006
    %v4008 = vrcp.pop %v3961
    %v4009 = vmul.f32 1.0, %v4008
    %v4010 = vrcp.pop %v3962
    %v4011 = vmul.f32 1.0, %v4010
    %v4012 = vrcp.pop %v3963
    %v4013 = vmul.f32 1.0, %v4012
    %v4014 = vrcp.pop %v3964
    %v4015 = vmul.f32 1.0, %v4014
    %v4016 = vrcp.pop %v3965
    %v4017 = vmul.f32 1.0, %v4016
    %v4018 = vrcp.pop %v3966
    %v4019 = vmul.f32 1.0, %v4018
    %v4020 = vrcp.pop %v3967
    %v4021 = vmul.f32 1.0, %v4020
    %v4022 = vrcp.pop %v3968
    %v4023 = vmul.f32 1.0, %v4022
    %v4024 = vrcp.pop %v3969
    %v4025 = vmul.f32 1.0, %v4024
    %v4026 = vrcp.pop %v3970
    %v4027 = vmul.f32 1.0, %v4026
    %v4028 = vrcp.pop %v3971
    %v4029 = vmul.f32 1.0, %v4028
    %v4030 = vrcp.pop %v3972
    %v4031 = vmul.f32 1.0, %v4030
    %v4032 = vrcp.pop %v3973
    %v4033 = vmul.f32 1.0, %v4032
    %v4034 = vrcp.pop %v3974
    %v4035 = vmul.f32 1.0, %v4034
    %v4036 = vrcp.pop %v3975
    %v4037 = vmul.f32 1.0, %v4036
    %v4038 = vrcp.pop %v3976
    %v4039 = vmul.f32 1.0, %v4038
    %v4040 = vrcp.pop %v3977
    %v4041 = vmul.f32 1.0, %v4040
    %v4042 = vmul.f32 %v3818, %v3979
    %v4043 = vmul.f32 %v3819, %v3981
    %v4044 = vmul.f32 %v3820, %v3983
    %v4045 = vmul.f32 %v3821, %v3985
    %v4046 = vmul.f32 %v3822, %v3987
    %v4047 = vmul.f32 %v3823, %v3989
    %v4048 = vmul.f32 %v3824, %v3991
    %v4049 = vmul.f32 %v3825, %v3993
    %v4050 = vmul.f32 %v3826, %v3995
    %v4051 = vmul.f32 %v3827, %v3997
    %v4052 = vmul.f32 %v3828, %v3999
    %v4053 = vmul.f32 %v3829, %v4001
    %v4054 = vmul.f32 %v3830, %v4003
    %v4055 = vmul.f32 %v3831, %v4005
    %v4056 = vmul.f32 %v3832, %v4007
    %v4057 = vmul.f32 %v3833, %v4009
    %v4058 = vmul.f32 %v3834, %v4011
    %v4059 = vmul.f32 %v3835, %v4013
    %v4060 = vmul.f32 %v3836, %v4015
    %v4061 = vmul.f32 %v3837, %v4017
    %v4062 = vmul.f32 %v3838, %v4019
    %v4063 = vmul.f32 %v3839, %v4021
    %v4064 = vmul.f32 %v3840, %v4023
    %v4065 = vmul.f32 %v3841, %v4025
    %v4066 = vmul.f32 %v3842, %v4027
    %v4067 = vmul.f32 %v3843, %v4029
    %v4068 = vmul.f32 %v3844, %v4031
    %v4069 = vmul.f32 %v3845, %v4033
    %v4070 = vmul.f32 %v3846, %v4035
    %v4071 = vmul.f32 %v3847, %v4037
    %v4072 = vmul.f32 %v3848, %v4039
    %v4073 = vmul.f32 %v3849, %v4041
    %v4074 = vpack.c.bf16 %v4044, %v4042
    %v4075 = vpack.c.bf16 %v4045, %v4043
    %v4076 = vpack.c.bf16 %v527, %v424
    %v4077 = vpack.c.bf16 %v2177, %v2073
    %v4078 = vpack.c.bf16 %v3756, %v3754
    %v4079 = vpack.c.bf16 %v3757, %v3755
    %v4080 = vpack.c.bf16 %v4048, %v4046
    %v4081 = vpack.c.bf16 %v4049, %v4047
    %v4082 = vpack.c.bf16 %v733, %v630
    %v4083 = vpack.c.bf16 %v2385, %v2281
    %v4084 = vpack.c.bf16 %v3760, %v3758
    %v4085 = vpack.c.bf16 %v3761, %v3759
    %v4086 = vpack.c.bf16 %v4052, %v4050
    %v4087 = vpack.c.bf16 %v4053, %v4051
    %v4088 = vpack.c.bf16 %v939, %v836
    %v4089 = vpack.c.bf16 %v2593, %v2489
    %v4090 = vpack.c.bf16 %v3764, %v3762
    %v4091 = vpack.c.bf16 %v3765, %v3763
    %v4092 = vpack.c.bf16 %v4056, %v4054
    %v4093 = vpack.c.bf16 %v4057, %v4055
    %v4094 = vpack.c.bf16 %v1145, %v1042
    %v4095 = vpack.c.bf16 %v2801, %v2697
    %v4096 = vpack.c.bf16 %v3768, %v3766
    %v4097 = vpack.c.bf16 %v3769, %v3767
    %v4098 = vpack.c.bf16 %v4060, %v4058
    %v4099 = vpack.c.bf16 %v4061, %v4059
    %v4100 = vpack.c.bf16 %v1351, %v1248
    %v4101 = vpack.c.bf16 %v3009, %v2905
    %v4102 = vpack.c.bf16 %v3772, %v3770
    %v4103 = vpack.c.bf16 %v3773, %v3771
    %v4104 = vpack.c.bf16 %v4064, %v4062
    %v4105 = vpack.c.bf16 %v4065, %v4063
    %v4106 = vpack.c.bf16 %v1557, %v1454
    %v4107 = vpack.c.bf16 %v3217, %v3113
    %v4108 = vpack.c.bf16 %v3776, %v3774
    %v4109 = vpack.c.bf16 %v3777, %v3775
    %v4110 = vpack.c.bf16 %v4068, %v4066
    %v4111 = vpack.c.bf16 %v4069, %v4067
    %v4112 = vpack.c.bf16 %v1763, %v1660
    %v4113 = vpack.c.bf16 %v3425, %v3321
    %v4114 = vpack.c.bf16 %v3780, %v3778
    %v4115 = vpack.c.bf16 %v3781, %v3779
    %v4116 = vpack.c.bf16 %v4072, %v4070
    %v4117 = vpack.c.bf16 %v4073, %v4071
    %v4118 = vpack.c.bf16 %v1969, %v1866
    %v4119 = vpack.c.bf16 %v3633, %v3529
    %v4120 = vpack.c.bf16 %v3784, %v3782
    %v4121 = vpack.c.bf16 %v3785, %v3783
    %v4122 = vld [vmem:[#allocation3] sm:$0xff]
    %v4123 = vld [vmem:[#allocation3 + $0x8] sm:$0xff]
    %v4124 = vld [vmem:[#allocation3 + $0x10] sm:$0xff]
    %v4125 = vld [vmem:[#allocation3 + $0x18] sm:$0xff]
    %v4126 = vld [vmem:[#allocation3 + $0x20] sm:$0xff]
    %v4127 = vld [vmem:[#allocation3 + $0x28] sm:$0xff]
    %v4128 = vld [vmem:[#allocation3 + $0x30] sm:$0xff]
    %v4129 = vld [vmem:[#allocation3 + $0x38] sm:$0xff]
    %v4130 = vld [vmem:[#allocation3 + $0x40] sm:$0xff]
    %v4131 = vld [vmem:[#allocation3 + $0x48] sm:$0xff]
    %v4132 = vld [vmem:[#allocation3 + $0x50] sm:$0xff]
    %v4133 = vld [vmem:[#allocation3 + $0x58] sm:$0xff]
    %v4134 = vld [vmem:[#allocation3 + $0x60] sm:$0xff]
    %v4135 = vld [vmem:[#allocation3 + $0x68] sm:$0xff]
    %v4136 = vld [vmem:[#allocation3 + $0x70] sm:$0xff]
    %v4137 = vld [vmem:[#allocation3 + $0x78] sm:$0xff]
    %v4138 = vld [vmem:[#allocation3 + $0x80] sm:$0xff]
    %v4139 = vld [vmem:[#allocation3 + $0x88] sm:$0xff]
    %v4140 = vld [vmem:[#allocation3 + $0x90] sm:$0xff]
    %v4141 = vld [vmem:[#allocation3 + $0x98] sm:$0xff]
    %v4142 = vld [vmem:[#allocation3 + $0xa0] sm:$0xff]
    %v4143 = vld [vmem:[#allocation3 + $0xa8] sm:$0xff]
    %v4144 = vld [vmem:[#allocation3 + $0xb0] sm:$0xff]
    %v4145 = vld [vmem:[#allocation3 + $0xb8] sm:$0xff]
    %v4146 = vld [vmem:[#allocation3 + $0xc0] sm:$0xff]
    %v4147 = vld [vmem:[#allocation3 + $0xc8] sm:$0xff]
    %v4148 = vld [vmem:[#allocation3 + $0xd0] sm:$0xff]
    %v4149 = vld [vmem:[#allocation3 + $0xd8] sm:$0xff]
    %v4150 = vld [vmem:[#allocation3 + $0xe0] sm:$0xff]
    %v4151 = vld [vmem:[#allocation3 + $0xe8] sm:$0xff]
    %v4152 = vld [vmem:[#allocation3 + $0xf0] sm:$0xff]
    %v4153 = vld [vmem:[#allocation3 + $0xf8] sm:$0xff]
    %v4154 = vld [vmem:[#allocation3 + $0x100] sm:$0xff]
    %v4155 = vld [vmem:[#allocation3 + $0x108] sm:$0xff]
    %v4156 = vld [vmem:[#allocation3 + $0x110] sm:$0xff]
    %v4157 = vld [vmem:[#allocation3 + $0x118] sm:$0xff]
    %v4158 = vld [vmem:[#allocation3 + $0x120] sm:$0xff]
    %v4159 = vld [vmem:[#allocation3 + $0x128] sm:$0xff]
    %v4160 = vld [vmem:[#allocation3 + $0x130] sm:$0xff]
    %v4161 = vld [vmem:[#allocation3 + $0x138] sm:$0xff]
    %v4162 = vld [vmem:[#allocation3 + $0x140] sm:$0xff]
    %v4163 = vld [vmem:[#allocation3 + $0x148] sm:$0xff]
    %v4164 = vld [vmem:[#allocation3 + $0x150] sm:$0xff]
    %v4165 = vld [vmem:[#allocation3 + $0x158] sm:$0xff]
    %v4166 = vld [vmem:[#allocation3 + $0x160] sm:$0xff]
    %v4167 = vld [vmem:[#allocation3 + $0x168] sm:$0xff]
    %v4168 = vld [vmem:[#allocation3 + $0x170] sm:$0xff]
    %v4169 = vld [vmem:[#allocation3 + $0x178] sm:$0xff]
    %v4170 = vld [vmem:[#allocation3 + $0x180] sm:$0xff]
    %v4171 = vld [vmem:[#allocation3 + $0x188] sm:$0xff]
    %v4172 = vld [vmem:[#allocation3 + $0x190] sm:$0xff]
    %v4173 = vld [vmem:[#allocation3 + $0x198] sm:$0xff]
    %v4174 = vld [vmem:[#allocation3 + $0x1a0] sm:$0xff]
    %v4175 = vld [vmem:[#allocation3 + $0x1a8] sm:$0xff]
    %v4176 = vld [vmem:[#allocation3 + $0x1b0] sm:$0xff]
    %v4177 = vld [vmem:[#allocation3 + $0x1b8] sm:$0xff]
    %v4178 = vld [vmem:[#allocation3 + $0x1c0] sm:$0xff]
    %v4179 = vld [vmem:[#allocation3 + $0x1c8] sm:$0xff]
    %v4180 = vld [vmem:[#allocation3 + $0x1d0] sm:$0xff]
    %v4181 = vld [vmem:[#allocation3 + $0x1d8] sm:$0xff]
    %v4182 = vld [vmem:[#allocation3 + $0x1e0] sm:$0xff]
    %v4183 = vld [vmem:[#allocation3 + $0x1e8] sm:$0xff]
    %v4184 = vld [vmem:[#allocation3 + $0x1f0] sm:$0xff]
    %v4185 = vld [vmem:[#allocation3 + $0x1f8] sm:$0xff]
    %v4186 = vld [vmem:[#allocation3 + $0x200] sm:$0xff]
    %v4187 = vld [vmem:[#allocation3 + $0x208] sm:$0xff]
    %v4188 = vld [vmem:[#allocation3 + $0x210] sm:$0xff]
    %v4189 = vld [vmem:[#allocation3 + $0x218] sm:$0xff]
    %v4190 = vld [vmem:[#allocation3 + $0x220] sm:$0xff]
    %v4191 = vld [vmem:[#allocation3 + $0x228] sm:$0xff]
    %v4192 = vld [vmem:[#allocation3 + $0x230] sm:$0xff]
    %v4193 = vld [vmem:[#allocation3 + $0x238] sm:$0xff]
    %v4194 = vld [vmem:[#allocation3 + $0x240] sm:$0xff]
    %v4195 = vld [vmem:[#allocation3 + $0x248] sm:$0xff]
    %v4196 = vld [vmem:[#allocation3 + $0x250] sm:$0xff]
    %v4197 = vld [vmem:[#allocation3 + $0x258] sm:$0xff]
    %v4198 = vld [vmem:[#allocation3 + $0x260] sm:$0xff]
    %v4199 = vld [vmem:[#allocation3 + $0x268] sm:$0xff]
    %v4200 = vld [vmem:[#allocation3 + $0x270] sm:$0xff]
    %v4201 = vld [vmem:[#allocation3 + $0x278] sm:$0xff]
    %v4202 = vld [vmem:[#allocation3 + $0x280] sm:$0xff]
    %v4203 = vld [vmem:[#allocation3 + $0x288] sm:$0xff]
    %v4204 = vld [vmem:[#allocation3 + $0x290] sm:$0xff]
    %v4205 = vld [vmem:[#allocation3 + $0x298] sm:$0xff]
    %v4206 = vld [vmem:[#allocation3 + $0x2a0] sm:$0xff]
    %v4207 = vld [vmem:[#allocation3 + $0x2a8] sm:$0xff]
    %v4208 = vld [vmem:[#allocation3 + $0x2b0] sm:$0xff]
    %v4209 = vld [vmem:[#allocation3 + $0x2b8] sm:$0xff]
    %v4210 = vld [vmem:[#allocation3 + $0x2c0] sm:$0xff]
    %v4211 = vld [vmem:[#allocation3 + $0x2c8] sm:$0xff]
    %v4212 = vld [vmem:[#allocation3 + $0x2d0] sm:$0xff]
    %v4213 = vld [vmem:[#allocation3 + $0x2d8] sm:$0xff]
    %v4214 = vld [vmem:[#allocation3 + $0x2e0] sm:$0xff]
    %v4215 = vld [vmem:[#allocation3 + $0x2e8] sm:$0xff]
    %v4216 = vld [vmem:[#allocation3 + $0x2f0] sm:$0xff]
    %v4217 = vld [vmem:[#allocation3 + $0x2f8] sm:$0xff]
    %v4218 = vld [vmem:[#allocation3 + $0x300] sm:$0xff]
    %v4219 = vld [vmem:[#allocation3 + $0x308] sm:$0xff]
    %v4220 = vld [vmem:[#allocation3 + $0x310] sm:$0xff]
    %v4221 = vld [vmem:[#allocation3 + $0x318] sm:$0xff]
    %v4222 = vld [vmem:[#allocation3 + $0x320] sm:$0xff]
    %v4223 = vld [vmem:[#allocation3 + $0x328] sm:$0xff]
    %v4224 = vld [vmem:[#allocation3 + $0x330] sm:$0xff]
    %v4225 = vld [vmem:[#allocation3 + $0x338] sm:$0xff]
    %v4226 = vld [vmem:[#allocation3 + $0x340] sm:$0xff]
    %v4227 = vld [vmem:[#allocation3 + $0x348] sm:$0xff]
    %v4228 = vld [vmem:[#allocation3 + $0x350] sm:$0xff]
    %v4229 = vld [vmem:[#allocation3 + $0x358] sm:$0xff]
    %v4230 = vld [vmem:[#allocation3 + $0x360] sm:$0xff]
    %v4231 = vld [vmem:[#allocation3 + $0x368] sm:$0xff]
    %v4232 = vld [vmem:[#allocation3 + $0x370] sm:$0xff]
    %v4233 = vld [vmem:[#allocation3 + $0x378] sm:$0xff]
    %v4234 = vld [vmem:[#allocation3 + $0x380] sm:$0xff]
    %v4235 = vld [vmem:[#allocation3 + $0x388] sm:$0xff]
    %v4236 = vld [vmem:[#allocation3 + $0x390] sm:$0xff]
    %v4237 = vld [vmem:[#allocation3 + $0x398] sm:$0xff]
    %v4238 = vld [vmem:[#allocation3 + $0x3a0] sm:$0xff]
    %v4239 = vld [vmem:[#allocation3 + $0x3a8] sm:$0xff]
    %v4240 = vld [vmem:[#allocation3 + $0x3b0] sm:$0xff]
    %v4241 = vld [vmem:[#allocation3 + $0x3b8] sm:$0xff]
    %v4242 = vld [vmem:[#allocation3 + $0x3c0] sm:$0xff]
    %v4243 = vld [vmem:[#allocation3 + $0x3c8] sm:$0xff]
    %v4244 = vld [vmem:[#allocation3 + $0x3d0] sm:$0xff]
    %v4245 = vld [vmem:[#allocation3 + $0x3d8] sm:$0xff]
    %v4246 = vld [vmem:[#allocation3 + $0x3e0] sm:$0xff]
    %v4247 = vld [vmem:[#allocation3 + $0x3e8] sm:$0xff]
    %v4248 = vld [vmem:[#allocation3 + $0x3f0] sm:$0xff]
    %v4249 = vld [vmem:[#allocation3 + $0x3f8] sm:$0xff]
    %v4250 = vld [vmem:[#allocation3 + $0x400] sm:$0xff]
    %v4251 = vld [vmem:[#allocation3 + $0x408] sm:$0xff]
    %v4252 = vld [vmem:[#allocation3 + $0x410] sm:$0xff]
    %v4253 = vld [vmem:[#allocation3 + $0x418] sm:$0xff]
    %v4254 = vld [vmem:[#allocation3 + $0x420] sm:$0xff]
    %v4255 = vld [vmem:[#allocation3 + $0x428] sm:$0xff]
    %v4256 = vld [vmem:[#allocation3 + $0x430] sm:$0xff]
    %v4257 = vld [vmem:[#allocation3 + $0x438] sm:$0xff]
    %v4258 = vld [vmem:[#allocation3 + $0x440] sm:$0xff]
    %v4259 = vld [vmem:[#allocation3 + $0x448] sm:$0xff]
    %v4260 = vld [vmem:[#allocation3 + $0x450] sm:$0xff]
    %v4261 = vld [vmem:[#allocation3 + $0x458] sm:$0xff]
    %v4262 = vld [vmem:[#allocation3 + $0x460] sm:$0xff]
    %v4263 = vld [vmem:[#allocation3 + $0x468] sm:$0xff]
    %v4264 = vld [vmem:[#allocation3 + $0x470] sm:$0xff]
    %v4265 = vld [vmem:[#allocation3 + $0x478] sm:$0xff]
    %v4266 = vld [vmem:[#allocation3 + $0x480] sm:$0xff]
    %v4267 = vld [vmem:[#allocation3 + $0x488] sm:$0xff]
    %v4268 = vld [vmem:[#allocation3 + $0x490] sm:$0xff]
    %v4269 = vld [vmem:[#allocation3 + $0x498] sm:$0xff]
    %v4270 = vld [vmem:[#allocation3 + $0x4a0] sm:$0xff]
    %v4271 = vld [vmem:[#allocation3 + $0x4a8] sm:$0xff]
    %v4272 = vld [vmem:[#allocation3 + $0x4b0] sm:$0xff]
    %v4273 = vld [vmem:[#allocation3 + $0x4b8] sm:$0xff]
    %v4274 = vld [vmem:[#allocation3 + $0x4c0] sm:$0xff]
    %v4275 = vld [vmem:[#allocation3 + $0x4c8] sm:$0xff]
    %v4276 = vld [vmem:[#allocation3 + $0x4d0] sm:$0xff]
    %v4277 = vld [vmem:[#allocation3 + $0x4d8] sm:$0xff]
    %v4278 = vld [vmem:[#allocation3 + $0x4e0] sm:$0xff]
    %v4279 = vld [vmem:[#allocation3 + $0x4e8] sm:$0xff]
    %v4280 = vld [vmem:[#allocation3 + $0x4f0] sm:$0xff]
    %v4281 = vld [vmem:[#allocation3 + $0x4f8] sm:$0xff]
    %v4282 = vld [vmem:[#allocation3 + $0x500] sm:$0xff]
    %v4283 = vld [vmem:[#allocation3 + $0x508] sm:$0xff]
    %v4284 = vld [vmem:[#allocation3 + $0x510] sm:$0xff]
    %v4285 = vld [vmem:[#allocation3 + $0x518] sm:$0xff]
    %v4286 = vld [vmem:[#allocation3 + $0x520] sm:$0xff]
    %v4287 = vld [vmem:[#allocation3 + $0x528] sm:$0xff]
    %v4288 = vld [vmem:[#allocation3 + $0x530] sm:$0xff]
    %v4289 = vld [vmem:[#allocation3 + $0x538] sm:$0xff]
    %v4290 = vld [vmem:[#allocation3 + $0x540] sm:$0xff]
    %v4291 = vld [vmem:[#allocation3 + $0x548] sm:$0xff]
    %v4292 = vld [vmem:[#allocation3 + $0x550] sm:$0xff]
    %v4293 = vld [vmem:[#allocation3 + $0x558] sm:$0xff]
    %v4294 = vld [vmem:[#allocation3 + $0x560] sm:$0xff]
    %v4295 = vld [vmem:[#allocation3 + $0x568] sm:$0xff]
    %v4296 = vld [vmem:[#allocation3 + $0x570] sm:$0xff]
    %v4297 = vld [vmem:[#allocation3 + $0x578] sm:$0xff]
    %v4298 = vld [vmem:[#allocation3 + $0x580] sm:$0xff]
    %v4299 = vld [vmem:[#allocation3 + $0x588] sm:$0xff]
    %v4300 = vld [vmem:[#allocation3 + $0x590] sm:$0xff]
    %v4301 = vld [vmem:[#allocation3 + $0x598] sm:$0xff]
    %v4302 = vld [vmem:[#allocation3 + $0x5a0] sm:$0xff]
    %v4303 = vld [vmem:[#allocation3 + $0x5a8] sm:$0xff]
    %v4304 = vld [vmem:[#allocation3 + $0x5b0] sm:$0xff]
    %v4305 = vld [vmem:[#allocation3 + $0x5b8] sm:$0xff]
    %v4306 = vld [vmem:[#allocation3 + $0x5c0] sm:$0xff]
    %v4307 = vld [vmem:[#allocation3 + $0x5c8] sm:$0xff]
    %v4308 = vld [vmem:[#allocation3 + $0x5d0] sm:$0xff]
    %v4309 = vld [vmem:[#allocation3 + $0x5d8] sm:$0xff]
    %v4310 = vld [vmem:[#allocation3 + $0x5e0] sm:$0xff]
    %v4311 = vld [vmem:[#allocation3 + $0x5e8] sm:$0xff]
    %v4312 = vld [vmem:[#allocation3 + $0x5f0] sm:$0xff]
    %v4313 = vld [vmem:[#allocation3 + $0x5f8] sm:$0xff]
    %v4314 = vld [vmem:[%s7] sm:$0xf]
    %v4316 = vlaneseq
    %v4317 = vshrl.u32 %v4316, 7
    %v4318 = vsub.s32 0, %v4317
    %v4319 = vrot.slane %v4314, %v4318
    %v4320 = vlaneseq
    %v4321 = vshrl.u32 %v4320, 7
    %v4322 = vsub.s32 1, %v4321
    %v4323 = vrot.slane %v4314, %v4322
    %v4324 = vlaneseq
    %v4325 = vshrl.u32 %v4324, 7
    %v4326 = vsub.s32 2, %v4325
    %v4327 = vrot.slane %v4314, %v4326
    %v4328 = vlaneseq
    %v4329 = vshrl.u32 %v4328, 7
    %v4330 = vsub.s32 3, %v4329
    %v4331 = vrot.slane %v4314, %v4330
    %v4528 = vunpack.c.l.b16 %v4122
    %v4529 = vunpack.c.h.b16 %v4122
    %v4530 = vunpack.c.l.b16 %v4123
    %v4531 = vunpack.c.h.b16 %v4123
    %v4532 = vunpack.c.l.b16 %v4124
    %v4533 = vunpack.c.h.b16 %v4124
    %v4534 = vunpack.c.l.b16 %v4125
    %v4535 = vunpack.c.h.b16 %v4125
    %v4536 = vunpack.c.l.b16 %v4126
    %v4537 = vunpack.c.h.b16 %v4126
    %v4538 = vunpack.c.l.b16 %v4127
    %v4539 = vunpack.c.h.b16 %v4127
    %v4540 = vunpack.c.l.b16 %v4128
    %v4541 = vunpack.c.h.b16 %v4128
    %v4542 = vunpack.c.l.b16 %v4129
    %v4543 = vunpack.c.h.b16 %v4129
    %v4544 = vunpack.c.l.b16 %v4130
    %v4545 = vunpack.c.h.b16 %v4130
    %v4546 = vunpack.c.l.b16 %v4131
    %v4547 = vunpack.c.h.b16 %v4131
    %v4548 = vunpack.c.l.b16 %v4132
    %v4549 = vunpack.c.h.b16 %v4132
    %v4550 = vunpack.c.l.b16 %v4133
    %v4551 = vunpack.c.h.b16 %v4133
    %v4552 = vunpack.c.l.b16 %v4134
    %v4553 = vunpack.c.h.b16 %v4134
    %v4554 = vunpack.c.l.b16 %v4135
    %v4555 = vunpack.c.h.b16 %v4135
    %v4556 = vunpack.c.l.b16 %v4136
    %v4557 = vunpack.c.h.b16 %v4136
    %v4558 = vunpack.c.l.b16 %v4137
    %v4559 = vunpack.c.h.b16 %v4137
    %v4560 = vunpack.c.l.b16 %v4138
    %v4561 = vunpack.c.h.b16 %v4138
    %v4562 = vunpack.c.l.b16 %v4139
    %v4563 = vunpack.c.h.b16 %v4139
    %v4564 = vunpack.c.l.b16 %v4140
    %v4565 = vunpack.c.h.b16 %v4140
    %v4566 = vunpack.c.l.b16 %v4141
    %v4567 = vunpack.c.h.b16 %v4141
    %v4568 = vunpack.c.l.b16 %v4142
    %v4569 = vunpack.c.h.b16 %v4142
    %v4570 = vunpack.c.l.b16 %v4143
    %v4571 = vunpack.c.h.b16 %v4143
    %v4572 = vunpack.c.l.b16 %v4144
    %v4573 = vunpack.c.h.b16 %v4144
    %v4574 = vunpack.c.l.b16 %v4145
    %v4575 = vunpack.c.h.b16 %v4145
    %v4576 = vunpack.c.l.b16 %v4146
    %v4577 = vunpack.c.h.b16 %v4146
    %v4578 = vunpack.c.l.b16 %v4147
    %v4579 = vunpack.c.h.b16 %v4147
    %v4580 = vunpack.c.l.b16 %v4148
    %v4581 = vunpack.c.h.b16 %v4148
    %v4582 = vunpack.c.l.b16 %v4149
    %v4583 = vunpack.c.h.b16 %v4149
    %v4584 = vunpack.c.l.b16 %v4150
    %v4585 = vunpack.c.h.b16 %v4150
    %v4586 = vunpack.c.l.b16 %v4151
    %v4587 = vunpack.c.h.b16 %v4151
    %v4588 = vunpack.c.l.b16 %v4152
    %v4589 = vunpack.c.h.b16 %v4152
    %v4590 = vunpack.c.l.b16 %v4153
    %v4591 = vunpack.c.h.b16 %v4153
    %v4592 = vunpack.c.l.b16 %v4154
    %v4593 = vunpack.c.h.b16 %v4154
    %v4594 = vunpack.c.l.b16 %v4155
    %v4595 = vunpack.c.h.b16 %v4155
    %v4596 = vunpack.c.l.b16 %v4156
    %v4597 = vunpack.c.h.b16 %v4156
    %v4598 = vunpack.c.l.b16 %v4157
    %v4599 = vunpack.c.h.b16 %v4157
    %v4600 = vunpack.c.l.b16 %v4158
    %v4601 = vunpack.c.h.b16 %v4158
    %v4602 = vunpack.c.l.b16 %v4159
    %v4603 = vunpack.c.h.b16 %v4159
    %v4604 = vunpack.c.l.b16 %v4160
    %v4605 = vunpack.c.h.b16 %v4160
    %v4606 = vunpack.c.l.b16 %v4161
    %v4607 = vunpack.c.h.b16 %v4161
    %v4608 = vunpack.c.l.b16 %v4162
    %v4609 = vunpack.c.h.b16 %v4162
    %v4610 = vunpack.c.l.b16 %v4163
    %v4611 = vunpack.c.h.b16 %v4163
    %v4612 = vunpack.c.l.b16 %v4164
    %v4613 = vunpack.c.h.b16 %v4164
    %v4614 = vunpack.c.l.b16 %v4165
    %v4615 = vunpack.c.h.b16 %v4165
    %v4616 = vunpack.c.l.b16 %v4166
    %v4617 = vunpack.c.h.b16 %v4166
    %v4618 = vunpack.c.l.b16 %v4167
    %v4619 = vunpack.c.h.b16 %v4167
    %v4620 = vunpack.c.l.b16 %v4168
    %v4621 = vunpack.c.h.b16 %v4168
    %v4622 = vunpack.c.l.b16 %v4169
    %v4623 = vunpack.c.h.b16 %v4169
    %v4624 = vunpack.c.l.b16 %v4170
    %v4625 = vunpack.c.h.b16 %v4170
    %v4626 = vunpack.c.l.b16 %v4171
    %v4627 = vunpack.c.h.b16 %v4171
    %v4628 = vunpack.c.l.b16 %v4172
    %v4629 = vunpack.c.h.b16 %v4172
    %v4630 = vunpack.c.l.b16 %v4173
    %v4631 = vunpack.c.h.b16 %v4173
    %v4632 = vunpack.c.l.b16 %v4174
    %v4633 = vunpack.c.h.b16 %v4174
    %v4634 = vunpack.c.l.b16 %v4175
    %v4635 = vunpack.c.h.b16 %v4175
    %v4636 = vunpack.c.l.b16 %v4176
    %v4637 = vunpack.c.h.b16 %v4176
    %v4638 = vunpack.c.l.b16 %v4177
    %v4639 = vunpack.c.h.b16 %v4177
    %v4640 = vunpack.c.l.b16 %v4178
    %v4641 = vunpack.c.h.b16 %v4178
    %v4642 = vunpack.c.l.b16 %v4179
    %v4643 = vunpack.c.h.b16 %v4179
    %v4644 = vunpack.c.l.b16 %v4180
    %v4645 = vunpack.c.h.b16 %v4180
    %v4646 = vunpack.c.l.b16 %v4181
    %v4647 = vunpack.c.h.b16 %v4181
    %v4648 = vunpack.c.l.b16 %v4182
    %v4649 = vunpack.c.h.b16 %v4182
    %v4650 = vunpack.c.l.b16 %v4183
    %v4651 = vunpack.c.h.b16 %v4183
    %v4652 = vunpack.c.l.b16 %v4184
    %v4653 = vunpack.c.h.b16 %v4184
    %v4654 = vunpack.c.l.b16 %v4185
    %v4655 = vunpack.c.h.b16 %v4185
    %v4656 = vunpack.c.l.b16 %v4186
    %v4657 = vunpack.c.h.b16 %v4186
    %v4658 = vunpack.c.l.b16 %v4187
    %v4659 = vunpack.c.h.b16 %v4187
    %v4660 = vunpack.c.l.b16 %v4188
    %v4661 = vunpack.c.h.b16 %v4188
    %v4662 = vunpack.c.l.b16 %v4189
    %v4663 = vunpack.c.h.b16 %v4189
    %v4664 = vunpack.c.l.b16 %v4190
    %v4665 = vunpack.c.h.b16 %v4190
    %v4666 = vunpack.c.l.b16 %v4191
    %v4667 = vunpack.c.h.b16 %v4191
    %v4668 = vunpack.c.l.b16 %v4192
    %v4669 = vunpack.c.h.b16 %v4192
    %v4670 = vunpack.c.l.b16 %v4193
    %v4671 = vunpack.c.h.b16 %v4193
    %v4672 = vunpack.c.l.b16 %v4194
    %v4673 = vunpack.c.h.b16 %v4194
    %v4674 = vunpack.c.l.b16 %v4195
    %v4675 = vunpack.c.h.b16 %v4195
    %v4676 = vunpack.c.l.b16 %v4196
    %v4677 = vunpack.c.h.b16 %v4196
    %v4678 = vunpack.c.l.b16 %v4197
    %v4679 = vunpack.c.h.b16 %v4197
    %v4680 = vunpack.c.l.b16 %v4198
    %v4681 = vunpack.c.h.b16 %v4198
    %v4682 = vunpack.c.l.b16 %v4199
    %v4683 = vunpack.c.h.b16 %v4199
    %v4684 = vunpack.c.l.b16 %v4200
    %v4685 = vunpack.c.h.b16 %v4200
    %v4686 = vunpack.c.l.b16 %v4201
    %v4687 = vunpack.c.h.b16 %v4201
    %v4688 = vunpack.c.l.b16 %v4202
    %v4689 = vunpack.c.h.b16 %v4202
    %v4690 = vunpack.c.l.b16 %v4203
    %v4691 = vunpack.c.h.b16 %v4203
    %v4692 = vunpack.c.l.b16 %v4204
    %v4693 = vunpack.c.h.b16 %v4204
    %v4694 = vunpack.c.l.b16 %v4205
    %v4695 = vunpack.c.h.b16 %v4205
    %v4696 = vunpack.c.l.b16 %v4206
    %v4697 = vunpack.c.h.b16 %v4206
    %v4698 = vunpack.c.l.b16 %v4207
    %v4699 = vunpack.c.h.b16 %v4207
    %v4700 = vunpack.c.l.b16 %v4208
    %v4701 = vunpack.c.h.b16 %v4208
    %v4702 = vunpack.c.l.b16 %v4209
    %v4703 = vunpack.c.h.b16 %v4209
    %v4704 = vunpack.c.l.b16 %v4210
    %v4705 = vunpack.c.h.b16 %v4210
    %v4706 = vunpack.c.l.b16 %v4211
    %v4707 = vunpack.c.h.b16 %v4211
    %v4708 = vunpack.c.l.b16 %v4212
    %v4709 = vunpack.c.h.b16 %v4212
    %v4710 = vunpack.c.l.b16 %v4213
    %v4711 = vunpack.c.h.b16 %v4213
    %v4712 = vunpack.c.l.b16 %v4214
    %v4713 = vunpack.c.h.b16 %v4214
    %v4714 = vunpack.c.l.b16 %v4215
    %v4715 = vunpack.c.h.b16 %v4215
    %v4716 = vunpack.c.l.b16 %v4216
    %v4717 = vunpack.c.h.b16 %v4216
    %v4718 = vunpack.c.l.b16 %v4217
    %v4719 = vunpack.c.h.b16 %v4217
    %v4720 = vunpack.c.l.b16 %v4218
    %v4721 = vunpack.c.h.b16 %v4218
    %v4722 = vunpack.c.l.b16 %v4219
    %v4723 = vunpack.c.h.b16 %v4219
    %v4724 = vunpack.c.l.b16 %v4220
    %v4725 = vunpack.c.h.b16 %v4220
    %v4726 = vunpack.c.l.b16 %v4221
    %v4727 = vunpack.c.h.b16 %v4221
    %v4728 = vunpack.c.l.b16 %v4222
    %v4729 = vunpack.c.h.b16 %v4222
    %v4730 = vunpack.c.l.b16 %v4223
    %v4731 = vunpack.c.h.b16 %v4223
    %v4732 = vunpack.c.l.b16 %v4224
    %v4733 = vunpack.c.h.b16 %v4224
    %v4734 = vunpack.c.l.b16 %v4225
    %v4735 = vunpack.c.h.b16 %v4225
    %v4736 = vunpack.c.l.b16 %v4226
    %v4737 = vunpack.c.h.b16 %v4226
    %v4738 = vunpack.c.l.b16 %v4227
    %v4739 = vunpack.c.h.b16 %v4227
    %v4740 = vunpack.c.l.b16 %v4228
    %v4741 = vunpack.c.h.b16 %v4228
    %v4742 = vunpack.c.l.b16 %v4229
    %v4743 = vunpack.c.h.b16 %v4229
    %v4744 = vunpack.c.l.b16 %v4230
    %v4745 = vunpack.c.h.b16 %v4230
    %v4746 = vunpack.c.l.b16 %v4231
    %v4747 = vunpack.c.h.b16 %v4231
    %v4748 = vunpack.c.l.b16 %v4232
    %v4749 = vunpack.c.h.b16 %v4232
    %v4750 = vunpack.c.l.b16 %v4233
    %v4751 = vunpack.c.h.b16 %v4233
    %v4752 = vunpack.c.l.b16 %v4234
    %v4753 = vunpack.c.h.b16 %v4234
    %v4754 = vunpack.c.l.b16 %v4235
    %v4755 = vunpack.c.h.b16 %v4235
    %v4756 = vunpack.c.l.b16 %v4236
    %v4757 = vunpack.c.h.b16 %v4236
    %v4758 = vunpack.c.l.b16 %v4237
    %v4759 = vunpack.c.h.b16 %v4237
    %v4760 = vunpack.c.l.b16 %v4238
    %v4761 = vunpack.c.h.b16 %v4238
    %v4762 = vunpack.c.l.b16 %v4239
    %v4763 = vunpack.c.h.b16 %v4239
    %v4764 = vunpack.c.l.b16 %v4240
    %v4765 = vunpack.c.h.b16 %v4240
    %v4766 = vunpack.c.l.b16 %v4241
    %v4767 = vunpack.c.h.b16 %v4241
    %v4768 = vunpack.c.l.b16 %v4242
    %v4769 = vunpack.c.h.b16 %v4242
    %v4770 = vunpack.c.l.b16 %v4243
    %v4771 = vunpack.c.h.b16 %v4243
    %v4772 = vunpack.c.l.b16 %v4244
    %v4773 = vunpack.c.h.b16 %v4244
    %v4774 = vunpack.c.l.b16 %v4245
    %v4775 = vunpack.c.h.b16 %v4245
    %v4776 = vunpack.c.l.b16 %v4246
    %v4777 = vunpack.c.h.b16 %v4246
    %v4778 = vunpack.c.l.b16 %v4247
    %v4779 = vunpack.c.h.b16 %v4247
    %v4780 = vunpack.c.l.b16 %v4248
    %v4781 = vunpack.c.h.b16 %v4248
    %v4782 = vunpack.c.l.b16 %v4249
    %v4783 = vunpack.c.h.b16 %v4249
    %v4784 = vunpack.c.l.b16 %v4250
    %v4785 = vunpack.c.h.b16 %v4250
    %v4786 = vunpack.c.l.b16 %v4251
    %v4787 = vunpack.c.h.b16 %v4251
    %v4788 = vunpack.c.l.b16 %v4252
    %v4789 = vunpack.c.h.b16 %v4252
    %v4790 = vunpack.c.l.b16 %v4253
    %v4791 = vunpack.c.h.b16 %v4253
    %v4792 = vunpack.c.l.b16 %v4254
    %v4793 = vunpack.c.h.b16 %v4254
    %v4794 = vunpack.c.l.b16 %v4255
    %v4795 = vunpack.c.h.b16 %v4255
    %v4796 = vunpack.c.l.b16 %v4256
    %v4797 = vunpack.c.h.b16 %v4256
    %v4798 = vunpack.c.l.b16 %v4257
    %v4799 = vunpack.c.h.b16 %v4257
    %v4800 = vunpack.c.l.b16 %v4258
    %v4801 = vunpack.c.h.b16 %v4258
    %v4802 = vunpack.c.l.b16 %v4259
    %v4803 = vunpack.c.h.b16 %v4259
    %v4804 = vunpack.c.l.b16 %v4260
    %v4805 = vunpack.c.h.b16 %v4260
    %v4806 = vunpack.c.l.b16 %v4261
    %v4807 = vunpack.c.h.b16 %v4261
    %v4808 = vunpack.c.l.b16 %v4262
    %v4809 = vunpack.c.h.b16 %v4262
    %v4810 = vunpack.c.l.b16 %v4263
    %v4811 = vunpack.c.h.b16 %v4263
    %v4812 = vunpack.c.l.b16 %v4264
    %v4813 = vunpack.c.h.b16 %v4264
    %v4814 = vunpack.c.l.b16 %v4265
    %v4815 = vunpack.c.h.b16 %v4265
    %v4816 = vunpack.c.l.b16 %v4266
    %v4817 = vunpack.c.h.b16 %v4266
    %v4818 = vunpack.c.l.b16 %v4267
    %v4819 = vunpack.c.h.b16 %v4267
    %v4820 = vunpack.c.l.b16 %v4268
    %v4821 = vunpack.c.h.b16 %v4268
    %v4822 = vunpack.c.l.b16 %v4269
    %v4823 = vunpack.c.h.b16 %v4269
    %v4824 = vunpack.c.l.b16 %v4270
    %v4825 = vunpack.c.h.b16 %v4270
    %v4826 = vunpack.c.l.b16 %v4271
    %v4827 = vunpack.c.h.b16 %v4271
    %v4828 = vunpack.c.l.b16 %v4272
    %v4829 = vunpack.c.h.b16 %v4272
    %v4830 = vunpack.c.l.b16 %v4273
    %v4831 = vunpack.c.h.b16 %v4273
    %v4832 = vunpack.c.l.b16 %v4274
    %v4833 = vunpack.c.h.b16 %v4274
    %v4834 = vunpack.c.l.b16 %v4275
    %v4835 = vunpack.c.h.b16 %v4275
    %v4836 = vunpack.c.l.b16 %v4276
    %v4837 = vunpack.c.h.b16 %v4276
    %v4838 = vunpack.c.l.b16 %v4277
    %v4839 = vunpack.c.h.b16 %v4277
    %v4840 = vunpack.c.l.b16 %v4278
    %v4841 = vunpack.c.h.b16 %v4278
    %v4842 = vunpack.c.l.b16 %v4279
    %v4843 = vunpack.c.h.b16 %v4279
    %v4844 = vunpack.c.l.b16 %v4280
    %v4845 = vunpack.c.h.b16 %v4280
    %v4846 = vunpack.c.l.b16 %v4281
    %v4847 = vunpack.c.h.b16 %v4281
    %v4848 = vunpack.c.l.b16 %v4282
    %v4849 = vunpack.c.h.b16 %v4282
    %v4850 = vunpack.c.l.b16 %v4283
    %v4851 = vunpack.c.h.b16 %v4283
    %v4852 = vunpack.c.l.b16 %v4284
    %v4853 = vunpack.c.h.b16 %v4284
    %v4854 = vunpack.c.l.b16 %v4285
    %v4855 = vunpack.c.h.b16 %v4285
    %v4856 = vunpack.c.l.b16 %v4286
    %v4857 = vunpack.c.h.b16 %v4286
    %v4858 = vunpack.c.l.b16 %v4287
    %v4859 = vunpack.c.h.b16 %v4287
    %v4860 = vunpack.c.l.b16 %v4288
    %v4861 = vunpack.c.h.b16 %v4288
    %v4862 = vunpack.c.l.b16 %v4289
    %v4863 = vunpack.c.h.b16 %v4289
    %v4864 = vunpack.c.l.b16 %v4290
    %v4865 = vunpack.c.h.b16 %v4290
    %v4866 = vunpack.c.l.b16 %v4291
    %v4867 = vunpack.c.h.b16 %v4291
    %v4868 = vunpack.c.l.b16 %v4292
    %v4869 = vunpack.c.h.b16 %v4292
    %v4870 = vunpack.c.l.b16 %v4293
    %v4871 = vunpack.c.h.b16 %v4293
    %v4872 = vunpack.c.l.b16 %v4294
    %v4873 = vunpack.c.h.b16 %v4294
    %v4874 = vunpack.c.l.b16 %v4295
    %v4875 = vunpack.c.h.b16 %v4295
    %v4876 = vunpack.c.l.b16 %v4296
    %v4877 = vunpack.c.h.b16 %v4296
    %v4878 = vunpack.c.l.b16 %v4297
    %v4879 = vunpack.c.h.b16 %v4297
    %v4880 = vunpack.c.l.b16 %v4298
    %v4881 = vunpack.c.h.b16 %v4298
    %v4882 = vunpack.c.l.b16 %v4299
    %v4883 = vunpack.c.h.b16 %v4299
    %v4884 = vunpack.c.l.b16 %v4300
    %v4885 = vunpack.c.h.b16 %v4300
    %v4886 = vunpack.c.l.b16 %v4301
    %v4887 = vunpack.c.h.b16 %v4301
    %v4888 = vunpack.c.l.b16 %v4302
    %v4889 = vunpack.c.h.b16 %v4302
    %v4890 = vunpack.c.l.b16 %v4303
    %v4891 = vunpack.c.h.b16 %v4303
    %v4892 = vunpack.c.l.b16 %v4304
    %v4893 = vunpack.c.h.b16 %v4304
    %v4894 = vunpack.c.l.b16 %v4305
    %v4895 = vunpack.c.h.b16 %v4305
    %v4896 = vunpack.c.l.b16 %v4306
    %v4897 = vunpack.c.h.b16 %v4306
    %v4898 = vunpack.c.l.b16 %v4307
    %v4899 = vunpack.c.h.b16 %v4307
    %v4900 = vunpack.c.l.b16 %v4308
    %v4901 = vunpack.c.h.b16 %v4308
    %v4902 = vunpack.c.l.b16 %v4309
    %v4903 = vunpack.c.h.b16 %v4309
    %v4904 = vunpack.c.l.b16 %v4310
    %v4905 = vunpack.c.h.b16 %v4310
    %v4906 = vunpack.c.l.b16 %v4311
    %v4907 = vunpack.c.h.b16 %v4311
    %v4908 = vunpack.c.l.b16 %v4312
    %v4909 = vunpack.c.h.b16 %v4312
    %v4910 = vunpack.c.l.b16 %v4313
    %v4911 = vunpack.c.h.b16 %v4313
    %v4912 = vpack.c.b16 %v4532, %v4528
    %v4913 = vpack.c.b16 %v4533, %v4529
    %v4914 = vpack.c.b16 %v4534, %v4530
    %v4915 = vpack.c.b16 %v4535, %v4531
    %v4916 = vpack.c.b16 %v4540, %v4536
    %v4917 = vpack.c.b16 %v4541, %v4537
    %v4918 = vpack.c.b16 %v4542, %v4538
    %v4919 = vpack.c.b16 %v4543, %v4539
    %v4920 = vpack.c.b16 %v4548, %v4544
    %v4921 = vpack.c.b16 %v4549, %v4545
    %v4922 = vpack.c.b16 %v4550, %v4546
    %v4923 = vpack.c.b16 %v4551, %v4547
    %v4924 = vpack.c.b16 %v4556, %v4552
    %v4925 = vpack.c.b16 %v4557, %v4553
    %v4926 = vpack.c.b16 %v4558, %v4554
    %v4927 = vpack.c.b16 %v4559, %v4555
    %v4928 = vpack.c.b16 %v4564, %v4560
    %v4929 = vpack.c.b16 %v4565, %v4561
    %v4930 = vpack.c.b16 %v4566, %v4562
    %v4931 = vpack.c.b16 %v4567, %v4563
    %v4932 = vpack.c.b16 %v4572, %v4568
    %v4933 = vpack.c.b16 %v4573, %v4569
    %v4934 = vpack.c.b16 %v4574, %v4570
    %v4935 = vpack.c.b16 %v4575, %v4571
    %v4936 = vpack.c.b16 %v4580, %v4576
    %v4937 = vpack.c.b16 %v4581, %v4577
    %v4938 = vpack.c.b16 %v4582, %v4578
    %v4939 = vpack.c.b16 %v4583, %v4579
    %v4940 = vpack.c.b16 %v4588, %v4584
    %v4941 = vpack.c.b16 %v4589, %v4585
    %v4942 = vpack.c.b16 %v4590, %v4586
    %v4943 = vpack.c.b16 %v4591, %v4587
    %v4944 = vpack.c.b16 %v4596, %v4592
    %v4945 = vpack.c.b16 %v4597, %v4593
    %v4946 = vpack.c.b16 %v4598, %v4594
    %v4947 = vpack.c.b16 %v4599, %v4595
    %v4948 = vpack.c.b16 %v4604, %v4600
    %v4949 = vpack.c.b16 %v4605, %v4601
    %v4950 = vpack.c.b16 %v4606, %v4602
    %v4951 = vpack.c.b16 %v4607, %v4603
    %v4952 = vpack.c.b16 %v4612, %v4608
    %v4953 = vpack.c.b16 %v4613, %v4609
    %v4954 = vpack.c.b16 %v4614, %v4610
    %v4955 = vpack.c.b16 %v4615, %v4611
    %v4956 = vpack.c.b16 %v4620, %v4616
    %v4957 = vpack.c.b16 %v4621, %v4617
    %v4958 = vpack.c.b16 %v4622, %v4618
    %v4959 = vpack.c.b16 %v4623, %v4619
    %v4960 = vpack.c.b16 %v4628, %v4624
    %v4961 = vpack.c.b16 %v4629, %v4625
    %v4962 = vpack.c.b16 %v4630, %v4626
    %v4963 = vpack.c.b16 %v4631, %v4627
    %v4964 = vpack.c.b16 %v4636, %v4632
    %v4965 = vpack.c.b16 %v4637, %v4633
    %v4966 = vpack.c.b16 %v4638, %v4634
    %v4967 = vpack.c.b16 %v4639, %v4635
    %v4968 = vpack.c.b16 %v4644, %v4640
    %v4969 = vpack.c.b16 %v4645, %v4641
    %v4970 = vpack.c.b16 %v4646, %v4642
    %v4971 = vpack.c.b16 %v4647, %v4643
    %v4972 = vpack.c.b16 %v4652, %v4648
    %v4973 = vpack.c.b16 %v4653, %v4649
    %v4974 = vpack.c.b16 %v4654, %v4650
    %v4975 = vpack.c.b16 %v4655, %v4651
    %v4976 = vpack.c.b16 %v4660, %v4656
    %v4977 = vpack.c.b16 %v4661, %v4657
    %v4978 = vpack.c.b16 %v4662, %v4658
    %v4979 = vpack.c.b16 %v4663, %v4659
    %v4980 = vpack.c.b16 %v4668, %v4664
    %v4981 = vpack.c.b16 %v4669, %v4665
    %v4982 = vpack.c.b16 %v4670, %v4666
    %v4983 = vpack.c.b16 %v4671, %v4667
    %v4984 = vpack.c.b16 %v4676, %v4672
    %v4985 = vpack.c.b16 %v4677, %v4673
    %v4986 = vpack.c.b16 %v4678, %v4674
    %v4987 = vpack.c.b16 %v4679, %v4675
    %v4988 = vpack.c.b16 %v4684, %v4680
    %v4989 = vpack.c.b16 %v4685, %v4681
    %v4990 = vpack.c.b16 %v4686, %v4682
    %v4991 = vpack.c.b16 %v4687, %v4683
    %v4992 = vpack.c.b16 %v4692, %v4688
    %v4993 = vpack.c.b16 %v4693, %v4689
    %v4994 = vpack.c.b16 %v4694, %v4690
    %v4995 = vpack.c.b16 %v4695, %v4691
    %v4996 = vpack.c.b16 %v4700, %v4696
    %v4997 = vpack.c.b16 %v4701, %v4697
    %v4998 = vpack.c.b16 %v4702, %v4698
    %v4999 = vpack.c.b16 %v4703, %v4699
    %v5000 = vpack.c.b16 %v4708, %v4704
    %v5001 = vpack.c.b16 %v4709, %v4705
    %v5002 = vpack.c.b16 %v4710, %v4706
    %v5003 = vpack.c.b16 %v4711, %v4707
    %v5004 = vpack.c.b16 %v4716, %v4712
    %v5005 = vpack.c.b16 %v4717, %v4713
    %v5006 = vpack.c.b16 %v4718, %v4714
    %v5007 = vpack.c.b16 %v4719, %v4715
    %v5008 = vpack.c.b16 %v4724, %v4720
    %v5009 = vpack.c.b16 %v4725, %v4721
    %v5010 = vpack.c.b16 %v4726, %v4722
    %v5011 = vpack.c.b16 %v4727, %v4723
    %v5012 = vpack.c.b16 %v4732, %v4728
    %v5013 = vpack.c.b16 %v4733, %v4729
    %v5014 = vpack.c.b16 %v4734, %v4730
    %v5015 = vpack.c.b16 %v4735, %v4731
    %v5016 = vpack.c.b16 %v4740, %v4736
    %v5017 = vpack.c.b16 %v4741, %v4737
    %v5018 = vpack.c.b16 %v4742, %v4738
    %v5019 = vpack.c.b16 %v4743, %v4739
    %v5020 = vpack.c.b16 %v4748, %v4744
    %v5021 = vpack.c.b16 %v4749, %v4745
    %v5022 = vpack.c.b16 %v4750, %v4746
    %v5023 = vpack.c.b16 %v4751, %v4747
    %v5024 = vpack.c.b16 %v4756, %v4752
    %v5025 = vpack.c.b16 %v4757, %v4753
    %v5026 = vpack.c.b16 %v4758, %v4754
    %v5027 = vpack.c.b16 %v4759, %v4755
    %v5028 = vpack.c.b16 %v4764, %v4760
    %v5029 = vpack.c.b16 %v4765, %v4761
    %v5030 = vpack.c.b16 %v4766, %v4762
    %v5031 = vpack.c.b16 %v4767, %v4763
    %v5032 = vpack.c.b16 %v4772, %v4768
    %v5033 = vpack.c.b16 %v4773, %v4769
    %v5034 = vpack.c.b16 %v4774, %v4770
    %v5035 = vpack.c.b16 %v4775, %v4771
    %v5036 = vpack.c.b16 %v4780, %v4776
    %v5037 = vpack.c.b16 %v4781, %v4777
    %v5038 = vpack.c.b16 %v4782, %v4778
    %v5039 = vpack.c.b16 %v4783, %v4779
    %v5040 = vpack.c.b16 %v4788, %v4784
    %v5041 = vpack.c.b16 %v4789, %v4785
    %v5042 = vpack.c.b16 %v4790, %v4786
    %v5043 = vpack.c.b16 %v4791, %v4787
    %v5044 = vpack.c.b16 %v4796, %v4792
    %v5045 = vpack.c.b16 %v4797, %v4793
    %v5046 = vpack.c.b16 %v4798, %v4794
    %v5047 = vpack.c.b16 %v4799, %v4795
    %v5048 = vpack.c.b16 %v4804, %v4800
    %v5049 = vpack.c.b16 %v4805, %v4801
    %v5050 = vpack.c.b16 %v4806, %v4802
    %v5051 = vpack.c.b16 %v4807, %v4803
    %v5052 = vpack.c.b16 %v4812, %v4808
    %v5053 = vpack.c.b16 %v4813, %v4809
    %v5054 = vpack.c.b16 %v4814, %v4810
    %v5055 = vpack.c.b16 %v4815, %v4811
    %v5056 = vpack.c.b16 %v4820, %v4816
    %v5057 = vpack.c.b16 %v4821, %v4817
    %v5058 = vpack.c.b16 %v4822, %v4818
    %v5059 = vpack.c.b16 %v4823, %v4819
    %v5060 = vpack.c.b16 %v4828, %v4824
    %v5061 = vpack.c.b16 %v4829, %v4825
    %v5062 = vpack.c.b16 %v4830, %v4826
    %v5063 = vpack.c.b16 %v4831, %v4827
    %v5064 = vpack.c.b16 %v4836, %v4832
    %v5065 = vpack.c.b16 %v4837, %v4833
    %v5066 = vpack.c.b16 %v4838, %v4834
    %v5067 = vpack.c.b16 %v4839, %v4835
    %v5068 = vpack.c.b16 %v4844, %v4840
    %v5069 = vpack.c.b16 %v4845, %v4841
    %v5070 = vpack.c.b16 %v4846, %v4842
    %v5071 = vpack.c.b16 %v4847, %v4843
    %v5072 = vpack.c.b16 %v4852, %v4848
    %v5073 = vpack.c.b16 %v4853, %v4849
    %v5074 = vpack.c.b16 %v4854, %v4850
    %v5075 = vpack.c.b16 %v4855, %v4851
    %v5076 = vpack.c.b16 %v4860, %v4856
    %v5077 = vpack.c.b16 %v4861, %v4857
    %v5078 = vpack.c.b16 %v4862, %v4858
    %v5079 = vpack.c.b16 %v4863, %v4859
    %v5080 = vpack.c.b16 %v4868, %v4864
    %v5081 = vpack.c.b16 %v4869, %v4865
    %v5082 = vpack.c.b16 %v4870, %v4866
    %v5083 = vpack.c.b16 %v4871, %v4867
    %v5084 = vpack.c.b16 %v4876, %v4872
    %v5085 = vpack.c.b16 %v4877, %v4873
    %v5086 = vpack.c.b16 %v4878, %v4874
    %v5087 = vpack.c.b16 %v4879, %v4875
    %v5088 = vpack.c.b16 %v4884, %v4880
    %v5089 = vpack.c.b16 %v4885, %v4881
    %v5090 = vpack.c.b16 %v4886, %v4882
    %v5091 = vpack.c.b16 %v4887, %v4883
    %v5092 = vpack.c.b16 %v4892, %v4888
    %v5093 = vpack.c.b16 %v4893, %v4889
    %v5094 = vpack.c.b16 %v4894, %v4890
    %v5095 = vpack.c.b16 %v4895, %v4891
    %v5096 = vpack.c.b16 %v4900, %v4896
    %v5097 = vpack.c.b16 %v4901, %v4897
    %v5098 = vpack.c.b16 %v4902, %v4898
    %v5099 = vpack.c.b16 %v4903, %v4899
    %v5100 = vpack.c.b16 %v4908, %v4904
    %v5101 = vpack.c.b16 %v4909, %v4905
    %v5102 = vpack.c.b16 %v4910, %v4906
    %v5103 = vpack.c.b16 %v4911, %v4907
    %5296 = vmatprep.subr.bf16.mxu0 %v4913
    %5297 = vmatpush1.bf16.msra.mxu0 %v4912
    %5298 = vmatprep.subr.bf16.mxu0 %v4917
    %5299 = vmatpush1.bf16.msra.mxu0 %v4916
    %5300 = vmatprep.subr.bf16.mxu0 %v4921
    %5301 = vmatpush1.bf16.msra.mxu0 %v4920
    %5302 = vmatprep.subr.bf16.mxu0 %v4925
    %5303 = vmatpush1.bf16.msra.mxu0 %v4924
    %5304 = vmatprep.subr.bf16.mxu0 %v4929
    %5305 = vmatpush1.bf16.msra.mxu0 %v4928
    %5306 = vmatprep.subr.bf16.mxu0 %v4933
    %5307 = vmatpush1.bf16.msra.mxu0 %v4932
    %5308 = vmatprep.subr.bf16.mxu0 %v4937
    %5309 = vmatpush1.bf16.msra.mxu0 %v4936
    %5310 = vmatprep.subr.bf16.mxu0 %v4941
    %5311 = vmatpush1.bf16.msra.mxu0 %v4940
    %5312 = vmatprep.subr.bf16.mxu0 %v4945
    %5313 = vmatpush1.bf16.msra.mxu0 %v4944
    %5314 = vmatprep.subr.bf16.mxu0 %v4949
    %5315 = vmatpush1.bf16.msra.mxu0 %v4948
    %5316 = vmatprep.subr.bf16.mxu0 %v4953
    %5317 = vmatpush1.bf16.msra.mxu0 %v4952
    %5318 = vmatprep.subr.bf16.mxu0 %v4957
    %5319 = vmatpush1.bf16.msra.mxu0 %v4956
    %5320 = vmatprep.subr.bf16.mxu0 %v4961
    %5321 = vmatpush1.bf16.msra.mxu0 %v4960
    %5322 = vmatprep.subr.bf16.mxu0 %v4965
    %5323 = vmatpush1.bf16.msra.mxu0 %v4964
    %5324 = vmatprep.subr.bf16.mxu0 %v4969
    %5325 = vmatpush1.bf16.msra.mxu0 %v4968
    %5326 = vmatprep.subr.bf16.mxu0 %v4973
    %5327 = vmatpush1.bf16.msra.mxu0 %v4972
    %5328 = vmatprep.mubr.bf16.mxu0 %v4075
    %5329 = vmatmul.mubr.bf16.gmra.mrb[0].mxu0 %v4074
    %v5330 = vpop.f32.mrb[0].mxu0
    %v5331 = vadd.f32 %v4319, %v5330
    %v5332 = vpop.f32.mrb[0].mxu0
    %v5333 = vadd.f32 %v4323, %v5332
    %v5334 = vpop.f32.mrb[0].mxu0
    %v5335 = vadd.f32 %v4319, %v5334
    %v5336 = vpop.f32.mrb[0].mxu0
    %v5337 = vadd.f32 %v4323, %v5336
    %5338 = vmatprep.mubr.bf16.mxu0 %v4081
    %5339 = vmatmul.mubr.bf16.gmra.mrb[0].mxu0 %v4080
    %v5340 = vpop.f32.mrb[0].mxu0
    %v5341 = vadd.f32 %v4319, %v5340
    %v5342 = vpop.f32.mrb[0].mxu0
    %v5343 = vadd.f32 %v4323, %v5342
    %v5344 = vpop.f32.mrb[0].mxu0
    %v5345 = vadd.f32 %v4319, %v5344
    %v5346 = vpop.f32.mrb[0].mxu0
    %v5347 = vadd.f32 %v4323, %v5346
    %5348 = vmatprep.mubr.bf16.mxu0 %v4087
    %5349 = vmatmul.mubr.bf16.gmra.mrb[0].mxu0 %v4086
    %v5350 = vpop.f32.mrb[0].mxu0
    %v5351 = vadd.f32 %v4319, %v5350
    %v5352 = vpop.f32.mrb[0].mxu0
    %v5353 = vadd.f32 %v4323, %v5352
    %v5354 = vpop.f32.mrb[0].mxu0
    %v5355 = vadd.f32 %v4319, %v5354
    %v5356 = vpop.f32.mrb[0].mxu0
    %v5357 = vadd.f32 %v4323, %v5356
    %5358 = vmatprep.mubr.bf16.mxu0 %v4093
    %5359 = vmatmul.mubr.bf16.gmra.mrb[0].mxu0 %v4092
    %v5360 = vpop.f32.mrb[0].mxu0
    %v5361 = vadd.f32 %v4319, %v5360
    %v5362 = vpop.f32.mrb[0].mxu0
    %v5363 = vadd.f32 %v4323, %v5362
    %v5364 = vpop.f32.mrb[0].mxu0
    %v5365 = vadd.f32 %v4319, %v5364
    %v5366 = vpop.f32.mrb[0].mxu0
    %v5367 = vadd.f32 %v4323, %v5366
    %5368 = vmatprep.mubr.bf16.mxu0 %v4099
    %5369 = vmatmul.mubr.bf16.gmra.mrb[0].mxu0 %v4098
    %v5370 = vpop.f32.mrb[0].mxu0
    %v5371 = vadd.f32 %v4319, %v5370
    %v5372 = vpop.f32.mrb[0].mxu0
    %v5373 = vadd.f32 %v4323, %v5372
    %v5374 = vpop.f32.mrb[0].mxu0
    %v5375 = vadd.f32 %v4319, %v5374
    %v5376 = vpop.f32.mrb[0].mxu0
    %v5377 = vadd.f32 %v4323, %v5376
    %5378 = vmatprep.mubr.bf16.mxu0 %v4105
    %5379 = vmatmul.mubr.bf16.gmra.mrb[0].mxu0 %v4104
    %v5380 = vpop.f32.mrb[0].mxu0
    %v5381 = vadd.f32 %v4319, %v5380
    %v5382 = vpop.f32.mrb[0].mxu0
    %v5383 = vadd.f32 %v4323, %v5382
    %v5384 = vpop.f32.mrb[0].mxu0
    %v5385 = vadd.f32 %v4319, %v5384
    %v5386 = vpop.f32.mrb[0].mxu0
    %v5387 = vadd.f32 %v4323, %v5386
    %5388 = vmatprep.mubr.bf16.mxu0 %v4111
    %5389 = vmatmul.mubr.bf16.gmra.mrb[0].mxu0 %v4110
    %v5390 = vpop.f32.mrb[0].mxu0
    %v5391 = vadd.f32 %v4319, %v5390
    %v5392 = vpop.f32.mrb[0].mxu0
    %v5393 = vadd.f32 %v4323, %v5392
    %v5394 = vpop.f32.mrb[0].mxu0
    %v5395 = vadd.f32 %v4319, %v5394
    %v5396 = vpop.f32.mrb[0].mxu0
    %v5397 = vadd.f32 %v4323, %v5396
    %5398 = vmatprep.mubr.bf16.mxu0 %v4117
    %5399 = vmatmul.mubr.bf16.gmra.mrb[0].mxu0 %v4116
    %v5400 = vpop.f32.mrb[0].mxu0
    %v5401 = vadd.f32 %v4319, %v5400
    %v5402 = vpop.f32.mrb[0].mxu0
    %v5403 = vadd.f32 %v4323, %v5402
    %v5404 = vpop.f32.mrb[0].mxu0
    %v5405 = vadd.f32 %v4319, %v5404
    %v5406 = vpop.f32.mrb[0].mxu0
    %v5407 = vadd.f32 %v4323, %v5406
    %5408 = vdwg.mxu0
    %5409 = vmatprep.subr.bf16.mxu0 %v4977
    %5410 = vmatpush1.bf16.msra.mxu0 %v4976
    %5411 = vmatprep.subr.bf16.mxu0 %v4981
    %5412 = vmatpush1.bf16.msra.mxu0 %v4980
    %5413 = vmatprep.subr.bf16.mxu0 %v4985
    %5414 = vmatpush1.bf16.msra.mxu0 %v4984
    %5415 = vmatprep.subr.bf16.mxu0 %v4989
    %5416 = vmatpush1.bf16.msra.mxu0 %v4988
    %5417 = vmatprep.subr.bf16.mxu0 %v4993
    %5418 = vmatpush1.bf16.msra.mxu0 %v4992
    %5419 = vmatprep.subr.bf16.mxu0 %v4997
    %5420 = vmatpush1.bf16.msra.mxu0 %v4996
    %5421 = vmatprep.subr.bf16.mxu0 %v5001
    %5422 = vmatpush1.bf16.msra.mxu0 %v5000
    %5423 = vmatprep.subr.bf16.mxu0 %v5005
    %5424 = vmatpush1.bf16.msra.mxu0 %v5004
    %5425 = vmatprep.subr.bf16.mxu0 %v5009
    %5426 = vmatpush1.bf16.msra.mxu0 %v5008
    %5427 = vmatprep.subr.bf16.mxu0 %v5013
    %5428 = vmatpush1.bf16.msra.mxu0 %v5012
    %5429 = vmatprep.subr.bf16.mxu0 %v5017
    %5430 = vmatpush1.bf16.msra.mxu0 %v5016
    %5431 = vmatprep.subr.bf16.mxu0 %v5021
    %5432 = vmatpush1.bf16.msra.mxu0 %v5020
    %5433 = vmatprep.subr.bf16.mxu0 %v5025
    %5434 = vmatpush1.bf16.msra.mxu0 %v5024
    %5435 = vmatprep.subr.bf16.mxu0 %v5029
    %5436 = vmatpush1.bf16.msra.mxu0 %v5028
    %5437 = vmatprep.subr.bf16.mxu0 %v5033
    %5438 = vmatpush1.bf16.msra.mxu0 %v5032
    %5439 = vmatprep.subr.bf16.mxu0 %v5037
    %5440 = vmatpush1.bf16.msra.mxu0 %v5036
    %5441 = vmatprep.mubr.bf16.mxu0 %v4077
    %5442 = vmatmul.mubr.bf16.gmra.mrb[0].mxu0 %v4076
    %v5443 = vpop.f32.mrb[0].mxu0
    %v5444 = vadd.f32 %v5331, %v5443
    %v5445 = vpop.f32.mrb[0].mxu0
    %v5446 = vadd.f32 %v5333, %v5445
    %v5447 = vpop.f32.mrb[0].mxu0
    %v5448 = vadd.f32 %v5335, %v5447
    %v5449 = vpop.f32.mrb[0].mxu0
    %v5450 = vadd.f32 %v5337, %v5449
    %5451 = vmatprep.mubr.bf16.mxu0 %v4083
    %5452 = vmatmul.mubr.bf16.gmra.mrb[0].mxu0 %v4082
    %v5453 = vpop.f32.mrb[0].mxu0
    %v5454 = vadd.f32 %v5341, %v5453
    %v5455 = vpop.f32.mrb[0].mxu0
    %v5456 = vadd.f32 %v5343, %v5455
    %v5457 = vpop.f32.mrb[0].mxu0
    %v5458 = vadd.f32 %v5345, %v5457
    %v5459 = vpop.f32.mrb[0].mxu0
    %v5460 = vadd.f32 %v5347, %v5459
    %5461 = vmatprep.mubr.bf16.mxu0 %v4089
    %5462 = vmatmul.mubr.bf16.gmra.mrb[0].mxu0 %v4088
    %v5463 = vpop.f32.mrb[0].mxu0
    %v5464 = vadd.f32 %v5351, %v5463
    %v5465 = vpop.f32.mrb[0].mxu0
    %v5466 = vadd.f32 %v5353, %v5465
    %v5467 = vpop.f32.mrb[0].mxu0
    %v5468 = vadd.f32 %v5355, %v5467
    %v5469 = vpop.f32.mrb[0].mxu0
    %v5470 = vadd.f32 %v5357, %v5469
    %5471 = vmatprep.mubr.bf16.mxu0 %v4095
    %5472 = vmatmul.mubr.bf16.gmra.mrb[0].mxu0 %v4094
    %v5473 = vpop.f32.mrb[0].mxu0
    %v5474 = vadd.f32 %v5361, %v5473
    %v5475 = vpop.f32.mrb[0].mxu0
    %v5476 = vadd.f32 %v5363, %v5475
    %v5477 = vpop.f32.mrb[0].mxu0
    %v5478 = vadd.f32 %v5365, %v5477
    %v5479 = vpop.f32.mrb[0].mxu0
    %v5480 = vadd.f32 %v5367, %v5479
    %5481 = vmatprep.mubr.bf16.mxu0 %v4101
    %5482 = vmatmul.mubr.bf16.gmra.mrb[0].mxu0 %v4100
    %v5483 = vpop.f32.mrb[0].mxu0
    %v5484 = vadd.f32 %v5371, %v5483
    %v5485 = vpop.f32.mrb[0].mxu0
    %v5486 = vadd.f32 %v5373, %v5485
    %v5487 = vpop.f32.mrb[0].mxu0
    %v5488 = vadd.f32 %v5375, %v5487
    %v5489 = vpop.f32.mrb[0].mxu0
    %v5490 = vadd.f32 %v5377, %v5489
    %5491 = vmatprep.mubr.bf16.mxu0 %v4107
    %5492 = vmatmul.mubr.bf16.gmra.mrb[0].mxu0 %v4106
    %v5493 = vpop.f32.mrb[0].mxu0
    %v5494 = vadd.f32 %v5381, %v5493
    %v5495 = vpop.f32.mrb[0].mxu0
    %v5496 = vadd.f32 %v5383, %v5495
    %v5497 = vpop.f32.mrb[0].mxu0
    %v5498 = vadd.f32 %v5385, %v5497
    %v5499 = vpop.f32.mrb[0].mxu0
    %v5500 = vadd.f32 %v5387, %v5499
    %5501 = vmatprep.mubr.bf16.mxu0 %v4113
    %5502 = vmatmul.mubr.bf16.gmra.mrb[0].mxu0 %v4112
    %v5503 = vpop.f32.mrb[0].mxu0
    %v5504 = vadd.f32 %v5391, %v5503
    %v5505 = vpop.f32.mrb[0].mxu0
    %v5506 = vadd.f32 %v5393, %v5505
    %v5507 = vpop.f32.mrb[0].mxu0
    %v5508 = vadd.f32 %v5395, %v5507
    %v5509 = vpop.f32.mrb[0].mxu0
    %v5510 = vadd.f32 %v5397, %v5509
    %5511 = vmatprep.mubr.bf16.mxu0 %v4119
    %5512 = vmatmul.mubr.bf16.gmra.mrb[0].mxu0 %v4118
    %v5513 = vpop.f32.mrb[0].mxu0
    %v5514 = vadd.f32 %v5401, %v5513
    %v5515 = vpop.f32.mrb[0].mxu0
    %v5516 = vadd.f32 %v5403, %v5515
    %v5517 = vpop.f32.mrb[0].mxu0
    %v5518 = vadd.f32 %v5405, %v5517
    %v5519 = vpop.f32.mrb[0].mxu0
    %v5520 = vadd.f32 %v5407, %v5519
    %5521 = vdwg.mxu0
    %5522 = vmatprep.subr.bf16.mxu0 %v5041
    %5523 = vmatpush1.bf16.msra.mxu0 %v5040
    %5524 = vmatprep.subr.bf16.mxu0 %v5045
    %5525 = vmatpush1.bf16.msra.mxu0 %v5044
    %5526 = vmatprep.subr.bf16.mxu0 %v5049
    %5527 = vmatpush1.bf16.msra.mxu0 %v5048
    %5528 = vmatprep.subr.bf16.mxu0 %v5053
    %5529 = vmatpush1.bf16.msra.mxu0 %v5052
    %5530 = vmatprep.subr.bf16.mxu0 %v5057
    %5531 = vmatpush1.bf16.msra.mxu0 %v5056
    %5532 = vmatprep.subr.bf16.mxu0 %v5061
    %5533 = vmatpush1.bf16.msra.mxu0 %v5060
    %5534 = vmatprep.subr.bf16.mxu0 %v5065
    %5535 = vmatpush1.bf16.msra.mxu0 %v5064
    %5536 = vmatprep.subr.bf16.mxu0 %v5069
    %5537 = vmatpush1.bf16.msra.mxu0 %v5068
    %5538 = vmatprep.subr.bf16.mxu0 %v5073
    %5539 = vmatpush1.bf16.msra.mxu0 %v5072
    %5540 = vmatprep.subr.bf16.mxu0 %v5077
    %5541 = vmatpush1.bf16.msra.mxu0 %v5076
    %5542 = vmatprep.subr.bf16.mxu0 %v5081
    %5543 = vmatpush1.bf16.msra.mxu0 %v5080
    %5544 = vmatprep.subr.bf16.mxu0 %v5085
    %5545 = vmatpush1.bf16.msra.mxu0 %v5084
    %5546 = vmatprep.subr.bf16.mxu0 %v5089
    %5547 = vmatpush1.bf16.msra.mxu0 %v5088
    %5548 = vmatprep.subr.bf16.mxu0 %v5093
    %5549 = vmatpush1.bf16.msra.mxu0 %v5092
    %5550 = vmatprep.subr.bf16.mxu0 %v5097
    %5551 = vmatpush1.bf16.msra.mxu0 %v5096
    %5552 = vmatprep.subr.bf16.mxu0 %v5101
    %5553 = vmatpush1.bf16.msra.mxu0 %v5100
    %5554 = vmatprep.mubr.bf16.mxu0 %v4079
    %5555 = vmatmul.mubr.bf16.gmra.mrb[0].mxu0 %v4078
    %v5556 = vpop.f32.mrb[0].mxu0
    %v5557 = vadd.f32 %v5444, %v5556
    %v5558 = vpop.f32.mrb[0].mxu0
    %v5559 = vadd.f32 %v5446, %v5558
    %v5560 = vpop.f32.mrb[0].mxu0
    %v5561 = vadd.f32 %v5448, %v5560
    %v5562 = vpop.f32.mrb[0].mxu0
    %v5563 = vadd.f32 %v5450, %v5562
    %5564 = vmatprep.mubr.bf16.mxu0 %v4085
    %5565 = vmatmul.mubr.bf16.gmra.mrb[0].mxu0 %v4084
    %v5566 = vpop.f32.mrb[0].mxu0
    %v5567 = vadd.f32 %v5454, %v5566
    %v5568 = vpop.f32.mrb[0].mxu0
    %v5569 = vadd.f32 %v5456, %v5568
    %v5570 = vpop.f32.mrb[0].mxu0
    %v5571 = vadd.f32 %v5458, %v5570
    %v5572 = vpop.f32.mrb[0].mxu0
    %v5573 = vadd.f32 %v5460, %v5572
    %5574 = vmatprep.mubr.bf16.mxu0 %v4091
    %5575 = vmatmul.mubr.bf16.gmra.mrb[0].mxu0 %v4090
    %v5576 = vpop.f32.mrb[0].mxu0
    %v5577 = vadd.f32 %v5464, %v5576
    %v5578 = vpop.f32.mrb[0].mxu0
    %v5579 = vadd.f32 %v5466, %v5578
    %v5580 = vpop.f32.mrb[0].mxu0
    %v5581 = vadd.f32 %v5468, %v5580
    %v5582 = vpop.f32.mrb[0].mxu0
    %v5583 = vadd.f32 %v5470, %v5582
    %5584 = vmatprep.mubr.bf16.mxu0 %v4097
    %5585 = vmatmul.mubr.bf16.gmra.mrb[0].mxu0 %v4096
    %v5586 = vpop.f32.mrb[0].mxu0
    %v5587 = vadd.f32 %v5474, %v5586
    %v5588 = vpop.f32.mrb[0].mxu0
    %v5589 = vadd.f32 %v5476, %v5588
    %v5590 = vpop.f32.mrb[0].mxu0
    %v5591 = vadd.f32 %v5478, %v5590
    %v5592 = vpop.f32.mrb[0].mxu0
    %v5593 = vadd.f32 %v5480, %v5592
    %5594 = vmatprep.mubr.bf16.mxu0 %v4103
    %5595 = vmatmul.mubr.bf16.gmra.mrb[0].mxu0 %v4102
    %v5596 = vpop.f32.mrb[0].mxu0
    %v5597 = vadd.f32 %v5484, %v5596
    %v5598 = vpop.f32.mrb[0].mxu0
    %v5599 = vadd.f32 %v5486, %v5598
    %v5600 = vpop.f32.mrb[0].mxu0
    %v5601 = vadd.f32 %v5488, %v5600
    %v5602 = vpop.f32.mrb[0].mxu0
    %v5603 = vadd.f32 %v5490, %v5602
    %5604 = vmatprep.mubr.bf16.mxu0 %v4109
    %5605 = vmatmul.mubr.bf16.gmra.mrb[0].mxu0 %v4108
    %v5606 = vpop.f32.mrb[0].mxu0
    %v5607 = vadd.f32 %v5494, %v5606
    %v5608 = vpop.f32.mrb[0].mxu0
    %v5609 = vadd.f32 %v5496, %v5608
    %v5610 = vpop.f32.mrb[0].mxu0
    %v5611 = vadd.f32 %v5498, %v5610
    %v5612 = vpop.f32.mrb[0].mxu0
    %v5613 = vadd.f32 %v5500, %v5612
    %5614 = vmatprep.mubr.bf16.mxu0 %v4115
    %5615 = vmatmul.mubr.bf16.gmra.mrb[0].mxu0 %v4114
    %v5616 = vpop.f32.mrb[0].mxu0
    %v5617 = vadd.f32 %v5504, %v5616
    %v5618 = vpop.f32.mrb[0].mxu0
    %v5619 = vadd.f32 %v5506, %v5618
    %v5620 = vpop.f32.mrb[0].mxu0
    %v5621 = vadd.f32 %v5508, %v5620
    %v5622 = vpop.f32.mrb[0].mxu0
    %v5623 = vadd.f32 %v5510, %v5622
    %5624 = vmatprep.mubr.bf16.mxu0 %v4121
    %5625 = vmatmul.mubr.bf16.gmra.mrb[0].mxu0 %v4120
    %v5626 = vpop.f32.mrb[0].mxu0
    %v5627 = vadd.f32 %v5514, %v5626
    %v5628 = vpop.f32.mrb[0].mxu0
    %v5629 = vadd.f32 %v5516, %v5628
    %v5630 = vpop.f32.mrb[0].mxu0
    %v5631 = vadd.f32 %v5518, %v5630
    %v5632 = vpop.f32.mrb[0].mxu0
    %v5633 = vadd.f32 %v5520, %v5632
    %5634 = vdwg.mxu0
    %5635 = vmatprep.subr.bf16.mxu0 %v4915
    %5636 = vmatpush1.bf16.msra.mxu0 %v4914
    %5637 = vmatprep.subr.bf16.mxu0 %v4919
    %5638 = vmatpush1.bf16.msra.mxu0 %v4918
    %5639 = vmatprep.subr.bf16.mxu0 %v4923
    %5640 = vmatpush1.bf16.msra.mxu0 %v4922
    %5641 = vmatprep.subr.bf16.mxu0 %v4927
    %5642 = vmatpush1.bf16.msra.mxu0 %v4926
    %5643 = vmatprep.subr.bf16.mxu0 %v4931
    %5644 = vmatpush1.bf16.msra.mxu0 %v4930
    %5645 = vmatprep.subr.bf16.mxu0 %v4935
    %5646 = vmatpush1.bf16.msra.mxu0 %v4934
    %5647 = vmatprep.subr.bf16.mxu0 %v4939
    %5648 = vmatpush1.bf16.msra.mxu0 %v4938
    %5649 = vmatprep.subr.bf16.mxu0 %v4943
    %5650 = vmatpush1.bf16.msra.mxu0 %v4942
    %5651 = vmatprep.subr.bf16.mxu0 %v4947
    %5652 = vmatpush1.bf16.msra.mxu0 %v4946
    %5653 = vmatprep.subr.bf16.mxu0 %v4951
    %5654 = vmatpush1.bf16.msra.mxu0 %v4950
    %5655 = vmatprep.subr.bf16.mxu0 %v4955
    %5656 = vmatpush1.bf16.msra.mxu0 %v4954
    %5657 = vmatprep.subr.bf16.mxu0 %v4959
    %5658 = vmatpush1.bf16.msra.mxu0 %v4958
    %5659 = vmatprep.subr.bf16.mxu0 %v4963
    %5660 = vmatpush1.bf16.msra.mxu0 %v4962
    %5661 = vmatprep.subr.bf16.mxu0 %v4967
    %5662 = vmatpush1.bf16.msra.mxu0 %v4966
    %5663 = vmatprep.subr.bf16.mxu0 %v4971
    %5664 = vmatpush1.bf16.msra.mxu0 %v4970
    %5665 = vmatprep.subr.bf16.mxu0 %v4975
    %5666 = vmatpush1.bf16.msra.mxu0 %v4974
    %5667 = vmatprep.mubr.bf16.mxu0 %v4075
    %5668 = vmatmul.mubr.bf16.gmra.mrb[0].mxu0 %v4074
    %v5669 = vpop.f32.mrb[0].mxu0
    %v5670 = vadd.f32 %v4327, %v5669
    %v5671 = vpop.f32.mrb[0].mxu0
    %v5672 = vadd.f32 %v4331, %v5671
    %v5673 = vpop.f32.mrb[0].mxu0
    %v5674 = vadd.f32 %v4327, %v5673
    %v5675 = vpop.f32.mrb[0].mxu0
    %v5676 = vadd.f32 %v4331, %v5675
    %5677 = vmatprep.mubr.bf16.mxu0 %v4081
    %5678 = vmatmul.mubr.bf16.gmra.mrb[0].mxu0 %v4080
    %v5679 = vpop.f32.mrb[0].mxu0
    %v5680 = vadd.f32 %v4327, %v5679
    %v5681 = vpop.f32.mrb[0].mxu0
    %v5682 = vadd.f32 %v4331, %v5681
    %v5683 = vpop.f32.mrb[0].mxu0
    %v5684 = vadd.f32 %v4327, %v5683
    %v5685 = vpop.f32.mrb[0].mxu0
    %v5686 = vadd.f32 %v4331, %v5685
    %5687 = vmatprep.mubr.bf16.mxu0 %v4087
    %5688 = vmatmul.mubr.bf16.gmra.mrb[0].mxu0 %v4086
    %v5689 = vpop.f32.mrb[0].mxu0
    %v5690 = vadd.f32 %v4327, %v5689
    %v5691 = vpop.f32.mrb[0].mxu0
    %v5692 = vadd.f32 %v4331, %v5691
    %v5693 = vpop.f32.mrb[0].mxu0
    %v5694 = vadd.f32 %v4327, %v5693
    %v5695 = vpop.f32.mrb[0].mxu0
    %v5696 = vadd.f32 %v4331, %v5695
    %5697 = vmatprep.mubr.bf16.mxu0 %v4093
    %5698 = vmatmul.mubr.bf16.gmra.mrb[0].mxu0 %v4092
    %v5699 = vpop.f32.mrb[0].mxu0
    %v5700 = vadd.f32 %v4327, %v5699
    %v5701 = vpop.f32.mrb[0].mxu0
    %v5702 = vadd.f32 %v4331, %v5701
    %v5703 = vpop.f32.mrb[0].mxu0
    %v5704 = vadd.f32 %v4327, %v5703
    %v5705 = vpop.f32.mrb[0].mxu0
    %v5706 = vadd.f32 %v4331, %v5705
    %5707 = vmatprep.mubr.bf16.mxu0 %v4099
    %5708 = vmatmul.mubr.bf16.gmra.mrb[0].mxu0 %v4098
    %v5709 = vpop.f32.mrb[0].mxu0
    %v5710 = vadd.f32 %v4327, %v5709
    %v5711 = vpop.f32.mrb[0].mxu0
    %v5712 = vadd.f32 %v4331, %v5711
    %v5713 = vpop.f32.mrb[0].mxu0
    %v5714 = vadd.f32 %v4327, %v5713
    %v5715 = vpop.f32.mrb[0].mxu0
    %v5716 = vadd.f32 %v4331, %v5715
    %5717 = vmatprep.mubr.bf16.mxu0 %v4105
    %5718 = vmatmul.mubr.bf16.gmra.mrb[0].mxu0 %v4104
    %v5719 = vpop.f32.mrb[0].mxu0
    %v5720 = vadd.f32 %v4327, %v5719
    %v5721 = vpop.f32.mrb[0].mxu0
    %v5722 = vadd.f32 %v4331, %v5721
    %v5723 = vpop.f32.mrb[0].mxu0
    %v5724 = vadd.f32 %v4327, %v5723
    %v5725 = vpop.f32.mrb[0].mxu0
    %v5726 = vadd.f32 %v4331, %v5725
    %5727 = vmatprep.mubr.bf16.mxu0 %v4111
    %5728 = vmatmul.mubr.bf16.gmra.mrb[0].mxu0 %v4110
    %v5729 = vpop.f32.mrb[0].mxu0
    %v5730 = vadd.f32 %v4327, %v5729
    %v5731 = vpop.f32.mrb[0].mxu0
    %v5732 = vadd.f32 %v4331, %v5731
    %v5733 = vpop.f32.mrb[0].mxu0
    %v5734 = vadd.f32 %v4327, %v5733
    %v5735 = vpop.f32.mrb[0].mxu0
    %v5736 = vadd.f32 %v4331, %v5735
    %5737 = vmatprep.mubr.bf16.mxu0 %v4117
    %5738 = vmatmul.mubr.bf16.gmra.mrb[0].mxu0 %v4116
    %v5739 = vpop.f32.mrb[0].mxu0
    %v5740 = vadd.f32 %v4327, %v5739
    %v5741 = vpop.f32.mrb[0].mxu0
    %v5742 = vadd.f32 %v4331, %v5741
    %v5743 = vpop.f32.mrb[0].mxu0
    %v5744 = vadd.f32 %v4327, %v5743
    %v5745 = vpop.f32.mrb[0].mxu0
    %v5746 = vadd.f32 %v4331, %v5745
    %5747 = vdwg.mxu0
    %5748 = vmatprep.subr.bf16.mxu0 %v4979
    %5749 = vmatpush1.bf16.msra.mxu0 %v4978
    %5750 = vmatprep.subr.bf16.mxu0 %v4983
    %5751 = vmatpush1.bf16.msra.mxu0 %v4982
    %5752 = vmatprep.subr.bf16.mxu0 %v4987
    %5753 = vmatpush1.bf16.msra.mxu0 %v4986
    %5754 = vmatprep.subr.bf16.mxu0 %v4991
    %5755 = vmatpush1.bf16.msra.mxu0 %v4990
    %5756 = vmatprep.subr.bf16.mxu0 %v4995
    %5757 = vmatpush1.bf16.msra.mxu0 %v4994
    %5758 = vmatprep.subr.bf16.mxu0 %v4999
    %5759 = vmatpush1.bf16.msra.mxu0 %v4998
    %5760 = vmatprep.subr.bf16.mxu0 %v5003
    %5761 = vmatpush1.bf16.msra.mxu0 %v5002
    %5762 = vmatprep.subr.bf16.mxu0 %v5007
    %5763 = vmatpush1.bf16.msra.mxu0 %v5006
    %5764 = vmatprep.subr.bf16.mxu0 %v5011
    %5765 = vmatpush1.bf16.msra.mxu0 %v5010
    %5766 = vmatprep.subr.bf16.mxu0 %v5015
    %5767 = vmatpush1.bf16.msra.mxu0 %v5014
    %5768 = vmatprep.subr.bf16.mxu0 %v5019
    %5769 = vmatpush1.bf16.msra.mxu0 %v5018
    %5770 = vmatprep.subr.bf16.mxu0 %v5023
    %5771 = vmatpush1.bf16.msra.mxu0 %v5022
    %5772 = vmatprep.subr.bf16.mxu0 %v5027
    %5773 = vmatpush1.bf16.msra.mxu0 %v5026
    %5774 = vmatprep.subr.bf16.mxu0 %v5031
    %5775 = vmatpush1.bf16.msra.mxu0 %v5030
    %5776 = vmatprep.subr.bf16.mxu0 %v5035
    %5777 = vmatpush1.bf16.msra.mxu0 %v5034
    %5778 = vmatprep.subr.bf16.mxu0 %v5039
    %5779 = vmatpush1.bf16.msra.mxu0 %v5038
    %5780 = vmatprep.mubr.bf16.mxu0 %v4077
    %5781 = vmatmul.mubr.bf16.gmra.mrb[0].mxu0 %v4076
    %v5782 = vpop.f32.mrb[0].mxu0
    %v5783 = vadd.f32 %v5670, %v5782
    %v5784 = vpop.f32.mrb[0].mxu0
    %v5785 = vadd.f32 %v5672, %v5784
    %v5786 = vpop.f32.mrb[0].mxu0
    %v5787 = vadd.f32 %v5674, %v5786
    %v5788 = vpop.f32.mrb[0].mxu0
    %v5789 = vadd.f32 %v5676, %v5788
    %5790 = vmatprep.mubr.bf16.mxu0 %v4083
    %5791 = vmatmul.mubr.bf16.gmra.mrb[0].mxu0 %v4082
    %v5792 = vpop.f32.mrb[0].mxu0
    %v5793 = vadd.f32 %v5680, %v5792
    %v5794 = vpop.f32.mrb[0].mxu0
    %v5795 = vadd.f32 %v5682, %v5794
    %v5796 = vpop.f32.mrb[0].mxu0
    %v5797 = vadd.f32 %v5684, %v5796
    %v5798 = vpop.f32.mrb[0].mxu0
    %v5799 = vadd.f32 %v5686, %v5798
    %5800 = vmatprep.mubr.bf16.mxu0 %v4089
    %5801 = vmatmul.mubr.bf16.gmra.mrb[0].mxu0 %v4088
    %v5802 = vpop.f32.mrb[0].mxu0
    %v5803 = vadd.f32 %v5690, %v5802
    %v5804 = vpop.f32.mrb[0].mxu0
    %v5805 = vadd.f32 %v5692, %v5804
    %v5806 = vpop.f32.mrb[0].mxu0
    %v5807 = vadd.f32 %v5694, %v5806
    %v5808 = vpop.f32.mrb[0].mxu0
    %v5809 = vadd.f32 %v5696, %v5808
    %5810 = vmatprep.mubr.bf16.mxu0 %v4095
    %5811 = vmatmul.mubr.bf16.gmra.mrb[0].mxu0 %v4094
    %v5812 = vpop.f32.mrb[0].mxu0
    %v5813 = vadd.f32 %v5700, %v5812
    %v5814 = vpop.f32.mrb[0].mxu0
    %v5815 = vadd.f32 %v5702, %v5814
    %v5816 = vpop.f32.mrb[0].mxu0
    %v5817 = vadd.f32 %v5704, %v5816
    %v5818 = vpop.f32.mrb[0].mxu0
    %v5819 = vadd.f32 %v5706, %v5818
    %5820 = vmatprep.mubr.bf16.mxu0 %v4101
    %5821 = vmatmul.mubr.bf16.gmra.mrb[0].mxu0 %v4100
    %v5822 = vpop.f32.mrb[0].mxu0
    %v5823 = vadd.f32 %v5710, %v5822
    %v5824 = vpop.f32.mrb[0].mxu0
    %v5825 = vadd.f32 %v5712, %v5824
    %v5826 = vpop.f32.mrb[0].mxu0
    %v5827 = vadd.f32 %v5714, %v5826
    %v5828 = vpop.f32.mrb[0].mxu0
    %v5829 = vadd.f32 %v5716, %v5828
    %5830 = vmatprep.mubr.bf16.mxu0 %v4107
    %5831 = vmatmul.mubr.bf16.gmra.mrb[0].mxu0 %v4106
    %v5832 = vpop.f32.mrb[0].mxu0
    %v5833 = vadd.f32 %v5720, %v5832
    %v5834 = vpop.f32.mrb[0].mxu0
    %v5835 = vadd.f32 %v5722, %v5834
    %v5836 = vpop.f32.mrb[0].mxu0
    %v5837 = vadd.f32 %v5724, %v5836
    %v5838 = vpop.f32.mrb[0].mxu0
    %v5839 = vadd.f32 %v5726, %v5838
    %5840 = vmatprep.mubr.bf16.mxu0 %v4113
    %5841 = vmatmul.mubr.bf16.gmra.mrb[0].mxu0 %v4112
    %v5842 = vpop.f32.mrb[0].mxu0
    %v5843 = vadd.f32 %v5730, %v5842
    %v5844 = vpop.f32.mrb[0].mxu0
    %v5845 = vadd.f32 %v5732, %v5844
    %v5846 = vpop.f32.mrb[0].mxu0
    %v5847 = vadd.f32 %v5734, %v5846
    %v5848 = vpop.f32.mrb[0].mxu0
    %v5849 = vadd.f32 %v5736, %v5848
    %5850 = vmatprep.mubr.bf16.mxu0 %v4119
    %5851 = vmatmul.mubr.bf16.gmra.mrb[0].mxu0 %v4118
    %v5852 = vpop.f32.mrb[0].mxu0
    %v5853 = vadd.f32 %v5740, %v5852
    %v5854 = vpop.f32.mrb[0].mxu0
    %v5855 = vadd.f32 %v5742, %v5854
    %v5856 = vpop.f32.mrb[0].mxu0
    %v5857 = vadd.f32 %v5744, %v5856
    %v5858 = vpop.f32.mrb[0].mxu0
    %v5859 = vadd.f32 %v5746, %v5858
    %5860 = vdwg.mxu0
    %5861 = vmatprep.subr.bf16.mxu0 %v5043
    %5862 = vmatpush1.bf16.msra.mxu0 %v5042
    %5863 = vmatprep.subr.bf16.mxu0 %v5047
    %5864 = vmatpush1.bf16.msra.mxu0 %v5046
    %5865 = vmatprep.subr.bf16.mxu0 %v5051
    %5866 = vmatpush1.bf16.msra.mxu0 %v5050
    %5867 = vmatprep.subr.bf16.mxu0 %v5055
    %5868 = vmatpush1.bf16.msra.mxu0 %v5054
    %5869 = vmatprep.subr.bf16.mxu0 %v5059
    %5870 = vmatpush1.bf16.msra.mxu0 %v5058
    %5871 = vmatprep.subr.bf16.mxu0 %v5063
    %5872 = vmatpush1.bf16.msra.mxu0 %v5062
    %5873 = vmatprep.subr.bf16.mxu0 %v5067
    %5874 = vmatpush1.bf16.msra.mxu0 %v5066
    %5875 = vmatprep.subr.bf16.mxu0 %v5071
    %5876 = vmatpush1.bf16.msra.mxu0 %v5070
    %5877 = vmatprep.subr.bf16.mxu0 %v5075
    %5878 = vmatpush1.bf16.msra.mxu0 %v5074
    %5879 = vmatprep.subr.bf16.mxu0 %v5079
    %5880 = vmatpush1.bf16.msra.mxu0 %v5078
    %5881 = vmatprep.subr.bf16.mxu0 %v5083
    %5882 = vmatpush1.bf16.msra.mxu0 %v5082
    %5883 = vmatprep.subr.bf16.mxu0 %v5087
    %5884 = vmatpush1.bf16.msra.mxu0 %v5086
    %5885 = vmatprep.subr.bf16.mxu0 %v5091
    %5886 = vmatpush1.bf16.msra.mxu0 %v5090
    %5887 = vmatprep.subr.bf16.mxu0 %v5095
    %5888 = vmatpush1.bf16.msra.mxu0 %v5094
    %5889 = vmatprep.subr.bf16.mxu0 %v5099
    %5890 = vmatpush1.bf16.msra.mxu0 %v5098
    %5891 = vmatprep.subr.bf16.mxu0 %v5103
    %5892 = vmatpush1.bf16.msra.mxu0 %v5102
    %5893 = vmatprep.mubr.bf16.mxu0 %v4079
    %5894 = vmatmul.mubr.bf16.gmra.mrb[0].mxu0 %v4078
    %v5895 = vpop.f32.mrb[0].mxu0
    %v5896 = vadd.f32 %v5783, %v5895
    %v5897 = vpop.f32.mrb[0].mxu0
    %v5898 = vadd.f32 %v5785, %v5897
    %v5899 = vpop.f32.mrb[0].mxu0
    %v5900 = vadd.f32 %v5787, %v5899
    %v5901 = vpop.f32.mrb[0].mxu0
    %v5902 = vadd.f32 %v5789, %v5901
    %5903 = vmatprep.mubr.bf16.mxu0 %v4085
    %5904 = vmatmul.mubr.bf16.gmra.mrb[0].mxu0 %v4084
    %v5905 = vpop.f32.mrb[0].mxu0
    %v5906 = vadd.f32 %v5793, %v5905
    %v5907 = vpop.f32.mrb[0].mxu0
    %v5908 = vadd.f32 %v5795, %v5907
    %v5909 = vpop.f32.mrb[0].mxu0
    %v5910 = vadd.f32 %v5797, %v5909
    %v5911 = vpop.f32.mrb[0].mxu0
    %v5912 = vadd.f32 %v5799, %v5911
    %5913 = vmatprep.mubr.bf16.mxu0 %v4091
    %5914 = vmatmul.mubr.bf16.gmra.mrb[0].mxu0 %v4090
    %v5915 = vpop.f32.mrb[0].mxu0
    %v5916 = vadd.f32 %v5803, %v5915
    %v5917 = vpop.f32.mrb[0].mxu0
    %v5918 = vadd.f32 %v5805, %v5917
    %v5919 = vpop.f32.mrb[0].mxu0
    %v5920 = vadd.f32 %v5807, %v5919
    %v5921 = vpop.f32.mrb[0].mxu0
    %v5922 = vadd.f32 %v5809, %v5921
    %5923 = vmatprep.mubr.bf16.mxu0 %v4097
    %5924 = vmatmul.mubr.bf16.gmra.mrb[0].mxu0 %v4096
    %v5925 = vpop.f32.mrb[0].mxu0
    %v5926 = vadd.f32 %v5813, %v5925
    %v5927 = vpop.f32.mrb[0].mxu0
    %v5928 = vadd.f32 %v5815, %v5927
    %v5929 = vpop.f32.mrb[0].mxu0
    %v5930 = vadd.f32 %v5817, %v5929
    %v5931 = vpop.f32.mrb[0].mxu0
    %v5932 = vadd.f32 %v5819, %v5931
    %5933 = vmatprep.mubr.bf16.mxu0 %v4103
    %5934 = vmatmul.mubr.bf16.gmra.mrb[0].mxu0 %v4102
    %v5935 = vpop.f32.mrb[0].mxu0
    %v5936 = vadd.f32 %v5823, %v5935
    %v5937 = vpop.f32.mrb[0].mxu0
    %v5938 = vadd.f32 %v5825, %v5937
    %v5939 = vpop.f32.mrb[0].mxu0
    %v5940 = vadd.f32 %v5827, %v5939
    %v5941 = vpop.f32.mrb[0].mxu0
    %v5942 = vadd.f32 %v5829, %v5941
    %5943 = vmatprep.mubr.bf16.mxu0 %v4109
    %5944 = vmatmul.mubr.bf16.gmra.mrb[0].mxu0 %v4108
    %v5945 = vpop.f32.mrb[0].mxu0
    %v5946 = vadd.f32 %v5833, %v5945
    %v5947 = vpop.f32.mrb[0].mxu0
    %v5948 = vadd.f32 %v5835, %v5947
    %v5949 = vpop.f32.mrb[0].mxu0
    %v5950 = vadd.f32 %v5837, %v5949
    %v5951 = vpop.f32.mrb[0].mxu0
    %v5952 = vadd.f32 %v5839, %v5951
    %5953 = vmatprep.mubr.bf16.mxu0 %v4115
    %5954 = vmatmul.mubr.bf16.gmra.mrb[0].mxu0 %v4114
    %v5955 = vpop.f32.mrb[0].mxu0
    %v5956 = vadd.f32 %v5843, %v5955
    %v5957 = vpop.f32.mrb[0].mxu0
    %v5958 = vadd.f32 %v5845, %v5957
    %v5959 = vpop.f32.mrb[0].mxu0
    %v5960 = vadd.f32 %v5847, %v5959
    %v5961 = vpop.f32.mrb[0].mxu0
    %v5962 = vadd.f32 %v5849, %v5961
    %5963 = vmatprep.mubr.bf16.mxu0 %v4121
    %5964 = vmatmul.mubr.bf16.gmra.mrb[0].mxu0 %v4120
    %v5965 = vpop.f32.mrb[0].mxu0
    %v5966 = vadd.f32 %v5853, %v5965
    %v5967 = vpop.f32.mrb[0].mxu0
    %v5968 = vadd.f32 %v5855, %v5967
    %v5969 = vpop.f32.mrb[0].mxu0
    %v5970 = vadd.f32 %v5857, %v5969
    %v5971 = vpop.f32.mrb[0].mxu0
    %v5972 = vadd.f32 %v5859, %v5971
    %5973 = vdwg.mxu0
    %v5974 = vxor.u32 %v5557, 2147483648
    %v5975 = vxor.u32 %v5559, 2147483648
    %v5976 = vxor.u32 %v5896, 2147483648
    %v5977 = vxor.u32 %v5898, 2147483648
    %v5978 = vxor.u32 %v5561, 2147483648
    %v5979 = vxor.u32 %v5563, 2147483648
    %v5980 = vxor.u32 %v5900, 2147483648
    %v5981 = vxor.u32 %v5902, 2147483648
    %v5982 = vxor.u32 %v5567, 2147483648
    %v5983 = vxor.u32 %v5569, 2147483648
    %v5984 = vxor.u32 %v5906, 2147483648
    %v5985 = vxor.u32 %v5908, 2147483648
    %v5986 = vxor.u32 %v5571, 2147483648
    %v5987 = vxor.u32 %v5573, 2147483648
    %v5988 = vxor.u32 %v5910, 2147483648
    %v5989 = vxor.u32 %v5912, 2147483648
    %v5990 = vxor.u32 %v5577, 2147483648
    %v5991 = vxor.u32 %v5579, 2147483648
    %v5992 = vxor.u32 %v5916, 2147483648
    %v5993 = vxor.u32 %v5918, 2147483648
    %v5994 = vxor.u32 %v5581, 2147483648
    %v5995 = vxor.u32 %v5583, 2147483648
    %v5996 = vxor.u32 %v5920, 2147483648
    %v5997 = vxor.u32 %v5922, 2147483648
    %v5998 = vxor.u32 %v5587, 2147483648
    %v5999 = vxor.u32 %v5589, 2147483648
    %v6000 = vxor.u32 %v5926, 2147483648
    %v6001 = vxor.u32 %v5928, 2147483648
    %v6002 = vxor.u32 %v5591, 2147483648
    %v6003 = vxor.u32 %v5593, 2147483648
    %v6004 = vxor.u32 %v5930, 2147483648
    %v6005 = vxor.u32 %v5932, 2147483648
    %v6006 = vxor.u32 %v5597, 2147483648
    %v6007 = vxor.u32 %v5599, 2147483648
    %v6008 = vxor.u32 %v5936, 2147483648
    %v6009 = vxor.u32 %v5938, 2147483648
    %v6010 = vxor.u32 %v5601, 2147483648
    %v6011 = vxor.u32 %v5603, 2147483648
    %v6012 = vxor.u32 %v5940, 2147483648
    %v6013 = vxor.u32 %v5942, 2147483648
    %v6014 = vxor.u32 %v5607, 2147483648
    %v6015 = vxor.u32 %v5609, 2147483648
    %v6016 = vxor.u32 %v5946, 2147483648
    %v6017 = vxor.u32 %v5948, 2147483648
    %v6018 = vxor.u32 %v5611, 2147483648
    %v6019 = vxor.u32 %v5613, 2147483648
    %v6020 = vxor.u32 %v5950, 2147483648
    %v6021 = vxor.u32 %v5952, 2147483648
    %v6022 = vxor.u32 %v5617, 2147483648
    %v6023 = vxor.u32 %v5619, 2147483648
    %v6024 = vxor.u32 %v5956, 2147483648
    %v6025 = vxor.u32 %v5958, 2147483648
    %v6026 = vxor.u32 %v5621, 2147483648
    %v6027 = vxor.u32 %v5623, 2147483648
    %v6028 = vxor.u32 %v5960, 2147483648
    %v6029 = vxor.u32 %v5962, 2147483648
    %v6030 = vxor.u32 %v5627, 2147483648
    %v6031 = vxor.u32 %v5629, 2147483648
    %v6032 = vxor.u32 %v5966, 2147483648
    %v6033 = vxor.u32 %v5968, 2147483648
    %v6034 = vxor.u32 %v5631, 2147483648
    %v6035 = vxor.u32 %v5633, 2147483648
    %v6036 = vxor.u32 %v5970, 2147483648
    %v6037 = vxor.u32 %v5972, 2147483648
    %v6038 = vmul.f32 %v5974, 1.442695
    %v6039 = vpow.pop %v6038
    %v6040 = vmul.f32 %v5975, 1.442695
    %v6041 = vpow.pop %v6040
    %v6042 = vmul.f32 %v5976, 1.442695
    %v6043 = vpow.pop %v6042
    %v6044 = vmul.f32 %v5977, 1.442695
    %v6045 = vpow.pop %v6044
    %v6046 = vmul.f32 %v5978, 1.442695
    %v6047 = vpow.pop %v6046
    %v6048 = vmul.f32 %v5979, 1.442695
    %v6049 = vpow.pop %v6048
    %v6050 = vmul.f32 %v5980, 1.442695
    %v6051 = vpow.pop %v6050
    %v6052 = vmul.f32 %v5981, 1.442695
    %v6053 = vpow.pop %v6052
    %v6054 = vmul.f32 %v5982, 1.442695
    %v6055 = vpow.pop %v6054
    %v6056 = vmul.f32 %v5983, 1.442695
    %v6057 = vpow.pop %v6056
    %v6058 = vmul.f32 %v5984, 1.442695
    %v6059 = vpow.pop %v6058
    %v6060 = vmul.f32 %v5985, 1.442695
    %v6061 = vpow.pop %v6060
    %v6062 = vmul.f32 %v5986, 1.442695
    %v6063 = vpow.pop %v6062
    %v6064 = vmul.f32 %v5987, 1.442695
    %v6065 = vpow.pop %v6064
    %v6066 = vmul.f32 %v5988, 1.442695
    %v6067 = vpow.pop %v6066
    %v6068 = vmul.f32 %v5989, 1.442695
    %v6069 = vpow.pop %v6068
    %v6070 = vmul.f32 %v5990, 1.442695
    %v6071 = vpow.pop %v6070
    %v6072 = vmul.f32 %v5991, 1.442695
    %v6073 = vpow.pop %v6072
    %v6074 = vmul.f32 %v5992, 1.442695
    %v6075 = vpow.pop %v6074
    %v6076 = vmul.f32 %v5993, 1.442695
    %v6077 = vpow.pop %v6076
    %v6078 = vmul.f32 %v5994, 1.442695
    %v6079 = vpow.pop %v6078
    %v6080 = vmul.f32 %v5995, 1.442695
    %v6081 = vpow.pop %v6080
    %v6082 = vmul.f32 %v5996, 1.442695
    %v6083 = vpow.pop %v6082
    %v6084 = vmul.f32 %v5997, 1.442695
    %v6085 = vpow.pop %v6084
    %v6086 = vmul.f32 %v5998, 1.442695
    %v6087 = vpow.pop %v6086
    %v6088 = vmul.f32 %v5999, 1.442695
    %v6089 = vpow.pop %v6088
    %v6090 = vmul.f32 %v6000, 1.442695
    %v6091 = vpow.pop %v6090
    %v6092 = vmul.f32 %v6001, 1.442695
    %v6093 = vpow.pop %v6092
    %v6094 = vmul.f32 %v6002, 1.442695
    %v6095 = vpow.pop %v6094
    %v6096 = vmul.f32 %v6003, 1.442695
    %v6097 = vpow.pop %v6096
    %v6098 = vmul.f32 %v6004, 1.442695
    %v6099 = vpow.pop %v6098
    %v6100 = vmul.f32 %v6005, 1.442695
    %v6101 = vpow.pop %v6100
    %v6102 = vmul.f32 %v6006, 1.442695
    %v6103 = vpow.pop %v6102
    %v6104 = vmul.f32 %v6007, 1.442695
    %v6105 = vpow.pop %v6104
    %v6106 = vmul.f32 %v6008, 1.442695
    %v6107 = vpow.pop %v6106
    %v6108 = vmul.f32 %v6009, 1.442695
    %v6109 = vpow.pop %v6108
    %v6110 = vmul.f32 %v6010, 1.442695
    %v6111 = vpow.pop %v6110
    %v6112 = vmul.f32 %v6011, 1.442695
    %v6113 = vpow.pop %v6112
    %v6114 = vmul.f32 %v6012, 1.442695
    %v6115 = vpow.pop %v6114
    %v6116 = vmul.f32 %v6013, 1.442695
    %v6117 = vpow.pop %v6116
    %v6118 = vmul.f32 %v6014, 1.442695
    %v6119 = vpow.pop %v6118
    %v6120 = vmul.f32 %v6015, 1.442695
    %v6121 = vpow.pop %v6120
    %v6122 = vmul.f32 %v6016, 1.442695
    %v6123 = vpow.pop %v6122
    %v6124 = vmul.f32 %v6017, 1.442695
    %v6125 = vpow.pop %v6124
    %v6126 = vmul.f32 %v6018, 1.442695
    %v6127 = vpow.pop %v6126
    %v6128 = vmul.f32 %v6019, 1.442695
    %v6129 = vpow.pop %v6128
    %v6130 = vmul.f32 %v6020, 1.442695
    %v6131 = vpow.pop %v6130
    %v6132 = vmul.f32 %v6021, 1.442695
    %v6133 = vpow.pop %v6132
    %v6134 = vmul.f32 %v6022, 1.442695
    %v6135 = vpow.pop %v6134
    %v6136 = vmul.f32 %v6023, 1.442695
    %v6137 = vpow.pop %v6136
    %v6138 = vmul.f32 %v6024, 1.442695
    %v6139 = vpow.pop %v6138
    %v6140 = vmul.f32 %v6025, 1.442695
    %v6141 = vpow.pop %v6140
    %v6142 = vmul.f32 %v6026, 1.442695
    %v6143 = vpow.pop %v6142
    %v6144 = vmul.f32 %v6027, 1.442695
    %v6145 = vpow.pop %v6144
    %v6146 = vmul.f32 %v6028, 1.442695
    %v6147 = vpow.pop %v6146
    %v6148 = vmul.f32 %v6029, 1.442695
    %v6149 = vpow.pop %v6148
    %v6150 = vmul.f32 %v6030, 1.442695
    %v6151 = vpow.pop %v6150
    %v6152 = vmul.f32 %v6031, 1.442695
    %v6153 = vpow.pop %v6152
    %v6154 = vmul.f32 %v6032, 1.442695
    %v6155 = vpow.pop %v6154
    %v6156 = vmul.f32 %v6033, 1.442695
    %v6157 = vpow.pop %v6156
    %v6158 = vmul.f32 %v6034, 1.442695
    %v6159 = vpow.pop %v6158
    %v6160 = vmul.f32 %v6035, 1.442695
    %v6161 = vpow.pop %v6160
    %v6162 = vmul.f32 %v6036, 1.442695
    %v6163 = vpow.pop %v6162
    %v6164 = vmul.f32 %v6037, 1.442695
    %v6165 = vpow.pop %v6164
    %v6166 = vadd.f32 %v6039, 1.0
    %v6167 = vadd.f32 %v6041, 1.0
    %v6168 = vadd.f32 %v6043, 1.0
    %v6169 = vadd.f32 %v6045, 1.0
    %v6170 = vadd.f32 %v6047, 1.0
    %v6171 = vadd.f32 %v6049, 1.0
    %v6172 = vadd.f32 %v6051, 1.0
    %v6173 = vadd.f32 %v6053, 1.0
    %v6174 = vadd.f32 %v6055, 1.0
    %v6175 = vadd.f32 %v6057, 1.0
    %v6176 = vadd.f32 %v6059, 1.0
    %v6177 = vadd.f32 %v6061, 1.0
    %v6178 = vadd.f32 %v6063, 1.0
    %v6179 = vadd.f32 %v6065, 1.0
    %v6180 = vadd.f32 %v6067, 1.0
    %v6181 = vadd.f32 %v6069, 1.0
    %v6182 = vadd.f32 %v6071, 1.0
    %v6183 = vadd.f32 %v6073, 1.0
    %v6184 = vadd.f32 %v6075, 1.0
    %v6185 = vadd.f32 %v6077, 1.0
    %v6186 = vadd.f32 %v6079, 1.0
    %v6187 = vadd.f32 %v6081, 1.0
    %v6188 = vadd.f32 %v6083, 1.0
    %v6189 = vadd.f32 %v6085, 1.0
    %v6190 = vadd.f32 %v6087, 1.0
    %v6191 = vadd.f32 %v6089, 1.0
    %v6192 = vadd.f32 %v6091, 1.0
    %v6193 = vadd.f32 %v6093, 1.0
    %v6194 = vadd.f32 %v6095, 1.0
    %v6195 = vadd.f32 %v6097, 1.0
    %v6196 = vadd.f32 %v6099, 1.0
    %v6197 = vadd.f32 %v6101, 1.0
    %v6198 = vadd.f32 %v6103, 1.0
    %v6199 = vadd.f32 %v6105, 1.0
    %v6200 = vadd.f32 %v6107, 1.0
    %v6201 = vadd.f32 %v6109, 1.0
    %v6202 = vadd.f32 %v6111, 1.0
    %v6203 = vadd.f32 %v6113, 1.0
    %v6204 = vadd.f32 %v6115, 1.0
    %v6205 = vadd.f32 %v6117, 1.0
    %v6206 = vadd.f32 %v6119, 1.0
    %v6207 = vadd.f32 %v6121, 1.0
    %v6208 = vadd.f32 %v6123, 1.0
    %v6209 = vadd.f32 %v6125, 1.0
    %v6210 = vadd.f32 %v6127, 1.0
    %v6211 = vadd.f32 %v6129, 1.0
    %v6212 = vadd.f32 %v6131, 1.0
    %v6213 = vadd.f32 %v6133, 1.0
    %v6214 = vadd.f32 %v6135, 1.0
    %v6215 = vadd.f32 %v6137, 1.0
    %v6216 = vadd.f32 %v6139, 1.0
    %v6217 = vadd.f32 %v6141, 1.0
    %v6218 = vadd.f32 %v6143, 1.0
    %v6219 = vadd.f32 %v6145, 1.0
    %v6220 = vadd.f32 %v6147, 1.0
    %v6221 = vadd.f32 %v6149, 1.0
    %v6222 = vadd.f32 %v6151, 1.0
    %v6223 = vadd.f32 %v6153, 1.0
    %v6224 = vadd.f32 %v6155, 1.0
    %v6225 = vadd.f32 %v6157, 1.0
    %v6226 = vadd.f32 %v6159, 1.0
    %v6227 = vadd.f32 %v6161, 1.0
    %v6228 = vadd.f32 %v6163, 1.0
    %v6229 = vadd.f32 %v6165, 1.0
    %v6230 = vrcp.pop %v6166
    %v6231 = vmul.f32 1.0, %v6230
    %v6232 = vrcp.pop %v6167
    %v6233 = vmul.f32 1.0, %v6232
    %v6234 = vrcp.pop %v6168
    %v6235 = vmul.f32 1.0, %v6234
    %v6236 = vrcp.pop %v6169
    %v6237 = vmul.f32 1.0, %v6236
    %v6238 = vrcp.pop %v6170
    %v6239 = vmul.f32 1.0, %v6238
    %v6240 = vrcp.pop %v6171
    %v6241 = vmul.f32 1.0, %v6240
    %v6242 = vrcp.pop %v6172
    %v6243 = vmul.f32 1.0, %v6242
    %v6244 = vrcp.pop %v6173
    %v6245 = vmul.f32 1.0, %v6244
    %v6246 = vrcp.pop %v6174
    %v6247 = vmul.f32 1.0, %v6246
    %v6248 = vrcp.pop %v6175
    %v6249 = vmul.f32 1.0, %v6248
    %v6250 = vrcp.pop %v6176
    %v6251 = vmul.f32 1.0, %v6250
    %v6252 = vrcp.pop %v6177
    %v6253 = vmul.f32 1.0, %v6252
    %v6254 = vrcp.pop %v6178
    %v6255 = vmul.f32 1.0, %v6254
    %v6256 = vrcp.pop %v6179
    %v6257 = vmul.f32 1.0, %v6256
    %v6258 = vrcp.pop %v6180
    %v6259 = vmul.f32 1.0, %v6258
    %v6260 = vrcp.pop %v6181
    %v6261 = vmul.f32 1.0, %v6260
    %v6262 = vrcp.pop %v6182
    %v6263 = vmul.f32 1.0, %v6262
    %v6264 = vrcp.pop %v6183
    %v6265 = vmul.f32 1.0, %v6264
    %v6266 = vrcp.pop %v6184
    %v6267 = vmul.f32 1.0, %v6266
    %v6268 = vrcp.pop %v6185
    %v6269 = vmul.f32 1.0, %v6268
    %v6270 = vrcp.pop %v6186
    %v6271 = vmul.f32 1.0, %v6270
    %v6272 = vrcp.pop %v6187
    %v6273 = vmul.f32 1.0, %v6272
    %v6274 = vrcp.pop %v6188
    %v6275 = vmul.f32 1.0, %v6274
    %v6276 = vrcp.pop %v6189
    %v6277 = vmul.f32 1.0, %v6276
    %v6278 = vrcp.pop %v6190
    %v6279 = vmul.f32 1.0, %v6278
    %v6280 = vrcp.pop %v6191
    %v6281 = vmul.f32 1.0, %v6280
    %v6282 = vrcp.pop %v6192
    %v6283 = vmul.f32 1.0, %v6282
    %v6284 = vrcp.pop %v6193
    %v6285 = vmul.f32 1.0, %v6284
    %v6286 = vrcp.pop %v6194
    %v6287 = vmul.f32 1.0, %v6286
    %v6288 = vrcp.pop %v6195
    %v6289 = vmul.f32 1.0, %v6288
    %v6290 = vrcp.pop %v6196
    %v6291 = vmul.f32 1.0, %v6290
    %v6292 = vrcp.pop %v6197
    %v6293 = vmul.f32 1.0, %v6292
    %v6294 = vrcp.pop %v6198
    %v6295 = vmul.f32 1.0, %v6294
    %v6296 = vrcp.pop %v6199
    %v6297 = vmul.f32 1.0, %v6296
    %v6298 = vrcp.pop %v6200
    %v6299 = vmul.f32 1.0, %v6298
    %v6300 = vrcp.pop %v6201
    %v6301 = vmul.f32 1.0, %v6300
    %v6302 = vrcp.pop %v6202
    %v6303 = vmul.f32 1.0, %v6302
    %v6304 = vrcp.pop %v6203
    %v6305 = vmul.f32 1.0, %v6304
    %v6306 = vrcp.pop %v6204
    %v6307 = vmul.f32 1.0, %v6306
    %v6308 = vrcp.pop %v6205
    %v6309 = vmul.f32 1.0, %v6308
    %v6310 = vrcp.pop %v6206
    %v6311 = vmul.f32 1.0, %v6310
    %v6312 = vrcp.pop %v6207
    %v6313 = vmul.f32 1.0, %v6312
    %v6314 = vrcp.pop %v6208
    %v6315 = vmul.f32 1.0, %v6314
    %v6316 = vrcp.pop %v6209
    %v6317 = vmul.f32 1.0, %v6316
    %v6318 = vrcp.pop %v6210
    %v6319 = vmul.f32 1.0, %v6318
    %v6320 = vrcp.pop %v6211
    %v6321 = vmul.f32 1.0, %v6320
    %v6322 = vrcp.pop %v6212
    %v6323 = vmul.f32 1.0, %v6322
    %v6324 = vrcp.pop %v6213
    %v6325 = vmul.f32 1.0, %v6324
    %v6326 = vrcp.pop %v6214
    %v6327 = vmul.f32 1.0, %v6326
    %v6328 = vrcp.pop %v6215
    %v6329 = vmul.f32 1.0, %v6328
    %v6330 = vrcp.pop %v6216
    %v6331 = vmul.f32 1.0, %v6330
    %v6332 = vrcp.pop %v6217
    %v6333 = vmul.f32 1.0, %v6332
    %v6334 = vrcp.pop %v6218
    %v6335 = vmul.f32 1.0, %v6334
    %v6336 = vrcp.pop %v6219
    %v6337 = vmul.f32 1.0, %v6336
    %v6338 = vrcp.pop %v6220
    %v6339 = vmul.f32 1.0, %v6338
    %v6340 = vrcp.pop %v6221
    %v6341 = vmul.f32 1.0, %v6340
    %v6342 = vrcp.pop %v6222
    %v6343 = vmul.f32 1.0, %v6342
    %v6344 = vrcp.pop %v6223
    %v6345 = vmul.f32 1.0, %v6344
    %v6346 = vrcp.pop %v6224
    %v6347 = vmul.f32 1.0, %v6346
    %v6348 = vrcp.pop %v6225
    %v6349 = vmul.f32 1.0, %v6348
    %v6350 = vrcp.pop %v6226
    %v6351 = vmul.f32 1.0, %v6350
    %v6352 = vrcp.pop %v6227
    %v6353 = vmul.f32 1.0, %v6352
    %v6354 = vrcp.pop %v6228
    %v6355 = vmul.f32 1.0, %v6354
    %v6356 = vrcp.pop %v6229
    %v6357 = vmul.f32 1.0, %v6356
    %v6358 = vmul.f32 %v5557, %v6231
    %v6359 = vmul.f32 %v5559, %v6233
    %v6360 = vmul.f32 %v5896, %v6235
    %v6361 = vmul.f32 %v5898, %v6237
    %v6362 = vmul.f32 %v5561, %v6239
    %v6363 = vmul.f32 %v5563, %v6241
    %v6364 = vmul.f32 %v5900, %v6243
    %v6365 = vmul.f32 %v5902, %v6245
    %v6366 = vmul.f32 %v5567, %v6247
    %v6367 = vmul.f32 %v5569, %v6249
    %v6368 = vmul.f32 %v5906, %v6251
    %v6369 = vmul.f32 %v5908, %v6253
    %v6370 = vmul.f32 %v5571, %v6255
    %v6371 = vmul.f32 %v5573, %v6257
    %v6372 = vmul.f32 %v5910, %v6259
    %v6373 = vmul.f32 %v5912, %v6261
    %v6374 = vmul.f32 %v5577, %v6263
    %v6375 = vmul.f32 %v5579, %v6265
    %v6376 = vmul.f32 %v5916, %v6267
    %v6377 = vmul.f32 %v5918, %v6269
    %v6378 = vmul.f32 %v5581, %v6271
    %v6379 = vmul.f32 %v5583, %v6273
    %v6380 = vmul.f32 %v5920, %v6275
    %v6381 = vmul.f32 %v5922, %v6277
    %v6382 = vmul.f32 %v5587, %v6279
    %v6383 = vmul.f32 %v5589, %v6281
    %v6384 = vmul.f32 %v5926, %v6283
    %v6385 = vmul.f32 %v5928, %v6285
    %v6386 = vmul.f32 %v5591, %v6287
    %v6387 = vmul.f32 %v5593, %v6289
    %v6388 = vmul.f32 %v5930, %v6291
    %v6389 = vmul.f32 %v5932, %v6293
    %v6390 = vmul.f32 %v5597, %v6295
    %v6391 = vmul.f32 %v5599, %v6297
    %v6392 = vmul.f32 %v5936, %v6299
    %v6393 = vmul.f32 %v5938, %v6301
    %v6394 = vmul.f32 %v5601, %v6303
    %v6395 = vmul.f32 %v5603, %v6305
    %v6396 = vmul.f32 %v5940, %v6307
    %v6397 = vmul.f32 %v5942, %v6309
    %v6398 = vmul.f32 %v5607, %v6311
    %v6399 = vmul.f32 %v5609, %v6313
    %v6400 = vmul.f32 %v5946, %v6315
    %v6401 = vmul.f32 %v5948, %v6317
    %v6402 = vmul.f32 %v5611, %v6319
    %v6403 = vmul.f32 %v5613, %v6321
    %v6404 = vmul.f32 %v5950, %v6323
    %v6405 = vmul.f32 %v5952, %v6325
    %v6406 = vmul.f32 %v5617, %v6327
    %v6407 = vmul.f32 %v5619, %v6329
    %v6408 = vmul.f32 %v5956, %v6331
    %v6409 = vmul.f32 %v5958, %v6333
    %v6410 = vmul.f32 %v5621, %v6335
    %v6411 = vmul.f32 %v5623, %v6337
    %v6412 = vmul.f32 %v5960, %v6339
    %v6413 = vmul.f32 %v5962, %v6341
    %v6414 = vmul.f32 %v5627, %v6343
    %v6415 = vmul.f32 %v5629, %v6345
    %v6416 = vmul.f32 %v5966, %v6347
    %v6417 = vmul.f32 %v5968, %v6349
    %v6418 = vmul.f32 %v5631, %v6351
    %v6419 = vmul.f32 %v5633, %v6353
    %v6420 = vmul.f32 %v5970, %v6355
    %v6421 = vmul.f32 %v5972, %v6357
    %v6422 = vld [vmem:[%s8] sm:$0xf]
    %v6424 = vlaneseq
    %v6425 = vshrl.u32 %v6424, 7
    %v6426 = vsub.s32 0, %v6425
    %v6427 = vrot.slane %v6422, %v6426
    %v6428 = vlaneseq
    %v6429 = vshrl.u32 %v6428, 7
    %v6430 = vsub.s32 1, %v6429
    %v6431 = vrot.slane %v6422, %v6430
    %v6432 = vlaneseq
    %v6433 = vshrl.u32 %v6432, 7
    %v6434 = vsub.s32 2, %v6433
    %v6435 = vrot.slane %v6422, %v6434
    %v6436 = vlaneseq
    %v6437 = vshrl.u32 %v6436, 7
    %v6438 = vsub.s32 3, %v6437
    %v6439 = vrot.slane %v6422, %v6438
    %v6444 = vmul.f32 %v6358, %v6427
    %v6445 = vmul.f32 %v6359, %v6431
    %v6446 = vmul.f32 %v6360, %v6435
    %v6447 = vmul.f32 %v6361, %v6439
    %v6448 = vmul.f32 %v6362, %v6427
    %v6449 = vmul.f32 %v6363, %v6431
    %v6450 = vmul.f32 %v6364, %v6435
    %v6451 = vmul.f32 %v6365, %v6439
    %v6452 = vmul.f32 %v6366, %v6427
    %v6453 = vmul.f32 %v6367, %v6431
    %v6454 = vmul.f32 %v6368, %v6435
    %v6455 = vmul.f32 %v6369, %v6439
    %v6456 = vmul.f32 %v6370, %v6427
    %v6457 = vmul.f32 %v6371, %v6431
    %v6458 = vmul.f32 %v6372, %v6435
    %v6459 = vmul.f32 %v6373, %v6439
    %v6460 = vmul.f32 %v6374, %v6427
    %v6461 = vmul.f32 %v6375, %v6431
    %v6462 = vmul.f32 %v6376, %v6435
    %v6463 = vmul.f32 %v6377, %v6439
    %v6464 = vmul.f32 %v6378, %v6427
    %v6465 = vmul.f32 %v6379, %v6431
    %v6466 = vmul.f32 %v6380, %v6435
    %v6467 = vmul.f32 %v6381, %v6439
    %v6468 = vmul.f32 %v6382, %v6427
    %v6469 = vmul.f32 %v6383, %v6431
    %v6470 = vmul.f32 %v6384, %v6435
    %v6471 = vmul.f32 %v6385, %v6439
    %v6472 = vmul.f32 %v6386, %v6427
    %v6473 = vmul.f32 %v6387, %v6431
    %v6474 = vmul.f32 %v6388, %v6435
    %v6475 = vmul.f32 %v6389, %v6439
    %v6476 = vmul.f32 %v6390, %v6427
    %v6477 = vmul.f32 %v6391, %v6431
    %v6478 = vmul.f32 %v6392, %v6435
    %v6479 = vmul.f32 %v6393, %v6439
    %v6480 = vmul.f32 %v6394, %v6427
    %v6481 = vmul.f32 %v6395, %v6431
    %v6482 = vmul.f32 %v6396, %v6435
    %v6483 = vmul.f32 %v6397, %v6439
    %v6484 = vmul.f32 %v6398, %v6427
    %v6485 = vmul.f32 %v6399, %v6431
    %v6486 = vmul.f32 %v6400, %v6435
    %v6487 = vmul.f32 %v6401, %v6439
    %v6488 = vmul.f32 %v6402, %v6427
    %v6489 = vmul.f32 %v6403, %v6431
    %v6490 = vmul.f32 %v6404, %v6435
    %v6491 = vmul.f32 %v6405, %v6439
    %v6492 = vmul.f32 %v6406, %v6427
    %v6493 = vmul.f32 %v6407, %v6431
    %v6494 = vmul.f32 %v6408, %v6435
    %v6495 = vmul.f32 %v6409, %v6439
    %v6496 = vmul.f32 %v6410, %v6427
    %v6497 = vmul.f32 %v6411, %v6431
    %v6498 = vmul.f32 %v6412, %v6435
    %v6499 = vmul.f32 %v6413, %v6439
    %v6500 = vmul.f32 %v6414, %v6427
    %v6501 = vmul.f32 %v6415, %v6431
    %v6502 = vmul.f32 %v6416, %v6435
    %v6503 = vmul.f32 %v6417, %v6439
    %v6504 = vmul.f32 %v6418, %v6427
    %v6505 = vmul.f32 %v6419, %v6431
    %v6506 = vmul.f32 %v6420, %v6435
    %v6507 = vmul.f32 %v6421, %v6439
    %v6508 = vadd.f32 %v6444, %v6445
    %v6509 = vadd.f32 %v6508, %v6446
    %v6510 = vadd.f32 %v6509, %v6447
    %6511 = vadd.xlane.f32.xlu0 %v6510
    %v6512 = vpop.xlane.xlu0 %6511
    %v6513 = vadd.f32 %v6448, %v6449
    %v6514 = vadd.f32 %v6513, %v6450
    %v6515 = vadd.f32 %v6514, %v6451
    %6516 = vadd.xlane.f32.xlu0 %v6515
    %v6517 = vpop.xlane.xlu0 %6516
    %v6518 = vadd.f32 %v6452, %v6453
    %v6519 = vadd.f32 %v6518, %v6454
    %v6520 = vadd.f32 %v6519, %v6455
    %6521 = vadd.xlane.f32.xlu0 %v6520
    %v6522 = vpop.xlane.xlu0 %6521
    %v6523 = vadd.f32 %v6456, %v6457
    %v6524 = vadd.f32 %v6523, %v6458
    %v6525 = vadd.f32 %v6524, %v6459
    %6526 = vadd.xlane.f32.xlu0 %v6525
    %v6527 = vpop.xlane.xlu0 %6526
    %v6528 = vadd.f32 %v6460, %v6461
    %v6529 = vadd.f32 %v6528, %v6462
    %v6530 = vadd.f32 %v6529, %v6463
    %6531 = vadd.xlane.f32.xlu0 %v6530
    %v6532 = vpop.xlane.xlu0 %6531
    %v6533 = vadd.f32 %v6464, %v6465
    %v6534 = vadd.f32 %v6533, %v6466
    %v6535 = vadd.f32 %v6534, %v6467
    %6536 = vadd.xlane.f32.xlu0 %v6535
    %v6537 = vpop.xlane.xlu0 %6536
    %v6538 = vadd.f32 %v6468, %v6469
    %v6539 = vadd.f32 %v6538, %v6470
    %v6540 = vadd.f32 %v6539, %v6471
    %6541 = vadd.xlane.f32.xlu0 %v6540
    %v6542 = vpop.xlane.xlu0 %6541
    %v6543 = vadd.f32 %v6472, %v6473
    %v6544 = vadd.f32 %v6543, %v6474
    %v6545 = vadd.f32 %v6544, %v6475
    %6546 = vadd.xlane.f32.xlu0 %v6545
    %v6547 = vpop.xlane.xlu0 %6546
    %v6548 = vadd.f32 %v6476, %v6477
    %v6549 = vadd.f32 %v6548, %v6478
    %v6550 = vadd.f32 %v6549, %v6479
    %6551 = vadd.xlane.f32.xlu0 %v6550
    %v6552 = vpop.xlane.xlu0 %6551
    %v6553 = vadd.f32 %v6480, %v6481
    %v6554 = vadd.f32 %v6553, %v6482
    %v6555 = vadd.f32 %v6554, %v6483
    %6556 = vadd.xlane.f32.xlu0 %v6555
    %v6557 = vpop.xlane.xlu0 %6556
    %v6558 = vadd.f32 %v6484, %v6485
    %v6559 = vadd.f32 %v6558, %v6486
    %v6560 = vadd.f32 %v6559, %v6487
    %6561 = vadd.xlane.f32.xlu0 %v6560
    %v6562 = vpop.xlane.xlu0 %6561
    %v6563 = vadd.f32 %v6488, %v6489
    %v6564 = vadd.f32 %v6563, %v6490
    %v6565 = vadd.f32 %v6564, %v6491
    %6566 = vadd.xlane.f32.xlu0 %v6565
    %v6567 = vpop.xlane.xlu0 %6566
    %v6568 = vadd.f32 %v6492, %v6493
    %v6569 = vadd.f32 %v6568, %v6494
    %v6570 = vadd.f32 %v6569, %v6495
    %6571 = vadd.xlane.f32.xlu0 %v6570
    %v6572 = vpop.xlane.xlu0 %6571
    %v6573 = vadd.f32 %v6496, %v6497
    %v6574 = vadd.f32 %v6573, %v6498
    %v6575 = vadd.f32 %v6574, %v6499
    %6576 = vadd.xlane.f32.xlu0 %v6575
    %v6577 = vpop.xlane.xlu0 %6576
    %v6578 = vadd.f32 %v6500, %v6501
    %v6579 = vadd.f32 %v6578, %v6502
    %v6580 = vadd.f32 %v6579, %v6503
    %6581 = vadd.xlane.f32.xlu0 %v6580
    %v6582 = vpop.xlane.xlu0 %6581
    %v6583 = vadd.f32 %v6504, %v6505
    %v6584 = vadd.f32 %v6583, %v6506
    %v6585 = vadd.f32 %v6584, %v6507
    %6586 = vadd.xlane.f32.xlu0 %v6585
    %v6587 = vpop.xlane.xlu0 %6586
    %v6588 = vld [vmem:[#allocation2] sm:$0x1]
    %v6590 = vlaneseq
    %v6591 = vshrl.u32 %v6590, 7
    %v6592 = vsub.s32 0, %v6591
    %v6593 = vrot.slane %v6588, %v6592
    %v6595 = vadd.f32 %v6512, %v6593
    %v6596 = vadd.f32 %v6517, %v6593
    %v6597 = vadd.f32 %v6522, %v6593
    %v6598 = vadd.f32 %v6527, %v6593
    %v6599 = vadd.f32 %v6532, %v6593
    %v6600 = vadd.f32 %v6537, %v6593
    %v6601 = vadd.f32 %v6542, %v6593
    %v6602 = vadd.f32 %v6547, %v6593
    %v6603 = vadd.f32 %v6552, %v6593
    %v6604 = vadd.f32 %v6557, %v6593
    %v6605 = vadd.f32 %v6562, %v6593
    %v6606 = vadd.f32 %v6567, %v6593
    %v6607 = vadd.f32 %v6572, %v6593
    %v6608 = vadd.f32 %v6577, %v6593
    %v6609 = vadd.f32 %v6582, %v6593
    %v6610 = vadd.f32 %v6587, %v6593
    %vm6611 = vcmask 7168
    %6612 = vst.msk [vmem:[%s10] sm:$0xff] %vm6611, %v6595
    %6613 = vst.msk [vmem:[%s10 + $0x8] sm:$0xff] %vm6611, %v6596
    %6614 = vst.msk [vmem:[%s10 + $0x10] sm:$0xff] %vm6611, %v6597
    %6615 = vst.msk [vmem:[%s10 + $0x18] sm:$0xff] %vm6611, %v6598
    %6616 = vst.msk [vmem:[%s10 + $0x20] sm:$0xff] %vm6611, %v6599
    %6617 = vst.msk [vmem:[%s10 + $0x28] sm:$0xff] %vm6611, %v6600
    %6618 = vst.msk [vmem:[%s10 + $0x30] sm:$0xff] %vm6611, %v6601
    %6619 = vst.msk [vmem:[%s10 + $0x38] sm:$0xff] %vm6611, %v6602
    %6620 = vst.msk [vmem:[%s10 + $0x40] sm:$0xff] %vm6611, %v6603
    %6621 = vst.msk [vmem:[%s10 + $0x48] sm:$0xff] %vm6611, %v6604
    %6622 = vst.msk [vmem:[%s10 + $0x50] sm:$0xff] %vm6611, %v6605
    %6623 = vst.msk [vmem:[%s10 + $0x58] sm:$0xff] %vm6611, %v6606
    %6624 = vst.msk [vmem:[%s10 + $0x60] sm:$0xff] %vm6611, %v6607
    %6625 = vst.msk [vmem:[%s10 + $0x68] sm:$0xff] %vm6611, %v6608
    %6626 = vst.msk [vmem:[%s10 + $0x70] sm:$0xff] %vm6611, %v6609
    %6627 = vst.msk [vmem:[%s10 + $0x78] sm:$0xff] %vm6611, %v6610
    // Predicated region
    $region46: #{_toynet_forward_jit.1} parent=1 // pred_check
      _
    $region47: #{_toynet_forward_jit.1} parent=1 // pred_check_branch
      %6629 = sbr.rel (0) target = $region49
    $region48: #{_toynet_forward_jit.1} parent=1 // pred_region
      _
    $region49: #{_toynet_forward_jit.1} parent=1 // pred_fallthru
      _
    // Predicated region
    $region50: #{_toynet_forward_jit.1} parent=1 // pred_check
      _
    $region51: #{_toynet_forward_jit.1} parent=1 // pred_check_branch
      %6631 = sbr.rel (0) target = $region53
    $region52: #{_toynet_forward_jit.1} parent=1 // pred_region
      _
    $region53: #{_toynet_forward_jit.1} parent=1 // pred_fallthru
      _
    %6632 = vsyncpa [#allocation4], 1

</llo_original>
